<compile_context>
chip_gen: v6e
topology: v6e:2x2x1
jax: 0.10.0
libtpu: 0.0.40
codegen_flags: <defaults>
</compile_context>

<pallas_src>
import functools

import jax
import jax.numpy as jnp
from jax import lax
from jax.experimental import pallas as pl
from jax.experimental.pallas import tpu as pltpu


MXU_DTYPE = jnp.bfloat16        # MXU operand dtype; accumulation is always f32
_NEG_INF = -1e30


def _mxu_dot(a, b):
    """a @ b on the MXU: bf16 operands, f32 accumulation."""
    return jnp.dot(a.astype(MXU_DTYPE), b.astype(MXU_DTYPE),
                   preferred_element_type=jnp.float32)


def _mxu_dot_nt(a, b):
    """a @ b.T on the MXU (contraction on the last dim of both operands)."""
    return lax.dot_general(a.astype(MXU_DTYPE), b.astype(MXU_DTYPE),
                           dimension_numbers=(((1,), (1,)), ((), ())),
                           preferred_element_type=jnp.float32)


def _layer_norm(x, gamma, beta, eps=1e-5):
    mu = jnp.mean(x, axis=-1, keepdims=True)
    var = jnp.mean((x - mu) ** 2, axis=-1, keepdims=True)
    return (x - mu) * lax.rsqrt(var + eps) * gamma + beta


def _full_spec(*shape):
    """Whole-array block (all demo shapes are tiny, so full blocks are fine)."""
    return pl.BlockSpec(shape, lambda i: (0,) * len(shape))


# ----------------------------------------------------------------------------
# ONE fused kernel: embedding -> L x encoder layer -> expand_proj -> max pool
# ----------------------------------------------------------------------------
def _graph_transformer_kernel(tok_ref, bcol_ref, brow_ref,
                              emb_tab_ref, emb_w_ref,
                              wqkv_ref, wo_ref, w1_ref, w2_ref, vecs_ref,
                              exp_w1_ref, exp_w2_ref, misc_ref,
                              o_ref, *,
                              num_heads, num_layers, d_model, ffn_dim,
                              vocab, num_graphs):
    n = tok_ref.shape[0]
    d = d_model
    dh = d // num_heads
    scale = 1.0 / (dh ** 0.5)

    misc = misc_ref[...]                                    # (3, 8d) f32

    # ---- self.embedding: one-hot (N,V) @ (V,2d) + Linear(2d,d) + ReLU ------
    tok = tok_ref[...]                                      # (N, 1) int32
    vocab_iota = lax.broadcasted_iota(jnp.int32, (n, vocab), 1)
    onehot = jnp.where(tok == vocab_iota, 1.0, 0.0).astype(MXU_DTYPE)  # (N,V)
    emb = _mxu_dot(onehot, emb_tab_ref[...])                # (N, 2d) f32
    emb_b = misc[0:1, :d]                                   # (1, d)
    x = jnp.maximum(_mxu_dot(emb, emb_w_ref[...]) + emb_b, 0.0)        # (N, d)

    # ---- block-diagonal per-graph mask from the batch vector ---------------
    same_graph = bcol_ref[...] == brow_ref[...]             # (N,1)==(1,N) -> (N,N)

    # ---- encoder layers (post-LayerNorm, batch_norm=False), static unroll --
    for l in range(num_layers):
        vecs = vecs_ref[l]                                  # (8, W) f32 slab
        bqkv = vecs[0:1, :3 * d]
        bo = vecs[1:2, :d]
        ln1_g = vecs[2:3, :d]
        ln1_b = vecs[3:4, :d]
        b1 = vecs[4:5, :ffn_dim]
        b2 = vecs[5:6, :d]
        ln2_g = vecs[6:7, :d]
        ln2_b = vecs[7:8, :d]
        wo_l = wo_ref[l]                                    # (d, d) bf16

        # Fused QKV projection: single (d, 3d) matmul.
        qkv = _mxu_dot(x, wqkv_ref[l]) + bqkv               # (N, 3d) f32

        # Per-head attention with Wo folded into the head loop (no lane concat).
        attn = jnp.zeros((n, d), jnp.float32)
        for h in range(num_heads):                          # static head loop
            qh = qkv[:, h * dh:(h + 1) * dh]
            kh = qkv[:, d + h * dh:d + (h + 1) * dh]
            vh = qkv[:, 2 * d + h * dh:2 * d + (h + 1) * dh]
            s = _mxu_dot_nt(qh, kh) * scale                 # (N, N) f32 scores
            s = jnp.where(same_graph, s, _NEG_INF)
            s = s - jnp.max(s, axis=-1, keepdims=True)
            p = jnp.exp(s)
            p = p * pl.reciprocal(jnp.sum(p, axis=-1, keepdims=True), approx=True)
            oh = _mxu_dot(p, vh)                            # (N, dh)
            # Wo row slices start at multiples of dh (=8): sublane-aligned.
            attn = attn + _mxu_dot(oh, wo_l[h * dh:(h + 1) * dh, :])
        attn = attn + bo

        # Residual + LayerNorm1 (post-norm).
        x1 = _layer_norm(x + attn, ln1_g, ln1_b)

        # FFN + residual + LayerNorm2.
        hidden = jnp.maximum(_mxu_dot(x1, w1_ref[l]) + b1, 0.0)
        ffn = _mxu_dot(hidden, w2_ref[l]) + b2
        x = _layer_norm(x1 + ffn, ln2_g, ln2_b)

    # ---- expand_proj: Linear(d,4d)+ReLU -> Linear(4d,8d)+ReLU --------------
    exp_b1 = misc[1:2, :4 * d]
    exp_b2 = misc[2:3, :8 * d]
    h1 = jnp.maximum(_mxu_dot(x, exp_w1_ref[...]) + exp_b1, 0.0)       # (N, 4d)
    y = jnp.maximum(_mxu_dot(h1, exp_w2_ref[...]) + exp_b2, 0.0)       # (N, 8d)

    # ---- global_max_pool over per-graph node segments -----------------------
    # TODO(synk): for large G, scalar-prefetch per-graph row offsets and reduce
    # with pl.ds sublane slices (O(N*D)) instead of G masked full passes.
    bcol = bcol_ref[...]                                    # (N, 1) int32
    rows = []
    for g in range(num_graphs):                             # static graph loop
        masked = jnp.where(bcol == g, y, _NEG_INF)
        rows.append(jnp.max(masked, axis=0, keepdims=True))  # (1, 8d)
    o_ref[...] = jnp.concatenate(rows, axis=0)              # (G, 8d)


# ----------------------------------------------------------------------------
# Parameters (weights stored bf16, stacked per layer; small vectors packed)
# ----------------------------------------------------------------------------
def _pack_rows(vectors, width):
    """Pack 1-D f32 vectors into a (len(vectors), width) zero-padded slab."""
    rows = [jnp.pad(v.astype(jnp.float32), (0, width - v.shape[0]))
            for v in vectors]
    return jnp.stack(rows, axis=0)


def init_params(key, *, vocab, d_model, num_heads, dim_feedforward, num_layers):
    d = d_model
    keys = iter(jax.random.split(key, 128))

    def w(shape, scale=0.05):
        return (scale * jax.random.normal(next(keys), shape,
                                          dtype=jnp.float32)).astype(MXU_DTYPE)

    zeros = lambda k: jnp.zeros((k,), jnp.float32)
    ones = lambda k: jnp.ones((k,), jnp.float32)
    vec_w = max(3 * d, dim_feedforward)

    wqkv, wo, w1, w2, vecs = [], [], [], [], []
    for _ in range(num_layers):
        wqkv.append(jnp.concatenate([w((d, d)) for _ in range(3)], axis=1))
        wo.append(w((d, d)))
        w1.append(w((d, dim_feedforward)))
        w2.append(w((dim_feedforward, d)))
        vecs.append(_pack_rows(
            [zeros(3 * d),                 # bqkv
             zeros(d),                     # bo
             ones(d), zeros(d),            # ln1 gamma / beta
             zeros(dim_feedforward),       # ffn b1
             zeros(d),                     # ffn b2
             ones(d), zeros(d)],           # ln2 gamma / beta
            vec_w))

    params = {
        "emb_table": w((vocab, 2 * d)),
        "emb_w": w((2 * d, d)),
        "exp_w1": w((d, 4 * d)),
        "exp_w2": w((4 * d, 8 * d)),
        # misc f32 slab: row0 = emb_b, row1 = exp_b1, row2 = exp_b2
        "misc_vecs": _pack_rows([zeros(d), zeros(4 * d), zeros(8 * d)], 8 * d),
        "wqkv": jnp.stack(wqkv),           # (L, d, 3d)
        "wo": jnp.stack(wo),               # (L, d, d)
        "ffn_w1": jnp.stack(w1),           # (L, d, ffn)
        "ffn_w2": jnp.stack(w2),           # (L, ffn, d)
        "layer_vecs": jnp.stack(vecs),     # (L, 8, vec_w) f32
    }
    return params


# ----------------------------------------------------------------------------
# Forward glue: one pallas_call for the whole network
# ----------------------------------------------------------------------------
def graph_transformer_forward(params, tokens, batch, num_graphs, *, num_heads):
    """tokens: (N,) int32 node tokens; batch: (N,) int32 graph id per node."""
    n = tokens.shape[0]
    vocab, d2 = params["emb_table"].shape
    d = d2 // 2
    num_layers = params["wqkv"].shape[0]
    ffn_dim = params["ffn_w1"].shape[2]
    vec_w = params["layer_vecs"].shape[2]

    tok2d = tokens.reshape(n, 1).astype(jnp.int32)
    bcol = batch.reshape(n, 1).astype(jnp.int32)
    brow = batch.reshape(1, n).astype(jnp.int32)

    kern = functools.partial(
        _graph_transformer_kernel,
        num_heads=num_heads, num_layers=num_layers, d_model=d,
        ffn_dim=ffn_dim, vocab=vocab, num_graphs=num_graphs)

    return pl.pallas_call(
        kern,
        out_shape=jax.ShapeDtypeStruct((num_graphs, 8 * d), jnp.float32),
        grid=(1,),
        in_specs=[
            _full_spec(n, 1),                               # tokens
            _full_spec(n, 1), _full_spec(1, n),             # batch col / row
            _full_spec(vocab, 2 * d),                       # embedding table
            _full_spec(2 * d, d),                           # embedding linear
            _full_spec(num_layers, d, 3 * d),               # fused QKV (stacked)
            _full_spec(num_layers, d, d),                   # out proj (stacked)
            _full_spec(num_layers, d, ffn_dim),             # ffn w1 (stacked)
            _full_spec(num_layers, ffn_dim, d),             # ffn w2 (stacked)
            _full_spec(num_layers, 8, vec_w),               # per-layer vec slab
            _full_spec(d, 4 * d),                           # expand w1
            _full_spec(4 * d, 8 * d),                       # expand w2
            _full_spec(3, 8 * d),                           # misc vec slab
        ],
        out_specs=_full_spec(num_graphs, 8 * d),
        compiler_params=pltpu.CompilerParams(
            dimension_semantics=("arbitrary",)),
    )(tok2d, bcol, brow,
      params["emb_table"], params["emb_w"],
      params["wqkv"], params["wo"], params["ffn_w1"], params["ffn_w2"],
      params["layer_vecs"],
      params["exp_w1"], params["exp_w2"], params["misc_vecs"])


# ----------------------------------------------------------------------------
# Demo
# ----------------------------------------------------------------------------
if __name__ == "__main__":
    VOCAB = 16          # input_shape (int) -> nn.Embedding vocab size
    D_MODEL = 32
    NUM_HEADS = 4
    DIM_FFN = 64
    NUM_LAYERS = 2
    N_NODES = 8
    NUM_GRAPHS = 2

    key = jax.random.PRNGKey(0)
    k_params, k_tok = jax.random.split(key)

    params = init_params(
        k_params, vocab=VOCAB, d_model=D_MODEL, num_heads=NUM_HEADS,
        dim_feedforward=DIM_FFN, num_layers=NUM_LAYERS)

    tokens = jax.random.randint(k_tok, (N_NODES,), 0, VOCAB, dtype=jnp.int32)
    batch = jnp.array([0, 0, 0, 0, 1, 1, 1, 1], dtype=jnp.int32)  # 2 graphs, 4 nodes each

    fwd = jax.jit(functools.partial(graph_transformer_forward,
                                    num_graphs=NUM_GRAPHS, num_heads=NUM_HEADS))
    out = fwd(params, tokens, batch)
    out = jax.block_until_ready(out)
    assert out.shape == (NUM_GRAPHS, 8 * D_MODEL) and out.dtype == jnp.float32
    assert bool(jnp.all(jnp.isfinite(out)))
    print("KERNEL_OK")
</pallas_src>

<mosaic_0001>
module attributes {stable_mosaic.version = 11 : i64} {
  func.func @_graph_transformer_kernel(%arg0: i32, %arg1: memref<8x1xi32, #tpu.memory_space<vmem>>, %arg2: memref<8x1xi32, #tpu.memory_space<vmem>>, %arg3: memref<1x8xi32, #tpu.memory_space<vmem>>, %arg4: memref<16x64xbf16, #tpu.memory_space<vmem>>, %arg5: memref<64x32xbf16, #tpu.memory_space<vmem>>, %arg6: memref<2x32x96xbf16, #tpu.memory_space<vmem>>, %arg7: memref<2x32x32xbf16, #tpu.memory_space<vmem>>, %arg8: memref<2x32x64xbf16, #tpu.memory_space<vmem>>, %arg9: memref<2x64x32xbf16, #tpu.memory_space<vmem>>, %arg10: memref<2x8x96xf32, #tpu.memory_space<vmem>>, %arg11: memref<32x128xbf16, #tpu.memory_space<vmem>>, %arg12: memref<128x256xbf16, #tpu.memory_space<vmem>>, %arg13: memref<3x256xf32, #tpu.memory_space<vmem>>, %arg14: memref<2x256xf32, #tpu.memory_space<vmem>>) attributes {dimension_semantics = [#tpu.dimension_semantics<arbitrary>], iteration_bounds = array<i64: 1>, scalar_prefetch = 0 : i64, scratch_operands = 0 : i64, tpu.core_type = #tpu.core_type<tc>, window_params = [{pipeline_mode = #tpu.pipeline_mode<synchronous>, transform_indices = @transform_0, window_bounds = array<i64: 8, 1>}, {pipeline_mode = #tpu.pipeline_mode<synchronous>, transform_indices = @transform_1, window_bounds = array<i64: 8, 1>}, {pipeline_mode = #tpu.pipeline_mode<synchronous>, transform_indices = @transform_2, window_bounds = array<i64: 1, 8>}, {pipeline_mode = #tpu.pipeline_mode<synchronous>, transform_indices = @transform_3, window_bounds = array<i64: 16, 64>}, {pipeline_mode = #tpu.pipeline_mode<synchronous>, transform_indices = @transform_4, window_bounds = array<i64: 64, 32>}, {pipeline_mode = #tpu.pipeline_mode<synchronous>, transform_indices = @transform_5, window_bounds = array<i64: 2, 32, 96>}, {pipeline_mode = #tpu.pipeline_mode<synchronous>, transform_indices = @transform_6, window_bounds = array<i64: 2, 32, 32>}, {pipeline_mode = #tpu.pipeline_mode<synchronous>, transform_indices = @transform_7, window_bounds = array<i64: 2, 32, 64>}, {pipeline_mode = #tpu.pipeline_mode<synchronous>, transform_indices = @transform_8, window_bounds = array<i64: 2, 64, 32>}, {pipeline_mode = #tpu.pipeline_mode<synchronous>, transform_indices = @transform_9, window_bounds = array<i64: 2, 8, 96>}, {pipeline_mode = #tpu.pipeline_mode<synchronous>, transform_indices = @transform_10, window_bounds = array<i64: 32, 128>}, {pipeline_mode = #tpu.pipeline_mode<synchronous>, transform_indices = @transform_11, window_bounds = array<i64: 128, 256>}, {pipeline_mode = #tpu.pipeline_mode<synchronous>, transform_indices = @transform_12, window_bounds = array<i64: 3, 256>}, {pipeline_mode = #tpu.pipeline_mode<synchronous>, transform_indices = @transform_13, window_bounds = array<i64: 2, 256>}]} {
    %c0 = arith.constant 0 : index
    %c0_0 = arith.constant 0 : index
    %0 = vector.load %arg13[%c0, %c0_0] : memref<3x256xf32, #tpu.memory_space<vmem>>, vector<3x256xf32>
    %c0_1 = arith.constant 0 : index
    %c0_2 = arith.constant 0 : index
    %1 = vector.load %arg1[%c0_1, %c0_2] : memref<8x1xi32, #tpu.memory_space<vmem>>, vector<8x1xi32>
    %2 = tpu.iota {dimensions = array<i32: 1>} : vector<8x16xi32>
    %3 = vector.broadcast %1 : vector<8x1xi32> to vector<8x16xi32>
    %4 = arith.cmpi eq, %3, %2 : vector<8x16xi32>
    %cst = arith.constant 1.000000e+00 : f32
    %cst_3 = arith.constant 0.000000e+00 : f32
    %5 = vector.broadcast %cst : f32 to vector<8x16xf32>
    %6 = vector.broadcast %cst_3 : f32 to vector<8x16xf32>
    %7 = arith.select %4, %5, %6 : vector<8x16xi1>, vector<8x16xf32>
    %8 = arith.truncf %7 : vector<8x16xf32> to vector<8x16xbf16>
    %c0_4 = arith.constant 0 : index
    %c0_5 = arith.constant 0 : index
    %9 = vector.load %arg4[%c0_4, %c0_5] : memref<16x64xbf16, #tpu.memory_space<vmem>>, vector<16x64xbf16>
    %cst_6 = arith.constant dense<0.000000e+00> : vector<8x64xf32>
    %10 = tpu.matmul %8, %9, %cst_6 {dimension_numbers = #tpu.dot_dimension_numbers<[1], [0], [0], [1], [0, 0, 1, 1], [], []>} : vector<8x16xbf16>, vector<16x64xbf16>, vector<8x64xf32> -> vector<8x64xf32>
    %11 = vector.extract_strided_slice %0 {offsets = [0, 0], sizes = [1, 32], strides = [1, 1]} : vector<3x256xf32> to vector<1x32xf32>
    %c0_7 = arith.constant 0 : index
    %c0_8 = arith.constant 0 : index
    %12 = vector.load %arg5[%c0_7, %c0_8] : memref<64x32xbf16, #tpu.memory_space<vmem>>, vector<64x32xbf16>
    %13 = arith.truncf %10 : vector<8x64xf32> to vector<8x64xbf16>
    %cst_9 = arith.constant dense<0.000000e+00> : vector<8x32xf32>
    %14 = tpu.matmul %13, %12, %cst_9 {dimension_numbers = #tpu.dot_dimension_numbers<[1], [0], [0], [1], [0, 0, 1, 1], [], []>} : vector<8x64xbf16>, vector<64x32xbf16>, vector<8x32xf32> -> vector<8x32xf32>
    %15 = vector.broadcast %11 : vector<1x32xf32> to vector<8x32xf32>
    %16 = arith.addf %14, %15 : vector<8x32xf32>
    %cst_10 = arith.constant 0.000000e+00 : f32
    %17 = vector.broadcast %cst_10 : f32 to vector<8x32xf32>
    %18 = arith.maximumf %16, %17 : vector<8x32xf32>
    %c0_11 = arith.constant 0 : index
    %c0_12 = arith.constant 0 : index
    %19 = vector.load %arg2[%c0_11, %c0_12] : memref<8x1xi32, #tpu.memory_space<vmem>>, vector<8x1xi32>
    %c0_13 = arith.constant 0 : index
    %c0_14 = arith.constant 0 : index
    %20 = vector.load %arg3[%c0_13, %c0_14] : memref<1x8xi32, #tpu.memory_space<vmem>>, vector<1x8xi32>
    %21 = vector.broadcast %19 : vector<8x1xi32> to vector<8x8xi32>
    %22 = vector.broadcast %20 : vector<1x8xi32> to vector<8x8xi32>
    %23 = arith.cmpi eq, %21, %22 : vector<8x8xi32>
    %c0_15 = arith.constant 0 : index
    %c0_16 = arith.constant 0 : index
    %c0_17 = arith.constant 0 : index
    %24 = vector.load %arg10[%c0_15, %c0_16, %c0_17] : memref<2x8x96xf32, #tpu.memory_space<vmem>>, vector<1x8x96xf32>
    %25 = vector.shape_cast %24 : vector<1x8x96xf32> to vector<8x96xf32>
    %26 = vector.extract_strided_slice %25 {offsets = [0, 0], sizes = [1, 96], strides = [1, 1]} : vector<8x96xf32> to vector<1x96xf32>
    %27 = vector.extract_strided_slice %25 {offsets = [1, 0], sizes = [1, 32], strides = [1, 1]} : vector<8x96xf32> to vector<1x32xf32>
    %28 = vector.extract_strided_slice %25 {offsets = [2, 0], sizes = [1, 32], strides = [1, 1]} : vector<8x96xf32> to vector<1x32xf32>
    %29 = vector.extract_strided_slice %25 {offsets = [3, 0], sizes = [1, 32], strides = [1, 1]} : vector<8x96xf32> to vector<1x32xf32>
    %30 = vector.extract_strided_slice %25 {offsets = [4, 0], sizes = [1, 64], strides = [1, 1]} : vector<8x96xf32> to vector<1x64xf32>
    %31 = vector.extract_strided_slice %25 {offsets = [5, 0], sizes = [1, 32], strides = [1, 1]} : vector<8x96xf32> to vector<1x32xf32>
    %32 = vector.extract_strided_slice %25 {offsets = [6, 0], sizes = [1, 32], strides = [1, 1]} : vector<8x96xf32> to vector<1x32xf32>
    %33 = vector.extract_strided_slice %25 {offsets = [7, 0], sizes = [1, 32], strides = [1, 1]} : vector<8x96xf32> to vector<1x32xf32>
    %c0_18 = arith.constant 0 : index
    %c0_19 = arith.constant 0 : index
    %c0_20 = arith.constant 0 : index
    %34 = vector.load %arg7[%c0_18, %c0_19, %c0_20] : memref<2x32x32xbf16, #tpu.memory_space<vmem>>, vector<1x32x32xbf16>
    %35 = vector.shape_cast %34 : vector<1x32x32xbf16> to vector<32x32xbf16>
    %c0_21 = arith.constant 0 : index
    %c0_22 = arith.constant 0 : index
    %c0_23 = arith.constant 0 : index
    %36 = vector.load %arg6[%c0_21, %c0_22, %c0_23] : memref<2x32x96xbf16, #tpu.memory_space<vmem>>, vector<1x32x96xbf16>
    %37 = vector.shape_cast %36 : vector<1x32x96xbf16> to vector<32x96xbf16>
    %38 = arith.truncf %18 : vector<8x32xf32> to vector<8x32xbf16>
    %cst_24 = arith.constant dense<0.000000e+00> : vector<8x96xf32>
    %39 = tpu.matmul %38, %37, %cst_24 {dimension_numbers = #tpu.dot_dimension_numbers<[1], [0], [0], [1], [0, 0, 1, 1], [], []>} : vector<8x32xbf16>, vector<32x96xbf16>, vector<8x96xf32> -> vector<8x96xf32>
    %40 = vector.broadcast %26 : vector<1x96xf32> to vector<8x96xf32>
    %41 = arith.addf %39, %40 : vector<8x96xf32>
    %cst_25 = arith.constant 0.000000e+00 : f32
    %42 = vector.broadcast %cst_25 : f32 to vector<8x32xf32>
    %43 = vector.extract_strided_slice %41 {offsets = [0, 0], sizes = [8, 8], strides = [1, 1]} : vector<8x96xf32> to vector<8x8xf32>
    %44 = vector.extract_strided_slice %41 {offsets = [0, 32], sizes = [8, 8], strides = [1, 1]} : vector<8x96xf32> to vector<8x8xf32>
    %45 = vector.extract_strided_slice %41 {offsets = [0, 64], sizes = [8, 8], strides = [1, 1]} : vector<8x96xf32> to vector<8x8xf32>
    %46 = arith.truncf %43 : vector<8x8xf32> to vector<8x8xbf16>
    %47 = arith.truncf %44 : vector<8x8xf32> to vector<8x8xbf16>
    %cst_26 = arith.constant dense<0.000000e+00> : vector<8x8xf32>
    %48 = tpu.matmul %46, %47, %cst_26 {dimension_numbers = #tpu.dot_dimension_numbers<[1], [1], [0], [0], [0, 0, 1, 0], [], []>} : vector<8x8xbf16>, vector<8x8xbf16>, vector<8x8xf32> -> vector<8x8xf32>
    %cst_27 = arith.constant 0.353553385 : f32
    %49 = vector.broadcast %cst_27 : f32 to vector<8x8xf32>
    %50 = arith.mulf %48, %49 : vector<8x8xf32>
    %cst_28 = arith.constant -1.000000e+30 : f32
    %51 = vector.broadcast %cst_28 : f32 to vector<8x8xf32>
    %52 = arith.select %23, %50, %51 : vector<8x8xi1>, vector<8x8xf32>
    %cst_29 = arith.constant dense<0xFF800000> : vector<8xf32>
    %53 = vector.multi_reduction <maximumf>, %52, %cst_29 [1] : vector<8x8xf32> to vector<8xf32>
    %54 = vector.shape_cast %53 : vector<8xf32> to vector<8x1xf32>
    %55 = vector.broadcast %54 : vector<8x1xf32> to vector<8x8xf32>
    %56 = arith.subf %52, %55 : vector<8x8xf32>
    %57 = math.exp %56 : vector<8x8xf32>
    %cst_30 = arith.constant dense<0.000000e+00> : vector<8xf32>
    %58 = vector.multi_reduction <add>, %57, %cst_30 [1] : vector<8x8xf32> to vector<8xf32>
    %59 = vector.shape_cast %58 : vector<8xf32> to vector<8x1xf32>
    %60 = tpu.reciprocal %59 {approx = true} : vector<8x1xf32> -> vector<8x1xf32>
    %61 = vector.broadcast %60 : vector<8x1xf32> to vector<8x8xf32>
    %62 = arith.mulf %57, %61 : vector<8x8xf32>
    %63 = arith.truncf %62 : vector<8x8xf32> to vector<8x8xbf16>
    %64 = arith.truncf %45 : vector<8x8xf32> to vector<8x8xbf16>
    %cst_31 = arith.constant dense<0.000000e+00> : vector<8x8xf32>
    %65 = tpu.matmul %63, %64, %cst_31 {dimension_numbers = #tpu.dot_dimension_numbers<[1], [0], [0], [1], [0, 0, 1, 1], [], []>} : vector<8x8xbf16>, vector<8x8xbf16>, vector<8x8xf32> -> vector<8x8xf32>
    %66 = vector.extract_strided_slice %35 {offsets = [0, 0], sizes = [8, 32], strides = [1, 1]} : vector<32x32xbf16> to vector<8x32xbf16>
    %67 = arith.truncf %65 : vector<8x8xf32> to vector<8x8xbf16>
    %cst_32 = arith.constant dense<0.000000e+00> : vector<8x32xf32>
    %68 = tpu.matmul %67, %66, %cst_32 {dimension_numbers = #tpu.dot_dimension_numbers<[1], [0], [0], [1], [0, 0, 1, 1], [], []>} : vector<8x8xbf16>, vector<8x32xbf16>, vector<8x32xf32> -> vector<8x32xf32>
    %69 = arith.addf %42, %68 : vector<8x32xf32>
    %70 = vector.extract_strided_slice %41 {offsets = [0, 8], sizes = [8, 8], strides = [1, 1]} : vector<8x96xf32> to vector<8x8xf32>
    %71 = vector.extract_strided_slice %41 {offsets = [0, 40], sizes = [8, 8], strides = [1, 1]} : vector<8x96xf32> to vector<8x8xf32>
    %72 = vector.extract_strided_slice %41 {offsets = [0, 72], sizes = [8, 8], strides = [1, 1]} : vector<8x96xf32> to vector<8x8xf32>
    %73 = arith.truncf %70 : vector<8x8xf32> to vector<8x8xbf16>
    %74 = arith.truncf %71 : vector<8x8xf32> to vector<8x8xbf16>
    %cst_33 = arith.constant dense<0.000000e+00> : vector<8x8xf32>
    %75 = tpu.matmul %73, %74, %cst_33 {dimension_numbers = #tpu.dot_dimension_numbers<[1], [1], [0], [0], [0, 0, 1, 0], [], []>} : vector<8x8xbf16>, vector<8x8xbf16>, vector<8x8xf32> -> vector<8x8xf32>
    %cst_34 = arith.constant 0.353553385 : f32
    %76 = vector.broadcast %cst_34 : f32 to vector<8x8xf32>
    %77 = arith.mulf %75, %76 : vector<8x8xf32>
    %cst_35 = arith.constant -1.000000e+30 : f32
    %78 = vector.broadcast %cst_35 : f32 to vector<8x8xf32>
    %79 = arith.select %23, %77, %78 : vector<8x8xi1>, vector<8x8xf32>
    %cst_36 = arith.constant dense<0xFF800000> : vector<8xf32>
    %80 = vector.multi_reduction <maximumf>, %79, %cst_36 [1] : vector<8x8xf32> to vector<8xf32>
    %81 = vector.shape_cast %80 : vector<8xf32> to vector<8x1xf32>
    %82 = vector.broadcast %81 : vector<8x1xf32> to vector<8x8xf32>
    %83 = arith.subf %79, %82 : vector<8x8xf32>
    %84 = math.exp %83 : vector<8x8xf32>
    %cst_37 = arith.constant dense<0.000000e+00> : vector<8xf32>
    %85 = vector.multi_reduction <add>, %84, %cst_37 [1] : vector<8x8xf32> to vector<8xf32>
    %86 = vector.shape_cast %85 : vector<8xf32> to vector<8x1xf32>
    %87 = tpu.reciprocal %86 {approx = true} : vector<8x1xf32> -> vector<8x1xf32>
    %88 = vector.broadcast %87 : vector<8x1xf32> to vector<8x8xf32>
    %89 = arith.mulf %84, %88 : vector<8x8xf32>
    %90 = arith.truncf %89 : vector<8x8xf32> to vector<8x8xbf16>
    %91 = arith.truncf %72 : vector<8x8xf32> to vector<8x8xbf16>
    %cst_38 = arith.constant dense<0.000000e+00> : vector<8x8xf32>
    %92 = tpu.matmul %90, %91, %cst_38 {dimension_numbers = #tpu.dot_dimension_numbers<[1], [0], [0], [1], [0, 0, 1, 1], [], []>} : vector<8x8xbf16>, vector<8x8xbf16>, vector<8x8xf32> -> vector<8x8xf32>
    %93 = vector.extract_strided_slice %35 {offsets = [8, 0], sizes = [8, 32], strides = [1, 1]} : vector<32x32xbf16> to vector<8x32xbf16>
    %94 = arith.truncf %92 : vector<8x8xf32> to vector<8x8xbf16>
    %cst_39 = arith.constant dense<0.000000e+00> : vector<8x32xf32>
    %95 = tpu.matmul %94, %93, %cst_39 {dimension_numbers = #tpu.dot_dimension_numbers<[1], [0], [0], [1], [0, 0, 1, 1], [], []>} : vector<8x8xbf16>, vector<8x32xbf16>, vector<8x32xf32> -> vector<8x32xf32>
    %96 = arith.addf %69, %95 : vector<8x32xf32>
    %97 = vector.extract_strided_slice %41 {offsets = [0, 16], sizes = [8, 8], strides = [1, 1]} : vector<8x96xf32> to vector<8x8xf32>
    %98 = vector.extract_strided_slice %41 {offsets = [0, 48], sizes = [8, 8], strides = [1, 1]} : vector<8x96xf32> to vector<8x8xf32>
    %99 = vector.extract_strided_slice %41 {offsets = [0, 80], sizes = [8, 8], strides = [1, 1]} : vector<8x96xf32> to vector<8x8xf32>
    %100 = arith.truncf %97 : vector<8x8xf32> to vector<8x8xbf16>
    %101 = arith.truncf %98 : vector<8x8xf32> to vector<8x8xbf16>
    %cst_40 = arith.constant dense<0.000000e+00> : vector<8x8xf32>
    %102 = tpu.matmul %100, %101, %cst_40 {dimension_numbers = #tpu.dot_dimension_numbers<[1], [1], [0], [0], [0, 0, 1, 0], [], []>} : vector<8x8xbf16>, vector<8x8xbf16>, vector<8x8xf32> -> vector<8x8xf32>
    %cst_41 = arith.constant 0.353553385 : f32
    %103 = vector.broadcast %cst_41 : f32 to vector<8x8xf32>
    %104 = arith.mulf %102, %103 : vector<8x8xf32>
    %cst_42 = arith.constant -1.000000e+30 : f32
    %105 = vector.broadcast %cst_42 : f32 to vector<8x8xf32>
    %106 = arith.select %23, %104, %105 : vector<8x8xi1>, vector<8x8xf32>
    %cst_43 = arith.constant dense<0xFF800000> : vector<8xf32>
    %107 = vector.multi_reduction <maximumf>, %106, %cst_43 [1] : vector<8x8xf32> to vector<8xf32>
    %108 = vector.shape_cast %107 : vector<8xf32> to vector<8x1xf32>
    %109 = vector.broadcast %108 : vector<8x1xf32> to vector<8x8xf32>
    %110 = arith.subf %106, %109 : vector<8x8xf32>
    %111 = math.exp %110 : vector<8x8xf32>
    %cst_44 = arith.constant dense<0.000000e+00> : vector<8xf32>
    %112 = vector.multi_reduction <add>, %111, %cst_44 [1] : vector<8x8xf32> to vector<8xf32>
    %113 = vector.shape_cast %112 : vector<8xf32> to vector<8x1xf32>
    %114 = tpu.reciprocal %113 {approx = true} : vector<8x1xf32> -> vector<8x1xf32>
    %115 = vector.broadcast %114 : vector<8x1xf32> to vector<8x8xf32>
    %116 = arith.mulf %111, %115 : vector<8x8xf32>
    %117 = arith.truncf %116 : vector<8x8xf32> to vector<8x8xbf16>
    %118 = arith.truncf %99 : vector<8x8xf32> to vector<8x8xbf16>
    %cst_45 = arith.constant dense<0.000000e+00> : vector<8x8xf32>
    %119 = tpu.matmul %117, %118, %cst_45 {dimension_numbers = #tpu.dot_dimension_numbers<[1], [0], [0], [1], [0, 0, 1, 1], [], []>} : vector<8x8xbf16>, vector<8x8xbf16>, vector<8x8xf32> -> vector<8x8xf32>
    %120 = vector.extract_strided_slice %35 {offsets = [16, 0], sizes = [8, 32], strides = [1, 1]} : vector<32x32xbf16> to vector<8x32xbf16>
    %121 = arith.truncf %119 : vector<8x8xf32> to vector<8x8xbf16>
    %cst_46 = arith.constant dense<0.000000e+00> : vector<8x32xf32>
    %122 = tpu.matmul %121, %120, %cst_46 {dimension_numbers = #tpu.dot_dimension_numbers<[1], [0], [0], [1], [0, 0, 1, 1], [], []>} : vector<8x8xbf16>, vector<8x32xbf16>, vector<8x32xf32> -> vector<8x32xf32>
    %123 = arith.addf %96, %122 : vector<8x32xf32>
    %124 = vector.extract_strided_slice %41 {offsets = [0, 24], sizes = [8, 8], strides = [1, 1]} : vector<8x96xf32> to vector<8x8xf32>
    %125 = vector.extract_strided_slice %41 {offsets = [0, 56], sizes = [8, 8], strides = [1, 1]} : vector<8x96xf32> to vector<8x8xf32>
    %126 = vector.extract_strided_slice %41 {offsets = [0, 88], sizes = [8, 8], strides = [1, 1]} : vector<8x96xf32> to vector<8x8xf32>
    %127 = arith.truncf %124 : vector<8x8xf32> to vector<8x8xbf16>
    %128 = arith.truncf %125 : vector<8x8xf32> to vector<8x8xbf16>
    %cst_47 = arith.constant dense<0.000000e+00> : vector<8x8xf32>
    %129 = tpu.matmul %127, %128, %cst_47 {dimension_numbers = #tpu.dot_dimension_numbers<[1], [1], [0], [0], [0, 0, 1, 0], [], []>} : vector<8x8xbf16>, vector<8x8xbf16>, vector<8x8xf32> -> vector<8x8xf32>
    %cst_48 = arith.constant 0.353553385 : f32
    %130 = vector.broadcast %cst_48 : f32 to vector<8x8xf32>
    %131 = arith.mulf %129, %130 : vector<8x8xf32>
    %cst_49 = arith.constant -1.000000e+30 : f32
    %132 = vector.broadcast %cst_49 : f32 to vector<8x8xf32>
    %133 = arith.select %23, %131, %132 : vector<8x8xi1>, vector<8x8xf32>
    %cst_50 = arith.constant dense<0xFF800000> : vector<8xf32>
    %134 = vector.multi_reduction <maximumf>, %133, %cst_50 [1] : vector<8x8xf32> to vector<8xf32>
    %135 = vector.shape_cast %134 : vector<8xf32> to vector<8x1xf32>
    %136 = vector.broadcast %135 : vector<8x1xf32> to vector<8x8xf32>
    %137 = arith.subf %133, %136 : vector<8x8xf32>
    %138 = math.exp %137 : vector<8x8xf32>
    %cst_51 = arith.constant dense<0.000000e+00> : vector<8xf32>
    %139 = vector.multi_reduction <add>, %138, %cst_51 [1] : vector<8x8xf32> to vector<8xf32>
    %140 = vector.shape_cast %139 : vector<8xf32> to vector<8x1xf32>
    %141 = tpu.reciprocal %140 {approx = true} : vector<8x1xf32> -> vector<8x1xf32>
    %142 = vector.broadcast %141 : vector<8x1xf32> to vector<8x8xf32>
    %143 = arith.mulf %138, %142 : vector<8x8xf32>
    %144 = arith.truncf %143 : vector<8x8xf32> to vector<8x8xbf16>
    %145 = arith.truncf %126 : vector<8x8xf32> to vector<8x8xbf16>
    %cst_52 = arith.constant dense<0.000000e+00> : vector<8x8xf32>
    %146 = tpu.matmul %144, %145, %cst_52 {dimension_numbers = #tpu.dot_dimension_numbers<[1], [0], [0], [1], [0, 0, 1, 1], [], []>} : vector<8x8xbf16>, vector<8x8xbf16>, vector<8x8xf32> -> vector<8x8xf32>
    %147 = vector.extract_strided_slice %35 {offsets = [24, 0], sizes = [8, 32], strides = [1, 1]} : vector<32x32xbf16> to vector<8x32xbf16>
    %148 = arith.truncf %146 : vector<8x8xf32> to vector<8x8xbf16>
    %cst_53 = arith.constant dense<0.000000e+00> : vector<8x32xf32>
    %149 = tpu.matmul %148, %147, %cst_53 {dimension_numbers = #tpu.dot_dimension_numbers<[1], [0], [0], [1], [0, 0, 1, 1], [], []>} : vector<8x8xbf16>, vector<8x32xbf16>, vector<8x32xf32> -> vector<8x32xf32>
    %150 = arith.addf %123, %149 : vector<8x32xf32>
    %151 = vector.broadcast %27 : vector<1x32xf32> to vector<8x32xf32>
    %152 = arith.addf %150, %151 : vector<8x32xf32>
    %153 = arith.addf %18, %152 : vector<8x32xf32>
    %cst_54 = arith.constant dense<0.000000e+00> : vector<8xf32>
    %154 = vector.multi_reduction <add>, %153, %cst_54 [1] : vector<8x32xf32> to vector<8xf32>
    %155 = vector.shape_cast %154 : vector<8xf32> to vector<8x1xf32>
    %cst_55 = arith.constant 3.200000e+01 : f32
    %156 = vector.broadcast %cst_55 : f32 to vector<8x1xf32>
    %157 = arith.divf %155, %156 : vector<8x1xf32>
    %158 = vector.broadcast %157 : vector<8x1xf32> to vector<8x32xf32>
    %159 = arith.subf %153, %158 : vector<8x32xf32>
    %160 = arith.mulf %159, %159 : vector<8x32xf32>
    %cst_56 = arith.constant dense<0.000000e+00> : vector<8xf32>
    %161 = vector.multi_reduction <add>, %160, %cst_56 [1] : vector<8x32xf32> to vector<8xf32>
    %162 = vector.shape_cast %161 : vector<8xf32> to vector<8x1xf32>
    %cst_57 = arith.constant 3.200000e+01 : f32
    %163 = vector.broadcast %cst_57 : f32 to vector<8x1xf32>
    %164 = arith.divf %162, %163 : vector<8x1xf32>
    %165 = vector.broadcast %157 : vector<8x1xf32> to vector<8x32xf32>
    %166 = arith.subf %153, %165 : vector<8x32xf32>
    %cst_58 = arith.constant 9.99999974E-6 : f32
    %167 = vector.broadcast %cst_58 : f32 to vector<8x1xf32>
    %168 = arith.addf %164, %167 : vector<8x1xf32>
    %169 = math.rsqrt %168 : vector<8x1xf32>
    %170 = vector.broadcast %169 : vector<8x1xf32> to vector<8x32xf32>
    %171 = arith.mulf %166, %170 : vector<8x32xf32>
    %172 = vector.broadcast %28 : vector<1x32xf32> to vector<8x32xf32>
    %173 = arith.mulf %171, %172 : vector<8x32xf32>
    %174 = vector.broadcast %29 : vector<1x32xf32> to vector<8x32xf32>
    %175 = arith.addf %173, %174 : vector<8x32xf32>
    %c0_59 = arith.constant 0 : index
    %c0_60 = arith.constant 0 : index
    %c0_61 = arith.constant 0 : index
    %176 = vector.load %arg8[%c0_59, %c0_60, %c0_61] : memref<2x32x64xbf16, #tpu.memory_space<vmem>>, vector<1x32x64xbf16>
    %177 = vector.shape_cast %176 : vector<1x32x64xbf16> to vector<32x64xbf16>
    %178 = arith.truncf %175 : vector<8x32xf32> to vector<8x32xbf16>
    %cst_62 = arith.constant dense<0.000000e+00> : vector<8x64xf32>
    %179 = tpu.matmul %178, %177, %cst_62 {dimension_numbers = #tpu.dot_dimension_numbers<[1], [0], [0], [1], [0, 0, 1, 1], [], []>} : vector<8x32xbf16>, vector<32x64xbf16>, vector<8x64xf32> -> vector<8x64xf32>
    %180 = vector.broadcast %30 : vector<1x64xf32> to vector<8x64xf32>
    %181 = arith.addf %179, %180 : vector<8x64xf32>
    %cst_63 = arith.constant 0.000000e+00 : f32
    %182 = vector.broadcast %cst_63 : f32 to vector<8x64xf32>
    %183 = arith.maximumf %181, %182 : vector<8x64xf32>
    %c0_64 = arith.constant 0 : index
    %c0_65 = arith.constant 0 : index
    %c0_66 = arith.constant 0 : index
    %184 = vector.load %arg9[%c0_64, %c0_65, %c0_66] : memref<2x64x32xbf16, #tpu.memory_space<vmem>>, vector<1x64x32xbf16>
    %185 = vector.shape_cast %184 : vector<1x64x32xbf16> to vector<64x32xbf16>
    %186 = arith.truncf %183 : vector<8x64xf32> to vector<8x64xbf16>
    %cst_67 = arith.constant dense<0.000000e+00> : vector<8x32xf32>
    %187 = tpu.matmul %186, %185, %cst_67 {dimension_numbers = #tpu.dot_dimension_numbers<[1], [0], [0], [1], [0, 0, 1, 1], [], []>} : vector<8x64xbf16>, vector<64x32xbf16>, vector<8x32xf32> -> vector<8x32xf32>
    %188 = vector.broadcast %31 : vector<1x32xf32> to vector<8x32xf32>
    %189 = arith.addf %187, %188 : vector<8x32xf32>
    %190 = arith.addf %175, %189 : vector<8x32xf32>
    %cst_68 = arith.constant dense<0.000000e+00> : vector<8xf32>
    %191 = vector.multi_reduction <add>, %190, %cst_68 [1] : vector<8x32xf32> to vector<8xf32>
    %192 = vector.shape_cast %191 : vector<8xf32> to vector<8x1xf32>
    %cst_69 = arith.constant 3.200000e+01 : f32
    %193 = vector.broadcast %cst_69 : f32 to vector<8x1xf32>
    %194 = arith.divf %192, %193 : vector<8x1xf32>
    %195 = vector.broadcast %194 : vector<8x1xf32> to vector<8x32xf32>
    %196 = arith.subf %190, %195 : vector<8x32xf32>
    %197 = arith.mulf %196, %196 : vector<8x32xf32>
    %cst_70 = arith.constant dense<0.000000e+00> : vector<8xf32>
    %198 = vector.multi_reduction <add>, %197, %cst_70 [1] : vector<8x32xf32> to vector<8xf32>
    %199 = vector.shape_cast %198 : vector<8xf32> to vector<8x1xf32>
    %cst_71 = arith.constant 3.200000e+01 : f32
    %200 = vector.broadcast %cst_71 : f32 to vector<8x1xf32>
    %201 = arith.divf %199, %200 : vector<8x1xf32>
    %202 = vector.broadcast %194 : vector<8x1xf32> to vector<8x32xf32>
    %203 = arith.subf %190, %202 : vector<8x32xf32>
    %cst_72 = arith.constant 9.99999974E-6 : f32
    %204 = vector.broadcast %cst_72 : f32 to vector<8x1xf32>
    %205 = arith.addf %201, %204 : vector<8x1xf32>
    %206 = math.rsqrt %205 : vector<8x1xf32>
    %207 = vector.broadcast %206 : vector<8x1xf32> to vector<8x32xf32>
    %208 = arith.mulf %203, %207 : vector<8x32xf32>
    %209 = vector.broadcast %32 : vector<1x32xf32> to vector<8x32xf32>
    %210 = arith.mulf %208, %209 : vector<8x32xf32>
    %211 = vector.broadcast %33 : vector<1x32xf32> to vector<8x32xf32>
    %212 = arith.addf %210, %211 : vector<8x32xf32>
    %c1 = arith.constant 1 : index
    %c0_73 = arith.constant 0 : index
    %c0_74 = arith.constant 0 : index
    %213 = vector.load %arg10[%c1, %c0_73, %c0_74] : memref<2x8x96xf32, #tpu.memory_space<vmem>>, vector<1x8x96xf32>
    %214 = vector.shape_cast %213 : vector<1x8x96xf32> to vector<8x96xf32>
    %215 = vector.extract_strided_slice %214 {offsets = [0, 0], sizes = [1, 96], strides = [1, 1]} : vector<8x96xf32> to vector<1x96xf32>
    %216 = vector.extract_strided_slice %214 {offsets = [1, 0], sizes = [1, 32], strides = [1, 1]} : vector<8x96xf32> to vector<1x32xf32>
    %217 = vector.extract_strided_slice %214 {offsets = [2, 0], sizes = [1, 32], strides = [1, 1]} : vector<8x96xf32> to vector<1x32xf32>
    %218 = vector.extract_strided_slice %214 {offsets = [3, 0], sizes = [1, 32], strides = [1, 1]} : vector<8x96xf32> to vector<1x32xf32>
    %219 = vector.extract_strided_slice %214 {offsets = [4, 0], sizes = [1, 64], strides = [1, 1]} : vector<8x96xf32> to vector<1x64xf32>
    %220 = vector.extract_strided_slice %214 {offsets = [5, 0], sizes = [1, 32], strides = [1, 1]} : vector<8x96xf32> to vector<1x32xf32>
    %221 = vector.extract_strided_slice %214 {offsets = [6, 0], sizes = [1, 32], strides = [1, 1]} : vector<8x96xf32> to vector<1x32xf32>
    %222 = vector.extract_strided_slice %214 {offsets = [7, 0], sizes = [1, 32], strides = [1, 1]} : vector<8x96xf32> to vector<1x32xf32>
    %c1_75 = arith.constant 1 : index
    %c0_76 = arith.constant 0 : index
    %c0_77 = arith.constant 0 : index
    %223 = vector.load %arg7[%c1_75, %c0_76, %c0_77] : memref<2x32x32xbf16, #tpu.memory_space<vmem>>, vector<1x32x32xbf16>
    %224 = vector.shape_cast %223 : vector<1x32x32xbf16> to vector<32x32xbf16>
    %c1_78 = arith.constant 1 : index
    %c0_79 = arith.constant 0 : index
    %c0_80 = arith.constant 0 : index
    %225 = vector.load %arg6[%c1_78, %c0_79, %c0_80] : memref<2x32x96xbf16, #tpu.memory_space<vmem>>, vector<1x32x96xbf16>
    %226 = vector.shape_cast %225 : vector<1x32x96xbf16> to vector<32x96xbf16>
    %227 = arith.truncf %212 : vector<8x32xf32> to vector<8x32xbf16>
    %cst_81 = arith.constant dense<0.000000e+00> : vector<8x96xf32>
    %228 = tpu.matmul %227, %226, %cst_81 {dimension_numbers = #tpu.dot_dimension_numbers<[1], [0], [0], [1], [0, 0, 1, 1], [], []>} : vector<8x32xbf16>, vector<32x96xbf16>, vector<8x96xf32> -> vector<8x96xf32>
    %229 = vector.broadcast %215 : vector<1x96xf32> to vector<8x96xf32>
    %230 = arith.addf %228, %229 : vector<8x96xf32>
    %cst_82 = arith.constant 0.000000e+00 : f32
    %231 = vector.broadcast %cst_82 : f32 to vector<8x32xf32>
    %232 = vector.extract_strided_slice %230 {offsets = [0, 0], sizes = [8, 8], strides = [1, 1]} : vector<8x96xf32> to vector<8x8xf32>
    %233 = vector.extract_strided_slice %230 {offsets = [0, 32], sizes = [8, 8], strides = [1, 1]} : vector<8x96xf32> to vector<8x8xf32>
    %234 = vector.extract_strided_slice %230 {offsets = [0, 64], sizes = [8, 8], strides = [1, 1]} : vector<8x96xf32> to vector<8x8xf32>
    %235 = arith.truncf %232 : vector<8x8xf32> to vector<8x8xbf16>
    %236 = arith.truncf %233 : vector<8x8xf32> to vector<8x8xbf16>
    %cst_83 = arith.constant dense<0.000000e+00> : vector<8x8xf32>
    %237 = tpu.matmul %235, %236, %cst_83 {dimension_numbers = #tpu.dot_dimension_numbers<[1], [1], [0], [0], [0, 0, 1, 0], [], []>} : vector<8x8xbf16>, vector<8x8xbf16>, vector<8x8xf32> -> vector<8x8xf32>
    %cst_84 = arith.constant 0.353553385 : f32
    %238 = vector.broadcast %cst_84 : f32 to vector<8x8xf32>
    %239 = arith.mulf %237, %238 : vector<8x8xf32>
    %cst_85 = arith.constant -1.000000e+30 : f32
    %240 = vector.broadcast %cst_85 : f32 to vector<8x8xf32>
    %241 = arith.select %23, %239, %240 : vector<8x8xi1>, vector<8x8xf32>
    %cst_86 = arith.constant dense<0xFF800000> : vector<8xf32>
    %242 = vector.multi_reduction <maximumf>, %241, %cst_86 [1] : vector<8x8xf32> to vector<8xf32>
    %243 = vector.shape_cast %242 : vector<8xf32> to vector<8x1xf32>
    %244 = vector.broadcast %243 : vector<8x1xf32> to vector<8x8xf32>
    %245 = arith.subf %241, %244 : vector<8x8xf32>
    %246 = math.exp %245 : vector<8x8xf32>
    %cst_87 = arith.constant dense<0.000000e+00> : vector<8xf32>
    %247 = vector.multi_reduction <add>, %246, %cst_87 [1] : vector<8x8xf32> to vector<8xf32>
    %248 = vector.shape_cast %247 : vector<8xf32> to vector<8x1xf32>
    %249 = tpu.reciprocal %248 {approx = true} : vector<8x1xf32> -> vector<8x1xf32>
    %250 = vector.broadcast %249 : vector<8x1xf32> to vector<8x8xf32>
    %251 = arith.mulf %246, %250 : vector<8x8xf32>
    %252 = arith.truncf %251 : vector<8x8xf32> to vector<8x8xbf16>
    %253 = arith.truncf %234 : vector<8x8xf32> to vector<8x8xbf16>
    %cst_88 = arith.constant dense<0.000000e+00> : vector<8x8xf32>
    %254 = tpu.matmul %252, %253, %cst_88 {dimension_numbers = #tpu.dot_dimension_numbers<[1], [0], [0], [1], [0, 0, 1, 1], [], []>} : vector<8x8xbf16>, vector<8x8xbf16>, vector<8x8xf32> -> vector<8x8xf32>
    %255 = vector.extract_strided_slice %224 {offsets = [0, 0], sizes = [8, 32], strides = [1, 1]} : vector<32x32xbf16> to vector<8x32xbf16>
    %256 = arith.truncf %254 : vector<8x8xf32> to vector<8x8xbf16>
    %cst_89 = arith.constant dense<0.000000e+00> : vector<8x32xf32>
    %257 = tpu.matmul %256, %255, %cst_89 {dimension_numbers = #tpu.dot_dimension_numbers<[1], [0], [0], [1], [0, 0, 1, 1], [], []>} : vector<8x8xbf16>, vector<8x32xbf16>, vector<8x32xf32> -> vector<8x32xf32>
    %258 = arith.addf %231, %257 : vector<8x32xf32>
    %259 = vector.extract_strided_slice %230 {offsets = [0, 8], sizes = [8, 8], strides = [1, 1]} : vector<8x96xf32> to vector<8x8xf32>
    %260 = vector.extract_strided_slice %230 {offsets = [0, 40], sizes = [8, 8], strides = [1, 1]} : vector<8x96xf32> to vector<8x8xf32>
    %261 = vector.extract_strided_slice %230 {offsets = [0, 72], sizes = [8, 8], strides = [1, 1]} : vector<8x96xf32> to vector<8x8xf32>
    %262 = arith.truncf %259 : vector<8x8xf32> to vector<8x8xbf16>
    %263 = arith.truncf %260 : vector<8x8xf32> to vector<8x8xbf16>
    %cst_90 = arith.constant dense<0.000000e+00> : vector<8x8xf32>
    %264 = tpu.matmul %262, %263, %cst_90 {dimension_numbers = #tpu.dot_dimension_numbers<[1], [1], [0], [0], [0, 0, 1, 0], [], []>} : vector<8x8xbf16>, vector<8x8xbf16>, vector<8x8xf32> -> vector<8x8xf32>
    %cst_91 = arith.constant 0.353553385 : f32
    %265 = vector.broadcast %cst_91 : f32 to vector<8x8xf32>
    %266 = arith.mulf %264, %265 : vector<8x8xf32>
    %cst_92 = arith.constant -1.000000e+30 : f32
    %267 = vector.broadcast %cst_92 : f32 to vector<8x8xf32>
    %268 = arith.select %23, %266, %267 : vector<8x8xi1>, vector<8x8xf32>
    %cst_93 = arith.constant dense<0xFF800000> : vector<8xf32>
    %269 = vector.multi_reduction <maximumf>, %268, %cst_93 [1] : vector<8x8xf32> to vector<8xf32>
    %270 = vector.shape_cast %269 : vector<8xf32> to vector<8x1xf32>
    %271 = vector.broadcast %270 : vector<8x1xf32> to vector<8x8xf32>
    %272 = arith.subf %268, %271 : vector<8x8xf32>
    %273 = math.exp %272 : vector<8x8xf32>
    %cst_94 = arith.constant dense<0.000000e+00> : vector<8xf32>
    %274 = vector.multi_reduction <add>, %273, %cst_94 [1] : vector<8x8xf32> to vector<8xf32>
    %275 = vector.shape_cast %274 : vector<8xf32> to vector<8x1xf32>
    %276 = tpu.reciprocal %275 {approx = true} : vector<8x1xf32> -> vector<8x1xf32>
    %277 = vector.broadcast %276 : vector<8x1xf32> to vector<8x8xf32>
    %278 = arith.mulf %273, %277 : vector<8x8xf32>
    %279 = arith.truncf %278 : vector<8x8xf32> to vector<8x8xbf16>
    %280 = arith.truncf %261 : vector<8x8xf32> to vector<8x8xbf16>
    %cst_95 = arith.constant dense<0.000000e+00> : vector<8x8xf32>
    %281 = tpu.matmul %279, %280, %cst_95 {dimension_numbers = #tpu.dot_dimension_numbers<[1], [0], [0], [1], [0, 0, 1, 1], [], []>} : vector<8x8xbf16>, vector<8x8xbf16>, vector<8x8xf32> -> vector<8x8xf32>
    %282 = vector.extract_strided_slice %224 {offsets = [8, 0], sizes = [8, 32], strides = [1, 1]} : vector<32x32xbf16> to vector<8x32xbf16>
    %283 = arith.truncf %281 : vector<8x8xf32> to vector<8x8xbf16>
    %cst_96 = arith.constant dense<0.000000e+00> : vector<8x32xf32>
    %284 = tpu.matmul %283, %282, %cst_96 {dimension_numbers = #tpu.dot_dimension_numbers<[1], [0], [0], [1], [0, 0, 1, 1], [], []>} : vector<8x8xbf16>, vector<8x32xbf16>, vector<8x32xf32> -> vector<8x32xf32>
    %285 = arith.addf %258, %284 : vector<8x32xf32>
    %286 = vector.extract_strided_slice %230 {offsets = [0, 16], sizes = [8, 8], strides = [1, 1]} : vector<8x96xf32> to vector<8x8xf32>
    %287 = vector.extract_strided_slice %230 {offsets = [0, 48], sizes = [8, 8], strides = [1, 1]} : vector<8x96xf32> to vector<8x8xf32>
    %288 = vector.extract_strided_slice %230 {offsets = [0, 80], sizes = [8, 8], strides = [1, 1]} : vector<8x96xf32> to vector<8x8xf32>
    %289 = arith.truncf %286 : vector<8x8xf32> to vector<8x8xbf16>
    %290 = arith.truncf %287 : vector<8x8xf32> to vector<8x8xbf16>
    %cst_97 = arith.constant dense<0.000000e+00> : vector<8x8xf32>
    %291 = tpu.matmul %289, %290, %cst_97 {dimension_numbers = #tpu.dot_dimension_numbers<[1], [1], [0], [0], [0, 0, 1, 0], [], []>} : vector<8x8xbf16>, vector<8x8xbf16>, vector<8x8xf32> -> vector<8x8xf32>
    %cst_98 = arith.constant 0.353553385 : f32
    %292 = vector.broadcast %cst_98 : f32 to vector<8x8xf32>
    %293 = arith.mulf %291, %292 : vector<8x8xf32>
    %cst_99 = arith.constant -1.000000e+30 : f32
    %294 = vector.broadcast %cst_99 : f32 to vector<8x8xf32>
    %295 = arith.select %23, %293, %294 : vector<8x8xi1>, vector<8x8xf32>
    %cst_100 = arith.constant dense<0xFF800000> : vector<8xf32>
    %296 = vector.multi_reduction <maximumf>, %295, %cst_100 [1] : vector<8x8xf32> to vector<8xf32>
    %297 = vector.shape_cast %296 : vector<8xf32> to vector<8x1xf32>
    %298 = vector.broadcast %297 : vector<8x1xf32> to vector<8x8xf32>
    %299 = arith.subf %295, %298 : vector<8x8xf32>
    %300 = math.exp %299 : vector<8x8xf32>
    %cst_101 = arith.constant dense<0.000000e+00> : vector<8xf32>
    %301 = vector.multi_reduction <add>, %300, %cst_101 [1] : vector<8x8xf32> to vector<8xf32>
    %302 = vector.shape_cast %301 : vector<8xf32> to vector<8x1xf32>
    %303 = tpu.reciprocal %302 {approx = true} : vector<8x1xf32> -> vector<8x1xf32>
    %304 = vector.broadcast %303 : vector<8x1xf32> to vector<8x8xf32>
    %305 = arith.mulf %300, %304 : vector<8x8xf32>
    %306 = arith.truncf %305 : vector<8x8xf32> to vector<8x8xbf16>
    %307 = arith.truncf %288 : vector<8x8xf32> to vector<8x8xbf16>
    %cst_102 = arith.constant dense<0.000000e+00> : vector<8x8xf32>
    %308 = tpu.matmul %306, %307, %cst_102 {dimension_numbers = #tpu.dot_dimension_numbers<[1], [0], [0], [1], [0, 0, 1, 1], [], []>} : vector<8x8xbf16>, vector<8x8xbf16>, vector<8x8xf32> -> vector<8x8xf32>
    %309 = vector.extract_strided_slice %224 {offsets = [16, 0], sizes = [8, 32], strides = [1, 1]} : vector<32x32xbf16> to vector<8x32xbf16>
    %310 = arith.truncf %308 : vector<8x8xf32> to vector<8x8xbf16>
    %cst_103 = arith.constant dense<0.000000e+00> : vector<8x32xf32>
    %311 = tpu.matmul %310, %309, %cst_103 {dimension_numbers = #tpu.dot_dimension_numbers<[1], [0], [0], [1], [0, 0, 1, 1], [], []>} : vector<8x8xbf16>, vector<8x32xbf16>, vector<8x32xf32> -> vector<8x32xf32>
    %312 = arith.addf %285, %311 : vector<8x32xf32>
    %313 = vector.extract_strided_slice %230 {offsets = [0, 24], sizes = [8, 8], strides = [1, 1]} : vector<8x96xf32> to vector<8x8xf32>
    %314 = vector.extract_strided_slice %230 {offsets = [0, 56], sizes = [8, 8], strides = [1, 1]} : vector<8x96xf32> to vector<8x8xf32>
    %315 = vector.extract_strided_slice %230 {offsets = [0, 88], sizes = [8, 8], strides = [1, 1]} : vector<8x96xf32> to vector<8x8xf32>
    %316 = arith.truncf %313 : vector<8x8xf32> to vector<8x8xbf16>
    %317 = arith.truncf %314 : vector<8x8xf32> to vector<8x8xbf16>
    %cst_104 = arith.constant dense<0.000000e+00> : vector<8x8xf32>
    %318 = tpu.matmul %316, %317, %cst_104 {dimension_numbers = #tpu.dot_dimension_numbers<[1], [1], [0], [0], [0, 0, 1, 0], [], []>} : vector<8x8xbf16>, vector<8x8xbf16>, vector<8x8xf32> -> vector<8x8xf32>
    %cst_105 = arith.constant 0.353553385 : f32
    %319 = vector.broadcast %cst_105 : f32 to vector<8x8xf32>
    %320 = arith.mulf %318, %319 : vector<8x8xf32>
    %cst_106 = arith.constant -1.000000e+30 : f32
    %321 = vector.broadcast %cst_106 : f32 to vector<8x8xf32>
    %322 = arith.select %23, %320, %321 : vector<8x8xi1>, vector<8x8xf32>
    %cst_107 = arith.constant dense<0xFF800000> : vector<8xf32>
    %323 = vector.multi_reduction <maximumf>, %322, %cst_107 [1] : vector<8x8xf32> to vector<8xf32>
    %324 = vector.shape_cast %323 : vector<8xf32> to vector<8x1xf32>
    %325 = vector.broadcast %324 : vector<8x1xf32> to vector<8x8xf32>
    %326 = arith.subf %322, %325 : vector<8x8xf32>
    %327 = math.exp %326 : vector<8x8xf32>
    %cst_108 = arith.constant dense<0.000000e+00> : vector<8xf32>
    %328 = vector.multi_reduction <add>, %327, %cst_108 [1] : vector<8x8xf32> to vector<8xf32>
    %329 = vector.shape_cast %328 : vector<8xf32> to vector<8x1xf32>
    %330 = tpu.reciprocal %329 {approx = true} : vector<8x1xf32> -> vector<8x1xf32>
    %331 = vector.broadcast %330 : vector<8x1xf32> to vector<8x8xf32>
    %332 = arith.mulf %327, %331 : vector<8x8xf32>
    %333 = arith.truncf %332 : vector<8x8xf32> to vector<8x8xbf16>
    %334 = arith.truncf %315 : vector<8x8xf32> to vector<8x8xbf16>
    %cst_109 = arith.constant dense<0.000000e+00> : vector<8x8xf32>
    %335 = tpu.matmul %333, %334, %cst_109 {dimension_numbers = #tpu.dot_dimension_numbers<[1], [0], [0], [1], [0, 0, 1, 1], [], []>} : vector<8x8xbf16>, vector<8x8xbf16>, vector<8x8xf32> -> vector<8x8xf32>
    %336 = vector.extract_strided_slice %224 {offsets = [24, 0], sizes = [8, 32], strides = [1, 1]} : vector<32x32xbf16> to vector<8x32xbf16>
    %337 = arith.truncf %335 : vector<8x8xf32> to vector<8x8xbf16>
    %cst_110 = arith.constant dense<0.000000e+00> : vector<8x32xf32>
    %338 = tpu.matmul %337, %336, %cst_110 {dimension_numbers = #tpu.dot_dimension_numbers<[1], [0], [0], [1], [0, 0, 1, 1], [], []>} : vector<8x8xbf16>, vector<8x32xbf16>, vector<8x32xf32> -> vector<8x32xf32>
    %339 = arith.addf %312, %338 : vector<8x32xf32>
    %340 = vector.broadcast %216 : vector<1x32xf32> to vector<8x32xf32>
    %341 = arith.addf %339, %340 : vector<8x32xf32>
    %342 = arith.addf %212, %341 : vector<8x32xf32>
    %cst_111 = arith.constant dense<0.000000e+00> : vector<8xf32>
    %343 = vector.multi_reduction <add>, %342, %cst_111 [1] : vector<8x32xf32> to vector<8xf32>
    %344 = vector.shape_cast %343 : vector<8xf32> to vector<8x1xf32>
    %cst_112 = arith.constant 3.200000e+01 : f32
    %345 = vector.broadcast %cst_112 : f32 to vector<8x1xf32>
    %346 = arith.divf %344, %345 : vector<8x1xf32>
    %347 = vector.broadcast %346 : vector<8x1xf32> to vector<8x32xf32>
    %348 = arith.subf %342, %347 : vector<8x32xf32>
    %349 = arith.mulf %348, %348 : vector<8x32xf32>
    %cst_113 = arith.constant dense<0.000000e+00> : vector<8xf32>
    %350 = vector.multi_reduction <add>, %349, %cst_113 [1] : vector<8x32xf32> to vector<8xf32>
    %351 = vector.shape_cast %350 : vector<8xf32> to vector<8x1xf32>
    %cst_114 = arith.constant 3.200000e+01 : f32
    %352 = vector.broadcast %cst_114 : f32 to vector<8x1xf32>
    %353 = arith.divf %351, %352 : vector<8x1xf32>
    %354 = vector.broadcast %346 : vector<8x1xf32> to vector<8x32xf32>
    %355 = arith.subf %342, %354 : vector<8x32xf32>
    %cst_115 = arith.constant 9.99999974E-6 : f32
    %356 = vector.broadcast %cst_115 : f32 to vector<8x1xf32>
    %357 = arith.addf %353, %356 : vector<8x1xf32>
    %358 = math.rsqrt %357 : vector<8x1xf32>
    %359 = vector.broadcast %358 : vector<8x1xf32> to vector<8x32xf32>
    %360 = arith.mulf %355, %359 : vector<8x32xf32>
    %361 = vector.broadcast %217 : vector<1x32xf32> to vector<8x32xf32>
    %362 = arith.mulf %360, %361 : vector<8x32xf32>
    %363 = vector.broadcast %218 : vector<1x32xf32> to vector<8x32xf32>
    %364 = arith.addf %362, %363 : vector<8x32xf32>
    %c1_116 = arith.constant 1 : index
    %c0_117 = arith.constant 0 : index
    %c0_118 = arith.constant 0 : index
    %365 = vector.load %arg8[%c1_116, %c0_117, %c0_118] : memref<2x32x64xbf16, #tpu.memory_space<vmem>>, vector<1x32x64xbf16>
    %366 = vector.shape_cast %365 : vector<1x32x64xbf16> to vector<32x64xbf16>
    %367 = arith.truncf %364 : vector<8x32xf32> to vector<8x32xbf16>
    %cst_119 = arith.constant dense<0.000000e+00> : vector<8x64xf32>
    %368 = tpu.matmul %367, %366, %cst_119 {dimension_numbers = #tpu.dot_dimension_numbers<[1], [0], [0], [1], [0, 0, 1, 1], [], []>} : vector<8x32xbf16>, vector<32x64xbf16>, vector<8x64xf32> -> vector<8x64xf32>
    %369 = vector.broadcast %219 : vector<1x64xf32> to vector<8x64xf32>
    %370 = arith.addf %368, %369 : vector<8x64xf32>
    %cst_120 = arith.constant 0.000000e+00 : f32
    %371 = vector.broadcast %cst_120 : f32 to vector<8x64xf32>
    %372 = arith.maximumf %370, %371 : vector<8x64xf32>
    %c1_121 = arith.constant 1 : index
    %c0_122 = arith.constant 0 : index
    %c0_123 = arith.constant 0 : index
    %373 = vector.load %arg9[%c1_121, %c0_122, %c0_123] : memref<2x64x32xbf16, #tpu.memory_space<vmem>>, vector<1x64x32xbf16>
    %374 = vector.shape_cast %373 : vector<1x64x32xbf16> to vector<64x32xbf16>
    %375 = arith.truncf %372 : vector<8x64xf32> to vector<8x64xbf16>
    %cst_124 = arith.constant dense<0.000000e+00> : vector<8x32xf32>
    %376 = tpu.matmul %375, %374, %cst_124 {dimension_numbers = #tpu.dot_dimension_numbers<[1], [0], [0], [1], [0, 0, 1, 1], [], []>} : vector<8x64xbf16>, vector<64x32xbf16>, vector<8x32xf32> -> vector<8x32xf32>
    %377 = vector.broadcast %220 : vector<1x32xf32> to vector<8x32xf32>
    %378 = arith.addf %376, %377 : vector<8x32xf32>
    %379 = arith.addf %364, %378 : vector<8x32xf32>
    %cst_125 = arith.constant dense<0.000000e+00> : vector<8xf32>
    %380 = vector.multi_reduction <add>, %379, %cst_125 [1] : vector<8x32xf32> to vector<8xf32>
    %381 = vector.shape_cast %380 : vector<8xf32> to vector<8x1xf32>
    %cst_126 = arith.constant 3.200000e+01 : f32
    %382 = vector.broadcast %cst_126 : f32 to vector<8x1xf32>
    %383 = arith.divf %381, %382 : vector<8x1xf32>
    %384 = vector.broadcast %383 : vector<8x1xf32> to vector<8x32xf32>
    %385 = arith.subf %379, %384 : vector<8x32xf32>
    %386 = arith.mulf %385, %385 : vector<8x32xf32>
    %cst_127 = arith.constant dense<0.000000e+00> : vector<8xf32>
    %387 = vector.multi_reduction <add>, %386, %cst_127 [1] : vector<8x32xf32> to vector<8xf32>
    %388 = vector.shape_cast %387 : vector<8xf32> to vector<8x1xf32>
    %cst_128 = arith.constant 3.200000e+01 : f32
    %389 = vector.broadcast %cst_128 : f32 to vector<8x1xf32>
    %390 = arith.divf %388, %389 : vector<8x1xf32>
    %391 = vector.broadcast %383 : vector<8x1xf32> to vector<8x32xf32>
    %392 = arith.subf %379, %391 : vector<8x32xf32>
    %cst_129 = arith.constant 9.99999974E-6 : f32
    %393 = vector.broadcast %cst_129 : f32 to vector<8x1xf32>
    %394 = arith.addf %390, %393 : vector<8x1xf32>
    %395 = math.rsqrt %394 : vector<8x1xf32>
    %396 = vector.broadcast %395 : vector<8x1xf32> to vector<8x32xf32>
    %397 = arith.mulf %392, %396 : vector<8x32xf32>
    %398 = vector.broadcast %221 : vector<1x32xf32> to vector<8x32xf32>
    %399 = arith.mulf %397, %398 : vector<8x32xf32>
    %400 = vector.broadcast %222 : vector<1x32xf32> to vector<8x32xf32>
    %401 = arith.addf %399, %400 : vector<8x32xf32>
    %402 = vector.extract_strided_slice %0 {offsets = [1, 0], sizes = [1, 128], strides = [1, 1]} : vector<3x256xf32> to vector<1x128xf32>
    %403 = vector.extract_strided_slice %0 {offsets = [2, 0], sizes = [1, 256], strides = [1, 1]} : vector<3x256xf32> to vector<1x256xf32>
    %c0_130 = arith.constant 0 : index
    %c0_131 = arith.constant 0 : index
    %404 = vector.load %arg11[%c0_130, %c0_131] : memref<32x128xbf16, #tpu.memory_space<vmem>>, vector<32x128xbf16>
    %405 = arith.truncf %401 : vector<8x32xf32> to vector<8x32xbf16>
    %cst_132 = arith.constant dense<0.000000e+00> : vector<8x128xf32>
    %406 = tpu.matmul %405, %404, %cst_132 {dimension_numbers = #tpu.dot_dimension_numbers<[1], [0], [0], [1], [0, 0, 1, 1], [], []>} : vector<8x32xbf16>, vector<32x128xbf16>, vector<8x128xf32> -> vector<8x128xf32>
    %407 = vector.broadcast %402 : vector<1x128xf32> to vector<8x128xf32>
    %408 = arith.addf %406, %407 : vector<8x128xf32>
    %cst_133 = arith.constant 0.000000e+00 : f32
    %409 = vector.broadcast %cst_133 : f32 to vector<8x128xf32>
    %410 = arith.maximumf %408, %409 : vector<8x128xf32>
    %c0_134 = arith.constant 0 : index
    %c0_135 = arith.constant 0 : index
    %411 = vector.load %arg12[%c0_134, %c0_135] : memref<128x256xbf16, #tpu.memory_space<vmem>>, vector<128x256xbf16>
    %412 = arith.truncf %410 : vector<8x128xf32> to vector<8x128xbf16>
    %cst_136 = arith.constant dense<0.000000e+00> : vector<8x256xf32>
    %413 = tpu.matmul %412, %411, %cst_136 {dimension_numbers = #tpu.dot_dimension_numbers<[1], [0], [0], [1], [0, 0, 1, 1], [], []>} : vector<8x128xbf16>, vector<128x256xbf16>, vector<8x256xf32> -> vector<8x256xf32>
    %414 = vector.broadcast %403 : vector<1x256xf32> to vector<8x256xf32>
    %415 = arith.addf %413, %414 : vector<8x256xf32>
    %cst_137 = arith.constant 0.000000e+00 : f32
    %416 = vector.broadcast %cst_137 : f32 to vector<8x256xf32>
    %417 = arith.maximumf %415, %416 : vector<8x256xf32>
    %c0_138 = arith.constant 0 : index
    %c0_139 = arith.constant 0 : index
    %418 = vector.load %arg2[%c0_138, %c0_139] : memref<8x1xi32, #tpu.memory_space<vmem>>, vector<8x1xi32>
    %c0_i32 = arith.constant 0 : i32
    %419 = vector.broadcast %c0_i32 : i32 to vector<8x1xi32>
    %420 = arith.cmpi eq, %418, %419 : vector<8x1xi32>
    %cst_140 = arith.constant -1.000000e+30 : f32
    %421 = vector.shape_cast %420 : vector<8x1xi1> to vector<8x1xi1>
    %422 = vector.broadcast %421 : vector<8x1xi1> to vector<8x256xi1>
    %423 = vector.broadcast %cst_140 : f32 to vector<8x256xf32>
    %424 = arith.select %422, %417, %423 : vector<8x256xi1>, vector<8x256xf32>
    %cst_141 = arith.constant dense<0xFF800000> : vector<256xf32>
    %425 = vector.multi_reduction <maximumf>, %424, %cst_141 [0] : vector<8x256xf32> to vector<256xf32>
    %426 = vector.shape_cast %425 : vector<256xf32> to vector<1x256xf32>
    %c1_i32 = arith.constant 1 : i32
    %427 = vector.broadcast %c1_i32 : i32 to vector<8x1xi32>
    %428 = arith.cmpi eq, %418, %427 : vector<8x1xi32>
    %cst_142 = arith.constant -1.000000e+30 : f32
    %429 = vector.shape_cast %428 : vector<8x1xi1> to vector<8x1xi1>
    %430 = vector.broadcast %429 : vector<8x1xi1> to vector<8x256xi1>
    %431 = vector.broadcast %cst_142 : f32 to vector<8x256xf32>
    %432 = arith.select %430, %417, %431 : vector<8x256xi1>, vector<8x256xf32>
    %cst_143 = arith.constant dense<0xFF800000> : vector<256xf32>
    %433 = vector.multi_reduction <maximumf>, %432, %cst_143 [0] : vector<8x256xf32> to vector<256xf32>
    %434 = vector.shape_cast %433 : vector<256xf32> to vector<1x256xf32>
    %435 = tpu.concatenate %426, %434 in 0 : vector<1x256xf32>, vector<1x256xf32> -> vector<2x256xf32>
    %c0_144 = arith.constant 0 : index
    %c0_145 = arith.constant 0 : index
    %436 = vector.load %arg14[%c0_144, %c0_145] : memref<2x256xf32, #tpu.memory_space<vmem>>, vector<2x256xf32>
    tpu.vector_store %arg14[%c0_144, %c0_145], %435 {strides = array<i32>} : memref<2x256xf32, #tpu.memory_space<vmem>>, vector<2x256xf32>,
    return
  }
  func.func @transform_0(%arg0: i32) -> (i32, i32) {
    %c0_i32 = arith.constant 0 : i32
    %c0_i32_0 = arith.constant 0 : i32
    %c0_i32_1 = arith.constant 0 : i32
    return %c0_i32, %c0_i32_0 : i32, i32
  }
  func.func @transform_1(%arg0: i32) -> (i32, i32) {
    %c0_i32 = arith.constant 0 : i32
    %c0_i32_0 = arith.constant 0 : i32
    %c0_i32_1 = arith.constant 0 : i32
    return %c0_i32, %c0_i32_0 : i32, i32
  }
  func.func @transform_2(%arg0: i32) -> (i32, i32) {
    %c0_i32 = arith.constant 0 : i32
    %c0_i32_0 = arith.constant 0 : i32
    %c0_i32_1 = arith.constant 0 : i32
    return %c0_i32, %c0_i32_0 : i32, i32
  }
  func.func @transform_3(%arg0: i32) -> (i32, i32) {
    %c0_i32 = arith.constant 0 : i32
    %c0_i32_0 = arith.constant 0 : i32
    %c0_i32_1 = arith.constant 0 : i32
    return %c0_i32, %c0_i32_0 : i32, i32
  }
  func.func @transform_4(%arg0: i32) -> (i32, i32) {
    %c0_i32 = arith.constant 0 : i32
    %c0_i32_0 = arith.constant 0 : i32
    %c0_i32_1 = arith.constant 0 : i32
    return %c0_i32, %c0_i32_0 : i32, i32
  }
  func.func @transform_5(%arg0: i32) -> (i32, i32, i32) {
    %c0_i32 = arith.constant 0 : i32
    %c0_i32_0 = arith.constant 0 : i32
    %c0_i32_1 = arith.constant 0 : i32
    %c0_i32_2 = arith.constant 0 : i32
    return %c0_i32, %c0_i32_0, %c0_i32_1 : i32, i32, i32
  }
  func.func @transform_6(%arg0: i32) -> (i32, i32, i32) {
    %c0_i32 = arith.constant 0 : i32
    %c0_i32_0 = arith.constant 0 : i32
    %c0_i32_1 = arith.constant 0 : i32
    %c0_i32_2 = arith.constant 0 : i32
    return %c0_i32, %c0_i32_0, %c0_i32_1 : i32, i32, i32
  }
  func.func @transform_7(%arg0: i32) -> (i32, i32, i32) {
    %c0_i32 = arith.constant 0 : i32
    %c0_i32_0 = arith.constant 0 : i32
    %c0_i32_1 = arith.constant 0 : i32
    %c0_i32_2 = arith.constant 0 : i32
    return %c0_i32, %c0_i32_0, %c0_i32_1 : i32, i32, i32
  }
  func.func @transform_8(%arg0: i32) -> (i32, i32, i32) {
    %c0_i32 = arith.constant 0 : i32
    %c0_i32_0 = arith.constant 0 : i32
    %c0_i32_1 = arith.constant 0 : i32
    %c0_i32_2 = arith.constant 0 : i32
    return %c0_i32, %c0_i32_0, %c0_i32_1 : i32, i32, i32
  }
  func.func @transform_9(%arg0: i32) -> (i32, i32, i32) {
    %c0_i32 = arith.constant 0 : i32
    %c0_i32_0 = arith.constant 0 : i32
    %c0_i32_1 = arith.constant 0 : i32
    %c0_i32_2 = arith.constant 0 : i32
    return %c0_i32, %c0_i32_0, %c0_i32_1 : i32, i32, i32
  }
  func.func @transform_10(%arg0: i32) -> (i32, i32) {
    %c0_i32 = arith.constant 0 : i32
    %c0_i32_0 = arith.constant 0 : i32
    %c0_i32_1 = arith.constant 0 : i32
    return %c0_i32, %c0_i32_0 : i32, i32
  }
  func.func @transform_11(%arg0: i32) -> (i32, i32) {
    %c0_i32 = arith.constant 0 : i32
    %c0_i32_0 = arith.constant 0 : i32
    %c0_i32_1 = arith.constant 0 : i32
    return %c0_i32, %c0_i32_0 : i32, i32
  }
  func.func @transform_12(%arg0: i32) -> (i32, i32) {
    %c0_i32 = arith.constant 0 : i32
    %c0_i32_0 = arith.constant 0 : i32
    %c0_i32_1 = arith.constant 0 : i32
    return %c0_i32, %c0_i32_0 : i32, i32
  }
  func.func @transform_13(%arg0: i32) -> (i32, i32) {
    %c0_i32 = arith.constant 0 : i32
    %c0_i32_0 = arith.constant 0 : i32
    %c0_i32_1 = arith.constant 0 : i32
    return %c0_i32, %c0_i32_0 : i32, i32
  }
}

</mosaic_0001>

<llo_original>
// kernel: graph_transformer_forward.1
$region0: #{graph_transformer_forward.1}
  #allocation0 [shape = 'u32[]', space=smem, size = 0x4, offset = 0x4, fixed_abs, tag = 'smem constant byte address 0x4 - core index']
  #allocation1 [shape = 'u32[144,128]{1,0:T(1,128)}', space=vmem, size = 0x12000, scoped, tag = 'internal scratch']
  %s0 = inlined_call_operand.vmem [shape: s32[8,1], index: 0, kind: input, shape index: {}]
  %s1 = inlined_call_operand.vmem [shape: s32[8,1], index: 1, kind: input, shape index: {}]
  %s2 = inlined_call_operand.vmem [shape: s32[1,8], index: 2, kind: input, shape index: {}]
  %s3 = inlined_call_operand.hbm [shape: bf16[16,64], index: 3, kind: input, shape index: {}]
  %s4 = inlined_call_operand.vmem [shape: bf16[64,32], index: 4, kind: input, shape index: {}]
  %s5 = inlined_call_operand.hbm [shape: bf16[2,32,96], index: 5, kind: input, shape index: {}]
  %s6 = inlined_call_operand.hbm [shape: bf16[2,32,32], index: 6, kind: input, shape index: {}]
  %s7 = inlined_call_operand.hbm [shape: bf16[2,32,64], index: 7, kind: input, shape index: {}]
  %s8 = inlined_call_operand.vmem [shape: bf16[2,64,32], index: 8, kind: input, shape index: {}]
  %s9 = inlined_call_operand.vmem [shape: f32[2,8,96], index: 9, kind: input, shape index: {}]
  %s10 = inlined_call_operand.hbm [shape: bf16[32,128], index: 10, kind: input, shape index: {}]
  %s11 = inlined_call_operand.vmem [shape: bf16[128,256], index: 11, kind: input, shape index: {}]
  %s12 = inlined_call_operand.hbm [shape: f32[3,256], index: 12, kind: input, shape index: {}]
  %s13 = inlined_call_operand.hbm [shape: f32[2,256], index: 13, kind: output, shape index: {}]
  %s14 = sld [smem:[#allocation0]]
  $region86: #{graph_transformer_forward.1} parent=0
    _
  %s16 = ssub.s32 1, %s14
  %s17 = scalar_select 0, %s16, %s14
  $region1: #{graph_transformer_forward.1} parent=0
    #allocation2 [shape = 'u8[4096]{0}', space=vmem, size = 0x1000, scoped, tag = 'input window, operand 3, single buffered']
    #allocation3 [shape = 's32[1]{0}', space=sflag, size = 0x4, scoped, tag = 'scoped memory for graph_transformer_forward.1']
    #allocation4 [shape = 's32[1]{0}', space=sflag, size = 0x4, scoped, tag = 'scoped memory for graph_transformer_forward.1']
    #allocation5 [shape = 'u8[16384]{0}', space=vmem, size = 0x4000, scoped, tag = 'input window, operand 5, single buffered']
    #allocation6 [shape = 's32[1]{0}', space=sflag, size = 0x4, scoped, tag = 'scoped memory for graph_transformer_forward.1']
    #allocation7 [shape = 'u8[16384]{0}', space=vmem, size = 0x4000, scoped, tag = 'input window, operand 6, single buffered']
    #allocation8 [shape = 'u8[16384]{0}', space=vmem, size = 0x4000, scoped, tag = 'input window, operand 7, single buffered']
    #allocation9 [shape = 's32[1]{0}', space=sflag, size = 0x4, scoped, tag = 'scoped memory for graph_transformer_forward.1']
    #allocation10 [shape = 'u8[8192]{0}', space=vmem, size = 0x2000, scoped, tag = 'input window, operand 10, single buffered']
    #allocation11 [shape = 'u8[4096]{0}', space=vmem, size = 0x1000, scoped, tag = 'input window, operand 12, single buffered']
    #allocation12 [shape = 's32[1]{0}', space=sflag, size = 0x4, scoped, tag = 'scoped memory for graph_transformer_forward.1']
    #allocation13 [shape = 'u8[2048]{0}', space=vmem, size = 0x800, scoped, tag = 'output window, operand 0, single buffered']
    %18 = vsyncpa [#allocation3], 0
    %19 = vsyncpa [#allocation6], 0
    %20 = vsyncpa [#allocation9], 0
    %21 = vsyncpa [#allocation12], 0
    %22 = vsyncpa [#allocation4], 0
    // Predicated region
    $region2: #{graph_transformer_forward.1} parent=1 // pred_check
      _
    $region3: #{graph_transformer_forward.1} parent=1 // pred_check_branch
      %24 = sbr.rel (0) target = $region5
    $region4: #{graph_transformer_forward.1} parent=1 // pred_region
      _
    $region5: #{graph_transformer_forward.1} parent=1 // pred_fallthru
      _
    // Predicated region
    $region6: #{graph_transformer_forward.1} parent=1 // pred_check
      _
    $region7: #{graph_transformer_forward.1} parent=1 // pred_check_branch
      %26 = sbr.rel (0) target = $region9
    $region8: #{graph_transformer_forward.1} parent=1 // pred_region
      _
    $region9: #{graph_transformer_forward.1} parent=1 // pred_fallthru
      _
    // Predicated region
    $region10: #{graph_transformer_forward.1} parent=1 // pred_check
      _
    $region11: #{graph_transformer_forward.1} parent=1 // pred_check_branch
      %28 = sbr.rel (0) target = $region13
    $region12: #{graph_transformer_forward.1} parent=1 // pred_region
      _
    $region13: #{graph_transformer_forward.1} parent=1 // pred_fallthru
      _
    // Predicated region
    $region14: #{graph_transformer_forward.1} parent=1 // pred_check
      _
    $region15: #{graph_transformer_forward.1} parent=1 // pred_check_branch
      %30 = sbr.rel (0) target = $region17
    $region16: #{graph_transformer_forward.1} parent=1 // pred_region
      %s32 = ssub.s32 128, 128
      %33 = vsyncadd [#allocation3], %s32
      %s34 = sshll.u32 [#allocation2], 4
      %s35 = int_to_ptr.vmem [resolvable:$true] %s34
      %40 = dma.hbm_to_vmem [thread:$0]  %s3, 128, %s35, [#allocation3], 64, 64, 4
    $region17: #{graph_transformer_forward.1} parent=1 // pred_fallthru
      _
    // Predicated region
    $region18: #{graph_transformer_forward.1} parent=1 // pred_check
      _
    $region19: #{graph_transformer_forward.1} parent=1 // pred_check_branch
      %42 = sbr.rel (0) target = $region21
    $region20: #{graph_transformer_forward.1} parent=1 // pred_region
      _
    $region21: #{graph_transformer_forward.1} parent=1 // pred_fallthru
      _
    // Predicated region
    $region22: #{graph_transformer_forward.1} parent=1 // pred_check
      _
    $region23: #{graph_transformer_forward.1} parent=1 // pred_check_branch
      %44 = sbr.rel (0) target = $region25
    $region24: #{graph_transformer_forward.1} parent=1 // pred_region
      %s46 = ssub.s32 512, 512
      %47 = vsyncadd [#allocation6], %s46
      %s48 = sshll.u32 [#allocation5], 4
      %s49 = int_to_ptr.vmem [resolvable:$true] %s48
      %54 = dma.hbm_to_vmem [thread:$0]  %s5, 512, %s49, [#allocation6], 64, 64, 4
    $region25: #{graph_transformer_forward.1} parent=1 // pred_fallthru
      _
    // Predicated region
    $region26: #{graph_transformer_forward.1} parent=1 // pred_check
      _
    $region27: #{graph_transformer_forward.1} parent=1 // pred_check_branch
      %56 = sbr.rel (0) target = $region29
    $region28: #{graph_transformer_forward.1} parent=1 // pred_region
      %s58 = ssub.s32 512, 512
      %59 = vsyncadd [#allocation6], %s58
      %s60 = sshll.u32 [#allocation7], 4
      %s61 = int_to_ptr.vmem [resolvable:$true] %s60
      %66 = dma.hbm_to_vmem [thread:$0]  %s6, 512, %s61, [#allocation6], 64, 64, 4
    $region29: #{graph_transformer_forward.1} parent=1 // pred_fallthru
      _
    // Predicated region
    $region30: #{graph_transformer_forward.1} parent=1 // pred_check
      _
    $region31: #{graph_transformer_forward.1} parent=1 // pred_check_branch
      %68 = sbr.rel (0) target = $region33
    $region32: #{graph_transformer_forward.1} parent=1 // pred_region
      %s70 = ssub.s32 512, 512
      %71 = vsyncadd [#allocation9], %s70
      %s72 = sshll.u32 [#allocation8], 4
      %s73 = int_to_ptr.vmem [resolvable:$true] %s72
      %78 = dma.hbm_to_vmem [thread:$0]  %s7, 512, %s73, [#allocation9], 64, 64, 4
    $region33: #{graph_transformer_forward.1} parent=1 // pred_fallthru
      _
    // Predicated region
    $region34: #{graph_transformer_forward.1} parent=1 // pred_check
      _
    $region35: #{graph_transformer_forward.1} parent=1 // pred_check_branch
      %80 = sbr.rel (0) target = $region37
    $region36: #{graph_transformer_forward.1} parent=1 // pred_region
      _
    $region37: #{graph_transformer_forward.1} parent=1 // pred_fallthru
      _
    // Predicated region
    $region38: #{graph_transformer_forward.1} parent=1 // pred_check
      _
    $region39: #{graph_transformer_forward.1} parent=1 // pred_check_branch
      %82 = sbr.rel (0) target = $region41
    $region40: #{graph_transformer_forward.1} parent=1 // pred_region
      _
    $region41: #{graph_transformer_forward.1} parent=1 // pred_fallthru
      _
    // Predicated region
    $region42: #{graph_transformer_forward.1} parent=1 // pred_check
      _
    $region43: #{graph_transformer_forward.1} parent=1 // pred_check_branch
      %84 = sbr.rel (0) target = $region45
    $region44: #{graph_transformer_forward.1} parent=1 // pred_region
      %s86 = ssub.s32 256, 256
      %87 = vsyncadd [#allocation9], %s86
      %s88 = sshll.u32 [#allocation10], 4
      %s89 = int_to_ptr.vmem [resolvable:$true] %s88
      %94 = dma.hbm_to_vmem [thread:$0]  %s10, 256, %s89, [#allocation9], 64, 64, 4
    $region45: #{graph_transformer_forward.1} parent=1 // pred_fallthru
      _
    // Predicated region
    $region46: #{graph_transformer_forward.1} parent=1 // pred_check
      _
    $region47: #{graph_transformer_forward.1} parent=1 // pred_check_branch
      %96 = sbr.rel (0) target = $region49
    $region48: #{graph_transformer_forward.1} parent=1 // pred_region
      _
    $region49: #{graph_transformer_forward.1} parent=1 // pred_fallthru
      _
    // Predicated region
    $region50: #{graph_transformer_forward.1} parent=1 // pred_check
      _
    $region51: #{graph_transformer_forward.1} parent=1 // pred_check_branch
      %98 = sbr.rel (0) target = $region53
    $region52: #{graph_transformer_forward.1} parent=1 // pred_region
      %s100 = ssub.s32 128, 128
      %101 = vsyncadd [#allocation12], %s100
      %s103 = sshll.u32 [#allocation11], 4
      %s104 = int_to_ptr.vmem [resolvable:$true] %s103
      %106 = dma.hbm_to_vmem [thread:$0]  %s12, 128, %s104, [#allocation12]
    $region53: #{graph_transformer_forward.1} parent=1 // pred_fallthru
      _
    // Predicated region
    $region54: #{graph_transformer_forward.1} parent=1 // pred_check
      _
    $region55: #{graph_transformer_forward.1} parent=1 // pred_check_branch
      %108 = sbr.rel (0) target = $region57
    $region56: #{graph_transformer_forward.1} parent=1 // pred_region
      %109 = dma.done [#allocation3], 128
    $region57: #{graph_transformer_forward.1} parent=1 // pred_fallthru
      _
    // Predicated region
    $region58: #{graph_transformer_forward.1} parent=1 // pred_check
      _
    $region59: #{graph_transformer_forward.1} parent=1 // pred_check_branch
      %111 = sbr.rel (0) target = $region61
    $region60: #{graph_transformer_forward.1} parent=1 // pred_region
      %112 = dma.done [#allocation6], 512
    $region61: #{graph_transformer_forward.1} parent=1 // pred_fallthru
      _
    // Predicated region
    $region62: #{graph_transformer_forward.1} parent=1 // pred_check
      _
    $region63: #{graph_transformer_forward.1} parent=1 // pred_check_branch
      %114 = sbr.rel (0) target = $region65
    $region64: #{graph_transformer_forward.1} parent=1 // pred_region
      %115 = dma.done [#allocation6], 512
    $region65: #{graph_transformer_forward.1} parent=1 // pred_fallthru
      _
    // Predicated region
    $region66: #{graph_transformer_forward.1} parent=1 // pred_check
      _
    $region67: #{graph_transformer_forward.1} parent=1 // pred_check_branch
      %117 = sbr.rel (0) target = $region69
    $region68: #{graph_transformer_forward.1} parent=1 // pred_region
      %118 = dma.done [#allocation9], 512
    $region69: #{graph_transformer_forward.1} parent=1 // pred_fallthru
      _
    // Predicated region
    $region70: #{graph_transformer_forward.1} parent=1 // pred_check
      _
    $region71: #{graph_transformer_forward.1} parent=1 // pred_check_branch
      %120 = sbr.rel (0) target = $region73
    $region72: #{graph_transformer_forward.1} parent=1 // pred_region
      %121 = dma.done [#allocation9], 256
    $region73: #{graph_transformer_forward.1} parent=1 // pred_fallthru
      _
    // Predicated region
    $region74: #{graph_transformer_forward.1} parent=1 // pred_check
      _
    $region75: #{graph_transformer_forward.1} parent=1 // pred_check_branch
      %123 = sbr.rel (0) target = $region77
    $region76: #{graph_transformer_forward.1} parent=1 // pred_region
      %124 = dma.done [#allocation12], 128
    $region77: #{graph_transformer_forward.1} parent=1 // pred_fallthru
      _
    %v126 = vld [vmem:[#allocation11] sm:$0x77]
    %v127 = vld [vmem:[%s0] sm:$0xff]
    %v128 = vlaneseq
    %v129 = vand.u32 %v128, 127
    %130 = vset.pattern.permute.xlu0 0
    %131 = vperm.xlu0 %130, %v127
    %v132 = vpop.permute.xlu0 %131
    %vm133 = vcmp.eq.s32.totalorder %v132, %v129
    %v134 = vsel %vm133, 1.0, 0.0
    %v135 = vpack.c.bf16 %v134, %v134
    %v136 = vld [vmem:[#allocation2] sm:$0xf]
    %v137 = vld [vmem:[#allocation2 + $0x4] sm:$0xf]
    %v140 = vunpack.c.l.b16 %v136
    %v141 = vunpack.c.l.b16 %v137
    %v142 = vpack.c.b16 %v141, %v140
    %vm144 = vcmask 130048
    %v146 = vsel %vm144, %v135, 0
    %148 = vmatprep.subr.bf16.mxu0 0
    %149 = vmatpush1.bf16.msra.mxu0 0
    %150 = vmatprep.subr.bf16.mxu0 0
    %151 = vmatpush1.bf16.msra.mxu0 0
    %152 = vmatprep.subr.bf16.mxu0 0
    %153 = vmatpush1.bf16.msra.mxu0 0
    %154 = vmatprep.subr.bf16.mxu0 0
    %155 = vmatpush1.bf16.msra.mxu0 0
    %156 = vmatprep.subr.bf16.mxu0 0
    %157 = vmatpush1.bf16.msra.mxu0 0
    %158 = vmatprep.subr.bf16.mxu0 0
    %159 = vmatpush1.bf16.msra.mxu0 0
    %160 = vmatprep.subr.bf16.mxu0 0
    %161 = vmatpush1.bf16.msra.mxu0 0
    %162 = vmatprep.subr.bf16.mxu0 0
    %163 = vmatpush1.bf16.msra.mxu0 %v142
    %164 = vmatprep.subr.bf16.mxu0 0
    %165 = vmatpush2.bf16.msra.mxu0 0
    %166 = vmatprep.subr.bf16.mxu0 0
    %167 = vmatpush2.bf16.msra.mxu0 0
    %168 = vmatprep.subr.bf16.mxu0 0
    %169 = vmatpush2.bf16.msra.mxu0 0
    %170 = vmatprep.subr.bf16.mxu0 0
    %171 = vmatpush2.bf16.msra.mxu0 0
    %172 = vmatprep.subr.bf16.mxu0 0
    %173 = vmatpush2.bf16.msra.mxu0 0
    %174 = vmatprep.subr.bf16.mxu0 0
    %175 = vmatpush2.bf16.msra.mxu0 0
    %176 = vmatprep.subr.bf16.mxu0 0
    %177 = vmatpush2.bf16.msra.mxu0 0
    %178 = vmatprep.subr.bf16.mxu0 0
    %179 = vmatpush2.bf16.msra.mxu0 0
    %180 = vmatprep.mubr.bf16.mxu0 0
    %181 = vmatmul.mubr.bf16.gmra.mxu0 %v146
    %v182 = vpop.f32.mrf.mxu0
    %v183 = vadd.f32 0.0, %v182
    %v184 = vpop.f32.mrf.mxu0
    %v185 = vpop.f32.mrf.mxu0
    %v186 = vpop.f32.mrf.mxu0
    %187 = vdwg.mxu0
    %v188 = vld [vmem:[%s4] sm:$0xf]
    %v189 = vld [vmem:[%s4 + $0x4] sm:$0xf]
    %v190 = vld [vmem:[%s4 + $0x8] sm:$0xf]
    %v191 = vld [vmem:[%s4 + $0xc] sm:$0xf]
    %v192 = vld [vmem:[%s4 + $0x10] sm:$0xf]
    %v193 = vld [vmem:[%s4 + $0x14] sm:$0xf]
    %v194 = vld [vmem:[%s4 + $0x18] sm:$0xf]
    %v195 = vld [vmem:[%s4 + $0x1c] sm:$0xf]
    %v196 = vpack.c.bf16 %v183, %v183
    %v197 = vlaneseq
    %v198 = vshrl.u32 %v197, 7
    %v199 = vsub.s32 0, %v198
    %v200 = vrot.slane %v126, %v199
    %v209 = vunpack.c.l.b16 %v188
    %v210 = vunpack.c.l.b16 %v189
    %v211 = vunpack.c.l.b16 %v190
    %v212 = vunpack.c.l.b16 %v191
    %v213 = vunpack.c.l.b16 %v192
    %v214 = vunpack.c.l.b16 %v193
    %v215 = vunpack.c.l.b16 %v194
    %v216 = vunpack.c.l.b16 %v195
    %v217 = vpack.c.b16 %v210, %v209
    %v218 = vpack.c.b16 %v212, %v211
    %v219 = vpack.c.b16 %v214, %v213
    %v220 = vpack.c.b16 %v216, %v215
    %vm225 = vcmask 523264
    %v227 = vsel %vm225, %v196, 0
    %229 = vmatprep.subr.bf16.mxu0 0
    %230 = vmatpush1.bf16.msra.mxu0 0
    %231 = vmatprep.subr.bf16.mxu0 0
    %232 = vmatpush1.bf16.msra.mxu0 0
    %233 = vmatprep.subr.bf16.mxu0 0
    %234 = vmatpush1.bf16.msra.mxu0 0
    %235 = vmatprep.subr.bf16.mxu0 0
    %236 = vmatpush1.bf16.msra.mxu0 0
    %237 = vmatprep.subr.bf16.mxu0 0
    %238 = vmatpush1.bf16.msra.mxu0 %v220
    %239 = vmatprep.subr.bf16.mxu0 0
    %240 = vmatpush1.bf16.msra.mxu0 %v219
    %241 = vmatprep.subr.bf16.mxu0 0
    %242 = vmatpush1.bf16.msra.mxu0 %v218
    %243 = vmatprep.subr.bf16.mxu0 0
    %244 = vmatpush1.bf16.msra.mxu0 %v217
    %245 = vmatprep.subr.bf16.mxu0 0
    %246 = vmatpush2.bf16.msra.mxu0 0
    %247 = vmatprep.subr.bf16.mxu0 0
    %248 = vmatpush2.bf16.msra.mxu0 0
    %249 = vmatprep.subr.bf16.mxu0 0
    %250 = vmatpush2.bf16.msra.mxu0 0
    %251 = vmatprep.subr.bf16.mxu0 0
    %252 = vmatpush2.bf16.msra.mxu0 0
    %253 = vmatprep.subr.bf16.mxu0 0
    %254 = vmatpush2.bf16.msra.mxu0 0
    %255 = vmatprep.subr.bf16.mxu0 0
    %256 = vmatpush2.bf16.msra.mxu0 0
    %257 = vmatprep.subr.bf16.mxu0 0
    %258 = vmatpush2.bf16.msra.mxu0 0
    %259 = vmatprep.subr.bf16.mxu0 0
    %260 = vmatpush2.bf16.msra.mxu0 0
    %261 = vmatprep.mubr.bf16.mxu0 0
    %262 = vmatmul.mubr.bf16.gmra.mxu0 %v227
    %v263 = vpop.f32.mrf.mxu0
    %v264 = vadd.f32 %v200, %v263
    %v265 = vpop.f32.mrf.mxu0
    %v266 = vpop.f32.mrf.mxu0
    %v267 = vpop.f32.mrf.mxu0
    %268 = vdwg.mxu0
    %v269 = vmax.f32 %v264, 0.0
    %v270 = vld [vmem:[%s1] sm:$0xff]
    %v271 = vld [vmem:[%s2] sm:$0x1]
    %272 = vset.pattern.permute.xlu0 0
    %273 = vperm.xlu0 %272, %v270
    %v274 = vpop.permute.xlu0 %273
    %v275 = vlaneseq
    %v276 = vshrl.u32 %v275, 7
    %v277 = vsub.s32 0, %v276
    %v278 = vrot.slane %v271, %v277
    %vm279 = vcmp.eq.s32.totalorder %v274, %v278
    %v280 = vld [vmem:[%s9] sm:$0xff]
    %v281 = vld [vmem:[#allocation7] sm:$0xf]
    %v282 = vld [vmem:[#allocation7 + $0x4] sm:$0xf]
    %v283 = vld [vmem:[#allocation7 + $0x8] sm:$0xf]
    %v284 = vld [vmem:[#allocation7 + $0xc] sm:$0xf]
    %v285 = vld [vmem:[#allocation5] sm:$0xf]
    %v286 = vld [vmem:[#allocation5 + $0x4] sm:$0xf]
    %v287 = vld [vmem:[#allocation5 + $0x8] sm:$0xf]
    %v288 = vld [vmem:[#allocation5 + $0xc] sm:$0xf]
    %v289 = vpack.c.bf16 %v269, %v269
    %v290 = vlaneseq
    %v291 = vshrl.u32 %v290, 7
    %v292 = vsub.s32 0, %v291
    %v293 = vrot.slane %v280, %v292
    %v298 = vunpack.c.l.b16 %v285
    %v299 = vunpack.c.l.b16 %v286
    %v300 = vunpack.c.l.b16 %v287
    %v301 = vunpack.c.l.b16 %v288
    %v302 = vpack.c.b16 %v299, %v298
    %v303 = vpack.c.b16 %v301, %v300
    %vm306 = vcmask 261120
    %v308 = vsel %vm306, %v289, 0
    %310 = vmatprep.subr.bf16.mxu0 0
    %311 = vmatpush1.bf16.msra.mxu0 0
    %312 = vmatprep.subr.bf16.mxu0 0
    %313 = vmatpush1.bf16.msra.mxu0 0
    %314 = vmatprep.subr.bf16.mxu0 0
    %315 = vmatpush1.bf16.msra.mxu0 0
    %316 = vmatprep.subr.bf16.mxu0 0
    %317 = vmatpush1.bf16.msra.mxu0 0
    %318 = vmatprep.subr.bf16.mxu0 0
    %319 = vmatpush1.bf16.msra.mxu0 0
    %320 = vmatprep.subr.bf16.mxu0 0
    %321 = vmatpush1.bf16.msra.mxu0 0
    %322 = vmatprep.subr.bf16.mxu0 0
    %323 = vmatpush1.bf16.msra.mxu0 %v303
    %324 = vmatprep.subr.bf16.mxu0 0
    %325 = vmatpush1.bf16.msra.mxu0 %v302
    %326 = vmatprep.subr.bf16.mxu0 0
    %327 = vmatpush2.bf16.msra.mxu0 0
    %328 = vmatprep.subr.bf16.mxu0 0
    %329 = vmatpush2.bf16.msra.mxu0 0
    %330 = vmatprep.subr.bf16.mxu0 0
    %331 = vmatpush2.bf16.msra.mxu0 0
    %332 = vmatprep.subr.bf16.mxu0 0
    %333 = vmatpush2.bf16.msra.mxu0 0
    %334 = vmatprep.subr.bf16.mxu0 0
    %335 = vmatpush2.bf16.msra.mxu0 0
    %336 = vmatprep.subr.bf16.mxu0 0
    %337 = vmatpush2.bf16.msra.mxu0 0
    %338 = vmatprep.subr.bf16.mxu0 0
    %339 = vmatpush2.bf16.msra.mxu0 0
    %340 = vmatprep.subr.bf16.mxu0 0
    %341 = vmatpush2.bf16.msra.mxu0 0
    %342 = vmatprep.mubr.bf16.mxu0 0
    %343 = vmatmul.mubr.bf16.gmra.mxu0 %v308
    %v344 = vpop.f32.mrf.mxu0
    %v345 = vadd.f32 %v293, %v344
    %v346 = vpop.f32.mrf.mxu0
    %v347 = vpop.f32.mrf.mxu0
    %v348 = vpop.f32.mrf.mxu0
    %349 = vdwg.mxu0
    %v350 = vpack.c.bf16 %v345, %v345
    %352 = vrot.lane.b32.xlu0 %v350, 96
    %v353 = vpop.permute.xlu0 %352
    %vm354 = vcmask 64512
    %v356 = vsel %vm354, %v350, 0
    %v359 = vsel %vm354, %v353, 0
    %361 = vmatprep.subr.bf16.mxu0 0
    %362 = vmatpush1.bf16.xpose.msra.mxu0 0
    %363 = vmatprep.subr.bf16.mxu0 0
    %364 = vmatpush1.bf16.xpose.msra.mxu0 0
    %365 = vmatprep.subr.bf16.mxu0 0
    %366 = vmatpush1.bf16.xpose.msra.mxu0 0
    %367 = vmatprep.subr.bf16.mxu0 0
    %368 = vmatpush1.bf16.xpose.msra.mxu0 0
    %369 = vmatprep.subr.bf16.mxu0 0
    %370 = vmatpush1.bf16.xpose.msra.mxu0 0
    %371 = vmatprep.subr.bf16.mxu0 0
    %372 = vmatpush1.bf16.xpose.msra.mxu0 0
    %373 = vmatprep.subr.bf16.mxu0 0
    %374 = vmatpush1.bf16.xpose.msra.mxu0 0
    %375 = vmatprep.subr.bf16.mxu0 0
    %376 = vmatpush1.bf16.xpose.msra.mxu0 %v359
    %377 = vmatprep.subr.bf16.mxu0 0
    %378 = vmatpush2.bf16.xpose.msra.mxu0 0
    %379 = vmatprep.subr.bf16.mxu0 0
    %380 = vmatpush2.bf16.xpose.msra.mxu0 0
    %381 = vmatprep.subr.bf16.mxu0 0
    %382 = vmatpush2.bf16.xpose.msra.mxu0 0
    %383 = vmatprep.subr.bf16.mxu0 0
    %384 = vmatpush2.bf16.xpose.msra.mxu0 0
    %385 = vmatprep.subr.bf16.mxu0 0
    %386 = vmatpush2.bf16.xpose.msra.mxu0 0
    %387 = vmatprep.subr.bf16.mxu0 0
    %388 = vmatpush2.bf16.xpose.msra.mxu0 0
    %389 = vmatprep.subr.bf16.mxu0 0
    %390 = vmatpush2.bf16.xpose.msra.mxu0 0
    %391 = vmatprep.subr.bf16.mxu0 0
    %392 = vmatpush2.bf16.xpose.msra.mxu0 0
    %393 = vmatprep.mubr.bf16.mxu0 0
    %394 = vmatmul.mubr.bf16.gmra.mxu0 %v356
    %v395 = vpop.f32.mrf.mxu0
    %v396 = vadd.f32 0.0, %v395
    %v397 = vpop.f32.mrf.mxu0
    %v398 = vpop.f32.mrf.mxu0
    %v399 = vpop.f32.mrf.mxu0
    %400 = vdwg.mxu0
    %v401 = vmul.f32 %v396, 0.35355338
    %v402 = vsel %vm279, %v401, -1e+30
    %v403 = vsel %vm354, %v402, -inf
    %404 = vmax.xlane.f32.xlu0 %v403
    %v405 = vpop.xlane.xlu0 %404
    %v406 = vsub.f32 %v402, %v405
    %v407 = vmul.f32 %v406, 1.442695
    %v408 = vpow.pop %v407
    %v409 = vsel %vm354, %v408, 0.0
    %410 = vadd.xlane.f32.xlu0 %v409
    %v411 = vpop.xlane.xlu0 %410
    %v412 = vrcp.pop %v411
    %v413 = vmul.f32 %v408, %v412
    %v414 = vpack.c.bf16 %v413, %v413
    %415 = vrot.lane.b32.xlu0 %v350, 64
    %v416 = vpop.permute.xlu0 %415
    %v418 = vsel %vm354, %v414, 0
    %vm420 = vcmask 1043456
    %v422 = vsel %vm420, %v416, 0
    %424 = vmatprep.subr.bf16.mxu0 0
    %425 = vmatpush1.bf16.msra.mxu0 0
    %426 = vmatprep.subr.bf16.mxu0 0
    %427 = vmatpush1.bf16.msra.mxu0 0
    %428 = vmatprep.subr.bf16.mxu0 0
    %429 = vmatpush1.bf16.msra.mxu0 0
    %430 = vmatprep.subr.bf16.mxu0 0
    %431 = vmatpush1.bf16.msra.mxu0 0
    %432 = vmatprep.subr.bf16.mxu0 0
    %433 = vmatpush1.bf16.msra.mxu0 0
    %434 = vmatprep.subr.bf16.mxu0 0
    %435 = vmatpush1.bf16.msra.mxu0 0
    %436 = vmatprep.subr.bf16.mxu0 0
    %437 = vmatpush1.bf16.msra.mxu0 0
    %438 = vmatprep.subr.bf16.mxu0 0
    %439 = vmatpush1.bf16.msra.mxu0 %v422
    %440 = vmatprep.subr.bf16.mxu0 0
    %441 = vmatpush2.bf16.msra.mxu0 0
    %442 = vmatprep.subr.bf16.mxu0 0
    %443 = vmatpush2.bf16.msra.mxu0 0
    %444 = vmatprep.subr.bf16.mxu0 0
    %445 = vmatpush2.bf16.msra.mxu0 0
    %446 = vmatprep.subr.bf16.mxu0 0
    %447 = vmatpush2.bf16.msra.mxu0 0
    %448 = vmatprep.subr.bf16.mxu0 0
    %449 = vmatpush2.bf16.msra.mxu0 0
    %450 = vmatprep.subr.bf16.mxu0 0
    %451 = vmatpush2.bf16.msra.mxu0 0
    %452 = vmatprep.subr.bf16.mxu0 0
    %453 = vmatpush2.bf16.msra.mxu0 0
    %454 = vmatprep.subr.bf16.mxu0 0
    %455 = vmatpush2.bf16.msra.mxu0 0
    %456 = vmatprep.mubr.bf16.mxu0 0
    %457 = vmatmul.mubr.bf16.gmra.mxu0 %v418
    %v458 = vpop.f32.mrf.mxu0
    %v459 = vadd.f32 0.0, %v458
    %v460 = vpop.f32.mrf.mxu0
    %v461 = vpop.f32.mrf.mxu0
    %v462 = vpop.f32.mrf.mxu0
    %463 = vdwg.mxu0
    %v464 = vpack.c.bf16 %v459, %v459
    %465 = vrot.lane.b32.xlu0 %v350, 120
    %v466 = vpop.permute.xlu0 %465
    %467 = vrot.lane.b32.xlu0 %v350, 88
    %v468 = vpop.permute.xlu0 %467
    %v470 = vsel %vm354, %v466, 0
    %v473 = vsel %vm354, %v468, 0
    %475 = vmatprep.subr.bf16.mxu0 0
    %476 = vmatpush1.bf16.xpose.msra.mxu0 0
    %477 = vmatprep.subr.bf16.mxu0 0
    %478 = vmatpush1.bf16.xpose.msra.mxu0 0
    %479 = vmatprep.subr.bf16.mxu0 0
    %480 = vmatpush1.bf16.xpose.msra.mxu0 0
    %481 = vmatprep.subr.bf16.mxu0 0
    %482 = vmatpush1.bf16.xpose.msra.mxu0 0
    %483 = vmatprep.subr.bf16.mxu0 0
    %484 = vmatpush1.bf16.xpose.msra.mxu0 0
    %485 = vmatprep.subr.bf16.mxu0 0
    %486 = vmatpush1.bf16.xpose.msra.mxu0 0
    %487 = vmatprep.subr.bf16.mxu0 0
    %488 = vmatpush1.bf16.xpose.msra.mxu0 0
    %489 = vmatprep.subr.bf16.mxu0 0
    %490 = vmatpush1.bf16.xpose.msra.mxu0 %v473
    %491 = vmatprep.subr.bf16.mxu0 0
    %492 = vmatpush2.bf16.xpose.msra.mxu0 0
    %493 = vmatprep.subr.bf16.mxu0 0
    %494 = vmatpush2.bf16.xpose.msra.mxu0 0
    %495 = vmatprep.subr.bf16.mxu0 0
    %496 = vmatpush2.bf16.xpose.msra.mxu0 0
    %497 = vmatprep.subr.bf16.mxu0 0
    %498 = vmatpush2.bf16.xpose.msra.mxu0 0
    %499 = vmatprep.subr.bf16.mxu0 0
    %500 = vmatpush2.bf16.xpose.msra.mxu0 0
    %501 = vmatprep.subr.bf16.mxu0 0
    %502 = vmatpush2.bf16.xpose.msra.mxu0 0
    %503 = vmatprep.subr.bf16.mxu0 0
    %504 = vmatpush2.bf16.xpose.msra.mxu0 0
    %505 = vmatprep.subr.bf16.mxu0 0
    %506 = vmatpush2.bf16.xpose.msra.mxu0 0
    %507 = vmatprep.mubr.bf16.mxu0 0
    %508 = vmatmul.mubr.bf16.gmra.mxu0 %v470
    %v509 = vpop.f32.mrf.mxu0
    %v510 = vadd.f32 0.0, %v509
    %v511 = vpop.f32.mrf.mxu0
    %v512 = vpop.f32.mrf.mxu0
    %v513 = vpop.f32.mrf.mxu0
    %514 = vdwg.mxu0
    %v515 = vmul.f32 %v510, 0.35355338
    %v516 = vsel %vm279, %v515, -1e+30
    %v517 = vsel %vm354, %v516, -inf
    %518 = vmax.xlane.f32.xlu0 %v517
    %v519 = vpop.xlane.xlu0 %518
    %v520 = vsub.f32 %v516, %v519
    %v521 = vmul.f32 %v520, 1.442695
    %v522 = vpow.pop %v521
    %v523 = vsel %vm354, %v522, 0.0
    %524 = vadd.xlane.f32.xlu0 %v523
    %v525 = vpop.xlane.xlu0 %524
    %v526 = vrcp.pop %v525
    %v527 = vmul.f32 %v522, %v526
    %v528 = vpack.c.bf16 %v527, %v527
    %529 = vrot.lane.b32.xlu0 %v350, 56
    %v530 = vpop.permute.xlu0 %529
    %v532 = vsel %vm354, %v528, 0
    %v535 = vsel %vm420, %v530, 0
    %537 = vmatprep.subr.bf16.mxu0 0
    %538 = vmatpush1.bf16.msra.mxu0 0
    %539 = vmatprep.subr.bf16.mxu0 0
    %540 = vmatpush1.bf16.msra.mxu0 0
    %541 = vmatprep.subr.bf16.mxu0 0
    %542 = vmatpush1.bf16.msra.mxu0 0
    %543 = vmatprep.subr.bf16.mxu0 0
    %544 = vmatpush1.bf16.msra.mxu0 0
    %545 = vmatprep.subr.bf16.mxu0 0
    %546 = vmatpush1.bf16.msra.mxu0 0
    %547 = vmatprep.subr.bf16.mxu0 0
    %548 = vmatpush1.bf16.msra.mxu0 0
    %549 = vmatprep.subr.bf16.mxu0 0
    %550 = vmatpush1.bf16.msra.mxu0 0
    %551 = vmatprep.subr.bf16.mxu0 0
    %552 = vmatpush1.bf16.msra.mxu0 %v535
    %553 = vmatprep.subr.bf16.mxu0 0
    %554 = vmatpush2.bf16.msra.mxu0 0
    %555 = vmatprep.subr.bf16.mxu0 0
    %556 = vmatpush2.bf16.msra.mxu0 0
    %557 = vmatprep.subr.bf16.mxu0 0
    %558 = vmatpush2.bf16.msra.mxu0 0
    %559 = vmatprep.subr.bf16.mxu0 0
    %560 = vmatpush2.bf16.msra.mxu0 0
    %561 = vmatprep.subr.bf16.mxu0 0
    %562 = vmatpush2.bf16.msra.mxu0 0
    %563 = vmatprep.subr.bf16.mxu0 0
    %564 = vmatpush2.bf16.msra.mxu0 0
    %565 = vmatprep.subr.bf16.mxu0 0
    %566 = vmatpush2.bf16.msra.mxu0 0
    %567 = vmatprep.subr.bf16.mxu0 0
    %568 = vmatpush2.bf16.msra.mxu0 0
    %569 = vmatprep.mubr.bf16.mxu0 0
    %570 = vmatmul.mubr.bf16.gmra.mxu0 %v532
    %v571 = vpop.f32.mrf.mxu0
    %v572 = vadd.f32 0.0, %v571
    %v573 = vpop.f32.mrf.mxu0
    %v574 = vpop.f32.mrf.mxu0
    %v575 = vpop.f32.mrf.mxu0
    %576 = vdwg.mxu0
    %v577 = vpack.c.bf16 %v572, %v572
    %v579 = vsel %vm354, %v577, 0
    %v582 = vsel %vm420, %v282, 0
    %584 = vmatprep.subr.bf16.mxu0 0
    %585 = vmatpush1.bf16.msra.mxu0 0
    %586 = vmatprep.subr.bf16.mxu0 0
    %587 = vmatpush1.bf16.msra.mxu0 0
    %588 = vmatprep.subr.bf16.mxu0 0
    %589 = vmatpush1.bf16.msra.mxu0 0
    %590 = vmatprep.subr.bf16.mxu0 0
    %591 = vmatpush1.bf16.msra.mxu0 0
    %592 = vmatprep.subr.bf16.mxu0 0
    %593 = vmatpush1.bf16.msra.mxu0 0
    %594 = vmatprep.subr.bf16.mxu0 0
    %595 = vmatpush1.bf16.msra.mxu0 0
    %596 = vmatprep.subr.bf16.mxu0 0
    %597 = vmatpush1.bf16.msra.mxu0 0
    %598 = vmatprep.subr.bf16.mxu0 0
    %599 = vmatpush1.bf16.msra.mxu0 %v582
    %600 = vmatprep.subr.bf16.mxu0 0
    %601 = vmatpush2.bf16.msra.mxu0 0
    %602 = vmatprep.subr.bf16.mxu0 0
    %603 = vmatpush2.bf16.msra.mxu0 0
    %604 = vmatprep.subr.bf16.mxu0 0
    %605 = vmatpush2.bf16.msra.mxu0 0
    %606 = vmatprep.subr.bf16.mxu0 0
    %607 = vmatpush2.bf16.msra.mxu0 0
    %608 = vmatprep.subr.bf16.mxu0 0
    %609 = vmatpush2.bf16.msra.mxu0 0
    %610 = vmatprep.subr.bf16.mxu0 0
    %611 = vmatpush2.bf16.msra.mxu0 0
    %612 = vmatprep.subr.bf16.mxu0 0
    %613 = vmatpush2.bf16.msra.mxu0 0
    %614 = vmatprep.subr.bf16.mxu0 0
    %615 = vmatpush2.bf16.msra.mxu0 0
    %616 = vmatprep.mubr.bf16.mxu0 0
    %617 = vmatmul.mubr.bf16.gmra.mxu0 %v579
    %v618 = vpop.f32.mrf.mxu0
    %v619 = vadd.f32 0.0, %v618
    %v620 = vpop.f32.mrf.mxu0
    %v621 = vpop.f32.mrf.mxu0
    %v622 = vpop.f32.mrf.mxu0
    %623 = vdwg.mxu0
    %v625 = vsel %vm354, %v464, 0
    %v628 = vsel %vm420, %v281, 0
    %630 = vmatprep.subr.bf16.mxu0 0
    %631 = vmatpush1.bf16.msra.mxu0 0
    %632 = vmatprep.subr.bf16.mxu0 0
    %633 = vmatpush1.bf16.msra.mxu0 0
    %634 = vmatprep.subr.bf16.mxu0 0
    %635 = vmatpush1.bf16.msra.mxu0 0
    %636 = vmatprep.subr.bf16.mxu0 0
    %637 = vmatpush1.bf16.msra.mxu0 0
    %638 = vmatprep.subr.bf16.mxu0 0
    %639 = vmatpush1.bf16.msra.mxu0 0
    %640 = vmatprep.subr.bf16.mxu0 0
    %641 = vmatpush1.bf16.msra.mxu0 0
    %642 = vmatprep.subr.bf16.mxu0 0
    %643 = vmatpush1.bf16.msra.mxu0 0
    %644 = vmatprep.subr.bf16.mxu0 0
    %645 = vmatpush1.bf16.msra.mxu0 %v628
    %646 = vmatprep.subr.bf16.mxu0 0
    %647 = vmatpush2.bf16.msra.mxu0 0
    %648 = vmatprep.subr.bf16.mxu0 0
    %649 = vmatpush2.bf16.msra.mxu0 0
    %650 = vmatprep.subr.bf16.mxu0 0
    %651 = vmatpush2.bf16.msra.mxu0 0
    %652 = vmatprep.subr.bf16.mxu0 0
    %653 = vmatpush2.bf16.msra.mxu0 0
    %654 = vmatprep.subr.bf16.mxu0 0
    %655 = vmatpush2.bf16.msra.mxu0 0
    %656 = vmatprep.subr.bf16.mxu0 0
    %657 = vmatpush2.bf16.msra.mxu0 0
    %658 = vmatprep.subr.bf16.mxu0 0
    %659 = vmatpush2.bf16.msra.mxu0 0
    %660 = vmatprep.subr.bf16.mxu0 0
    %661 = vmatpush2.bf16.msra.mxu0 0
    %662 = vmatprep.mubr.bf16.mxu0 0
    %663 = vmatmul.mubr.bf16.gmra.mxu0 %v625
    %v664 = vpop.f32.mrf.mxu0
    %v665 = vadd.f32 %v619, %v664
    %v666 = vpop.f32.mrf.mxu0
    %v667 = vpop.f32.mrf.mxu0
    %v668 = vpop.f32.mrf.mxu0
    %669 = vdwg.mxu0
    %670 = vrot.lane.b32.xlu0 %v350, 112
    %v671 = vpop.permute.xlu0 %670
    %672 = vrot.lane.b32.xlu0 %v350, 80
    %v673 = vpop.permute.xlu0 %672
    %v675 = vsel %vm354, %v671, 0
    %v678 = vsel %vm354, %v673, 0
    %680 = vmatprep.subr.bf16.mxu0 0
    %681 = vmatpush1.bf16.xpose.msra.mxu0 0
    %682 = vmatprep.subr.bf16.mxu0 0
    %683 = vmatpush1.bf16.xpose.msra.mxu0 0
    %684 = vmatprep.subr.bf16.mxu0 0
    %685 = vmatpush1.bf16.xpose.msra.mxu0 0
    %686 = vmatprep.subr.bf16.mxu0 0
    %687 = vmatpush1.bf16.xpose.msra.mxu0 0
    %688 = vmatprep.subr.bf16.mxu0 0
    %689 = vmatpush1.bf16.xpose.msra.mxu0 0
    %690 = vmatprep.subr.bf16.mxu0 0
    %691 = vmatpush1.bf16.xpose.msra.mxu0 0
    %692 = vmatprep.subr.bf16.mxu0 0
    %693 = vmatpush1.bf16.xpose.msra.mxu0 0
    %694 = vmatprep.subr.bf16.mxu0 0
    %695 = vmatpush1.bf16.xpose.msra.mxu0 %v678
    %696 = vmatprep.subr.bf16.mxu0 0
    %697 = vmatpush2.bf16.xpose.msra.mxu0 0
    %698 = vmatprep.subr.bf16.mxu0 0
    %699 = vmatpush2.bf16.xpose.msra.mxu0 0
    %700 = vmatprep.subr.bf16.mxu0 0
    %701 = vmatpush2.bf16.xpose.msra.mxu0 0
    %702 = vmatprep.subr.bf16.mxu0 0
    %703 = vmatpush2.bf16.xpose.msra.mxu0 0
    %704 = vmatprep.subr.bf16.mxu0 0
    %705 = vmatpush2.bf16.xpose.msra.mxu0 0
    %706 = vmatprep.subr.bf16.mxu0 0
    %707 = vmatpush2.bf16.xpose.msra.mxu0 0
    %708 = vmatprep.subr.bf16.mxu0 0
    %709 = vmatpush2.bf16.xpose.msra.mxu0 0
    %710 = vmatprep.subr.bf16.mxu0 0
    %711 = vmatpush2.bf16.xpose.msra.mxu0 0
    %712 = vmatprep.mubr.bf16.mxu0 0
    %713 = vmatmul.mubr.bf16.gmra.mxu0 %v675
    %v714 = vpop.f32.mrf.mxu0
    %v715 = vadd.f32 0.0, %v714
    %v716 = vpop.f32.mrf.mxu0
    %v717 = vpop.f32.mrf.mxu0
    %v718 = vpop.f32.mrf.mxu0
    %719 = vdwg.mxu0
    %v720 = vmul.f32 %v715, 0.35355338
    %v721 = vsel %vm279, %v720, -1e+30
    %v722 = vsel %vm354, %v721, -inf
    %723 = vmax.xlane.f32.xlu0 %v722
    %v724 = vpop.xlane.xlu0 %723
    %v725 = vsub.f32 %v721, %v724
    %v726 = vmul.f32 %v725, 1.442695
    %v727 = vpow.pop %v726
    %v728 = vsel %vm354, %v727, 0.0
    %729 = vadd.xlane.f32.xlu0 %v728
    %v730 = vpop.xlane.xlu0 %729
    %v731 = vrcp.pop %v730
    %v732 = vmul.f32 %v727, %v731
    %v733 = vpack.c.bf16 %v732, %v732
    %734 = vrot.lane.b32.xlu0 %v350, 48
    %v735 = vpop.permute.xlu0 %734
    %v737 = vsel %vm354, %v733, 0
    %v740 = vsel %vm420, %v735, 0
    %742 = vmatprep.subr.bf16.mxu0 0
    %743 = vmatpush1.bf16.msra.mxu0 0
    %744 = vmatprep.subr.bf16.mxu0 0
    %745 = vmatpush1.bf16.msra.mxu0 0
    %746 = vmatprep.subr.bf16.mxu0 0
    %747 = vmatpush1.bf16.msra.mxu0 0
    %748 = vmatprep.subr.bf16.mxu0 0
    %749 = vmatpush1.bf16.msra.mxu0 0
    %750 = vmatprep.subr.bf16.mxu0 0
    %751 = vmatpush1.bf16.msra.mxu0 0
    %752 = vmatprep.subr.bf16.mxu0 0
    %753 = vmatpush1.bf16.msra.mxu0 0
    %754 = vmatprep.subr.bf16.mxu0 0
    %755 = vmatpush1.bf16.msra.mxu0 0
    %756 = vmatprep.subr.bf16.mxu0 0
    %757 = vmatpush1.bf16.msra.mxu0 %v740
    %758 = vmatprep.subr.bf16.mxu0 0
    %759 = vmatpush2.bf16.msra.mxu0 0
    %760 = vmatprep.subr.bf16.mxu0 0
    %761 = vmatpush2.bf16.msra.mxu0 0
    %762 = vmatprep.subr.bf16.mxu0 0
    %763 = vmatpush2.bf16.msra.mxu0 0
    %764 = vmatprep.subr.bf16.mxu0 0
    %765 = vmatpush2.bf16.msra.mxu0 0
    %766 = vmatprep.subr.bf16.mxu0 0
    %767 = vmatpush2.bf16.msra.mxu0 0
    %768 = vmatprep.subr.bf16.mxu0 0
    %769 = vmatpush2.bf16.msra.mxu0 0
    %770 = vmatprep.subr.bf16.mxu0 0
    %771 = vmatpush2.bf16.msra.mxu0 0
    %772 = vmatprep.subr.bf16.mxu0 0
    %773 = vmatpush2.bf16.msra.mxu0 0
    %774 = vmatprep.mubr.bf16.mxu0 0
    %775 = vmatmul.mubr.bf16.gmra.mxu0 %v737
    %v776 = vpop.f32.mrf.mxu0
    %v777 = vadd.f32 0.0, %v776
    %v778 = vpop.f32.mrf.mxu0
    %v779 = vpop.f32.mrf.mxu0
    %v780 = vpop.f32.mrf.mxu0
    %781 = vdwg.mxu0
    %v782 = vpack.c.bf16 %v777, %v777
    %v784 = vsel %vm354, %v782, 0
    %v787 = vsel %vm420, %v283, 0
    %789 = vmatprep.subr.bf16.mxu0 0
    %790 = vmatpush1.bf16.msra.mxu0 0
    %791 = vmatprep.subr.bf16.mxu0 0
    %792 = vmatpush1.bf16.msra.mxu0 0
    %793 = vmatprep.subr.bf16.mxu0 0
    %794 = vmatpush1.bf16.msra.mxu0 0
    %795 = vmatprep.subr.bf16.mxu0 0
    %796 = vmatpush1.bf16.msra.mxu0 0
    %797 = vmatprep.subr.bf16.mxu0 0
    %798 = vmatpush1.bf16.msra.mxu0 0
    %799 = vmatprep.subr.bf16.mxu0 0
    %800 = vmatpush1.bf16.msra.mxu0 0
    %801 = vmatprep.subr.bf16.mxu0 0
    %802 = vmatpush1.bf16.msra.mxu0 0
    %803 = vmatprep.subr.bf16.mxu0 0
    %804 = vmatpush1.bf16.msra.mxu0 %v787
    %805 = vmatprep.subr.bf16.mxu0 0
    %806 = vmatpush2.bf16.msra.mxu0 0
    %807 = vmatprep.subr.bf16.mxu0 0
    %808 = vmatpush2.bf16.msra.mxu0 0
    %809 = vmatprep.subr.bf16.mxu0 0
    %810 = vmatpush2.bf16.msra.mxu0 0
    %811 = vmatprep.subr.bf16.mxu0 0
    %812 = vmatpush2.bf16.msra.mxu0 0
    %813 = vmatprep.subr.bf16.mxu0 0
    %814 = vmatpush2.bf16.msra.mxu0 0
    %815 = vmatprep.subr.bf16.mxu0 0
    %816 = vmatpush2.bf16.msra.mxu0 0
    %817 = vmatprep.subr.bf16.mxu0 0
    %818 = vmatpush2.bf16.msra.mxu0 0
    %819 = vmatprep.subr.bf16.mxu0 0
    %820 = vmatpush2.bf16.msra.mxu0 0
    %821 = vmatprep.mubr.bf16.mxu0 0
    %822 = vmatmul.mubr.bf16.gmra.mxu0 %v784
    %v823 = vpop.f32.mrf.mxu0
    %v824 = vadd.f32 0.0, %v823
    %v825 = vpop.f32.mrf.mxu0
    %v826 = vpop.f32.mrf.mxu0
    %v827 = vpop.f32.mrf.mxu0
    %828 = vdwg.mxu0
    %v829 = vadd.f32 %v665, %v824
    %830 = vrot.lane.b32.xlu0 %v350, 104
    %v831 = vpop.permute.xlu0 %830
    %832 = vrot.lane.b32.xlu0 %v350, 72
    %v833 = vpop.permute.xlu0 %832
    %v835 = vsel %vm354, %v831, 0
    %v838 = vsel %vm354, %v833, 0
    %840 = vmatprep.subr.bf16.mxu0 0
    %841 = vmatpush1.bf16.xpose.msra.mxu0 0
    %842 = vmatprep.subr.bf16.mxu0 0
    %843 = vmatpush1.bf16.xpose.msra.mxu0 0
    %844 = vmatprep.subr.bf16.mxu0 0
    %845 = vmatpush1.bf16.xpose.msra.mxu0 0
    %846 = vmatprep.subr.bf16.mxu0 0
    %847 = vmatpush1.bf16.xpose.msra.mxu0 0
    %848 = vmatprep.subr.bf16.mxu0 0
    %849 = vmatpush1.bf16.xpose.msra.mxu0 0
    %850 = vmatprep.subr.bf16.mxu0 0
    %851 = vmatpush1.bf16.xpose.msra.mxu0 0
    %852 = vmatprep.subr.bf16.mxu0 0
    %853 = vmatpush1.bf16.xpose.msra.mxu0 0
    %854 = vmatprep.subr.bf16.mxu0 0
    %855 = vmatpush1.bf16.xpose.msra.mxu0 %v838
    %856 = vmatprep.subr.bf16.mxu0 0
    %857 = vmatpush2.bf16.xpose.msra.mxu0 0
    %858 = vmatprep.subr.bf16.mxu0 0
    %859 = vmatpush2.bf16.xpose.msra.mxu0 0
    %860 = vmatprep.subr.bf16.mxu0 0
    %861 = vmatpush2.bf16.xpose.msra.mxu0 0
    %862 = vmatprep.subr.bf16.mxu0 0
    %863 = vmatpush2.bf16.xpose.msra.mxu0 0
    %864 = vmatprep.subr.bf16.mxu0 0
    %865 = vmatpush2.bf16.xpose.msra.mxu0 0
    %866 = vmatprep.subr.bf16.mxu0 0
    %867 = vmatpush2.bf16.xpose.msra.mxu0 0
    %868 = vmatprep.subr.bf16.mxu0 0
    %869 = vmatpush2.bf16.xpose.msra.mxu0 0
    %870 = vmatprep.subr.bf16.mxu0 0
    %871 = vmatpush2.bf16.xpose.msra.mxu0 0
    %872 = vmatprep.mubr.bf16.mxu0 0
    %873 = vmatmul.mubr.bf16.gmra.mxu0 %v835
    %v874 = vpop.f32.mrf.mxu0
    %v875 = vadd.f32 0.0, %v874
    %v876 = vpop.f32.mrf.mxu0
    %v877 = vpop.f32.mrf.mxu0
    %v878 = vpop.f32.mrf.mxu0
    %879 = vdwg.mxu0
    %v880 = vmul.f32 %v875, 0.35355338
    %v881 = vsel %vm279, %v880, -1e+30
    %v882 = vsel %vm354, %v881, -inf
    %883 = vmax.xlane.f32.xlu0 %v882
    %v884 = vpop.xlane.xlu0 %883
    %v885 = vsub.f32 %v881, %v884
    %v886 = vmul.f32 %v885, 1.442695
    %v887 = vpow.pop %v886
    %v888 = vsel %vm354, %v887, 0.0
    %889 = vadd.xlane.f32.xlu0 %v888
    %v890 = vpop.xlane.xlu0 %889
    %v891 = vrcp.pop %v890
    %v892 = vmul.f32 %v887, %v891
    %v893 = vpack.c.bf16 %v892, %v892
    %894 = vrot.lane.b32.xlu0 %v350, 40
    %v895 = vpop.permute.xlu0 %894
    %v897 = vsel %vm354, %v893, 0
    %v900 = vsel %vm420, %v895, 0
    %902 = vmatprep.subr.bf16.mxu0 0
    %903 = vmatpush1.bf16.msra.mxu0 0
    %904 = vmatprep.subr.bf16.mxu0 0
    %905 = vmatpush1.bf16.msra.mxu0 0
    %906 = vmatprep.subr.bf16.mxu0 0
    %907 = vmatpush1.bf16.msra.mxu0 0
    %908 = vmatprep.subr.bf16.mxu0 0
    %909 = vmatpush1.bf16.msra.mxu0 0
    %910 = vmatprep.subr.bf16.mxu0 0
    %911 = vmatpush1.bf16.msra.mxu0 0
    %912 = vmatprep.subr.bf16.mxu0 0
    %913 = vmatpush1.bf16.msra.mxu0 0
    %914 = vmatprep.subr.bf16.mxu0 0
    %915 = vmatpush1.bf16.msra.mxu0 0
    %916 = vmatprep.subr.bf16.mxu0 0
    %917 = vmatpush1.bf16.msra.mxu0 %v900
    %918 = vmatprep.subr.bf16.mxu0 0
    %919 = vmatpush2.bf16.msra.mxu0 0
    %920 = vmatprep.subr.bf16.mxu0 0
    %921 = vmatpush2.bf16.msra.mxu0 0
    %922 = vmatprep.subr.bf16.mxu0 0
    %923 = vmatpush2.bf16.msra.mxu0 0
    %924 = vmatprep.subr.bf16.mxu0 0
    %925 = vmatpush2.bf16.msra.mxu0 0
    %926 = vmatprep.subr.bf16.mxu0 0
    %927 = vmatpush2.bf16.msra.mxu0 0
    %928 = vmatprep.subr.bf16.mxu0 0
    %929 = vmatpush2.bf16.msra.mxu0 0
    %930 = vmatprep.subr.bf16.mxu0 0
    %931 = vmatpush2.bf16.msra.mxu0 0
    %932 = vmatprep.subr.bf16.mxu0 0
    %933 = vmatpush2.bf16.msra.mxu0 0
    %934 = vmatprep.mubr.bf16.mxu0 0
    %935 = vmatmul.mubr.bf16.gmra.mxu0 %v897
    %v936 = vpop.f32.mrf.mxu0
    %v937 = vadd.f32 0.0, %v936
    %v938 = vpop.f32.mrf.mxu0
    %v939 = vpop.f32.mrf.mxu0
    %v940 = vpop.f32.mrf.mxu0
    %941 = vdwg.mxu0
    %v942 = vpack.c.bf16 %v937, %v937
    %v944 = vsel %vm354, %v942, 0
    %v947 = vsel %vm420, %v284, 0
    %949 = vmatprep.subr.bf16.mxu0 0
    %950 = vmatpush1.bf16.msra.mxu0 0
    %951 = vmatprep.subr.bf16.mxu0 0
    %952 = vmatpush1.bf16.msra.mxu0 0
    %953 = vmatprep.subr.bf16.mxu0 0
    %954 = vmatpush1.bf16.msra.mxu0 0
    %955 = vmatprep.subr.bf16.mxu0 0
    %956 = vmatpush1.bf16.msra.mxu0 0
    %957 = vmatprep.subr.bf16.mxu0 0
    %958 = vmatpush1.bf16.msra.mxu0 0
    %959 = vmatprep.subr.bf16.mxu0 0
    %960 = vmatpush1.bf16.msra.mxu0 0
    %961 = vmatprep.subr.bf16.mxu0 0
    %962 = vmatpush1.bf16.msra.mxu0 0
    %963 = vmatprep.subr.bf16.mxu0 0
    %964 = vmatpush1.bf16.msra.mxu0 %v947
    %965 = vmatprep.subr.bf16.mxu0 0
    %966 = vmatpush2.bf16.msra.mxu0 0
    %967 = vmatprep.subr.bf16.mxu0 0
    %968 = vmatpush2.bf16.msra.mxu0 0
    %969 = vmatprep.subr.bf16.mxu0 0
    %970 = vmatpush2.bf16.msra.mxu0 0
    %971 = vmatprep.subr.bf16.mxu0 0
    %972 = vmatpush2.bf16.msra.mxu0 0
    %973 = vmatprep.subr.bf16.mxu0 0
    %974 = vmatpush2.bf16.msra.mxu0 0
    %975 = vmatprep.subr.bf16.mxu0 0
    %976 = vmatpush2.bf16.msra.mxu0 0
    %977 = vmatprep.subr.bf16.mxu0 0
    %978 = vmatpush2.bf16.msra.mxu0 0
    %979 = vmatprep.subr.bf16.mxu0 0
    %980 = vmatpush2.bf16.msra.mxu0 0
    %981 = vmatprep.mubr.bf16.mxu0 0
    %982 = vmatmul.mubr.bf16.gmra.mxu0 %v944
    %v983 = vpop.f32.mrf.mxu0
    %v984 = vadd.f32 0.0, %v983
    %v985 = vpop.f32.mrf.mxu0
    %v986 = vpop.f32.mrf.mxu0
    %v987 = vpop.f32.mrf.mxu0
    %988 = vdwg.mxu0
    %v989 = vadd.f32 %v829, %v984
    %v990 = vlaneseq
    %v991 = vshrl.u32 %v990, 7
    %v992 = vsub.s32 1, %v991
    %v993 = vrot.slane %v280, %v992
    %v994 = vadd.f32 %v989, %v993
    %v995 = vadd.f32 %v269, %v994
    %v996 = vsel %vm306, %v995, 0.0
    %997 = vadd.xlane.f32.xlu0 %v996
    %v998 = vpop.xlane.xlu0 %997
    %v999 = vrcp.pop 32.0
    %v1000 = vmul.f32 %v998, %v999
    %v1001 = vsub.f32 %v995, %v1000
    %v1002 = vmul.f32 %v1001, %v1001
    %v1003 = vsel %vm306, %v1002, 0.0
    %1004 = vadd.xlane.f32.xlu0 %v1003
    %v1005 = vpop.xlane.xlu0 %1004
    %v1006 = vmul.f32 %v1005, %v999
    %v1007 = vadd.f32 %v1006, 1e-05
    %v1008 = vrsqrt.pop %v1007
    %v1009 = vmul.f32 %v1001, %v1008
    %v1010 = vlaneseq
    %v1011 = vshrl.u32 %v1010, 7
    %v1012 = vsub.s32 2, %v1011
    %v1013 = vrot.slane %v280, %v1012
    %v1014 = vmul.f32 %v1009, %v1013
    %v1015 = vlaneseq
    %v1016 = vshrl.u32 %v1015, 7
    %v1017 = vsub.s32 3, %v1016
    %v1018 = vrot.slane %v280, %v1017
    %v1019 = vadd.f32 %v1014, %v1018
    %v1020 = vld [vmem:[#allocation8] sm:$0xf]
    %v1021 = vld [vmem:[#allocation8 + $0x4] sm:$0xf]
    %v1022 = vld [vmem:[#allocation8 + $0x8] sm:$0xf]
    %v1023 = vld [vmem:[#allocation8 + $0xc] sm:$0xf]
    %v1024 = vpack.c.bf16 %v1019, %v1019
    %v1025 = vlaneseq
    %v1026 = vshrl.u32 %v1025, 7
    %v1027 = vsub.s32 4, %v1026
    %v1028 = vrot.slane %v280, %v1027
    %v1033 = vunpack.c.l.b16 %v1020
    %v1034 = vunpack.c.l.b16 %v1021
    %v1035 = vunpack.c.l.b16 %v1022
    %v1036 = vunpack.c.l.b16 %v1023
    %v1037 = vpack.c.b16 %v1034, %v1033
    %v1038 = vpack.c.b16 %v1036, %v1035
    %v1042 = vsel %vm306, %v1024, 0
    %1044 = vmatprep.subr.bf16.mxu0 0
    %1045 = vmatpush1.bf16.msra.mxu0 0
    %1046 = vmatprep.subr.bf16.mxu0 0
    %1047 = vmatpush1.bf16.msra.mxu0 0
    %1048 = vmatprep.subr.bf16.mxu0 0
    %1049 = vmatpush1.bf16.msra.mxu0 0
    %1050 = vmatprep.subr.bf16.mxu0 0
    %1051 = vmatpush1.bf16.msra.mxu0 0
    %1052 = vmatprep.subr.bf16.mxu0 0
    %1053 = vmatpush1.bf16.msra.mxu0 0
    %1054 = vmatprep.subr.bf16.mxu0 0
    %1055 = vmatpush1.bf16.msra.mxu0 0
    %1056 = vmatprep.subr.bf16.mxu0 0
    %1057 = vmatpush1.bf16.msra.mxu0 %v1038
    %1058 = vmatprep.subr.bf16.mxu0 0
    %1059 = vmatpush1.bf16.msra.mxu0 %v1037
    %1060 = vmatprep.subr.bf16.mxu0 0
    %1061 = vmatpush2.bf16.msra.mxu0 0
    %1062 = vmatprep.subr.bf16.mxu0 0
    %1063 = vmatpush2.bf16.msra.mxu0 0
    %1064 = vmatprep.subr.bf16.mxu0 0
    %1065 = vmatpush2.bf16.msra.mxu0 0
    %1066 = vmatprep.subr.bf16.mxu0 0
    %1067 = vmatpush2.bf16.msra.mxu0 0
    %1068 = vmatprep.subr.bf16.mxu0 0
    %1069 = vmatpush2.bf16.msra.mxu0 0
    %1070 = vmatprep.subr.bf16.mxu0 0
    %1071 = vmatpush2.bf16.msra.mxu0 0
    %1072 = vmatprep.subr.bf16.mxu0 0
    %1073 = vmatpush2.bf16.msra.mxu0 0
    %1074 = vmatprep.subr.bf16.mxu0 0
    %1075 = vmatpush2.bf16.msra.mxu0 0
    %1076 = vmatprep.mubr.bf16.mxu0 0
    %1077 = vmatmul.mubr.bf16.gmra.mxu0 %v1042
    %v1078 = vpop.f32.mrf.mxu0
    %v1079 = vadd.f32 %v1028, %v1078
    %v1080 = vpop.f32.mrf.mxu0
    %v1081 = vpop.f32.mrf.mxu0
    %v1082 = vpop.f32.mrf.mxu0
    %1083 = vdwg.mxu0
    %v1084 = vmax.f32 %v1079, 0.0
    %v1085 = vld [vmem:[%s8] sm:$0xf]
    %v1086 = vld [vmem:[%s8 + $0x4] sm:$0xf]
    %v1087 = vld [vmem:[%s8 + $0x8] sm:$0xf]
    %v1088 = vld [vmem:[%s8 + $0xc] sm:$0xf]
    %v1089 = vld [vmem:[%s8 + $0x10] sm:$0xf]
    %v1090 = vld [vmem:[%s8 + $0x14] sm:$0xf]
    %v1091 = vld [vmem:[%s8 + $0x18] sm:$0xf]
    %v1092 = vld [vmem:[%s8 + $0x1c] sm:$0xf]
    %v1093 = vpack.c.bf16 %v1084, %v1084
    %v1094 = vlaneseq
    %v1095 = vshrl.u32 %v1094, 7
    %v1096 = vsub.s32 5, %v1095
    %v1097 = vrot.slane %v280, %v1096
    %v1106 = vunpack.c.l.b16 %v1085
    %v1107 = vunpack.c.l.b16 %v1086
    %v1108 = vunpack.c.l.b16 %v1087
    %v1109 = vunpack.c.l.b16 %v1088
    %v1110 = vunpack.c.l.b16 %v1089
    %v1111 = vunpack.c.l.b16 %v1090
    %v1112 = vunpack.c.l.b16 %v1091
    %v1113 = vunpack.c.l.b16 %v1092
    %v1114 = vpack.c.b16 %v1107, %v1106
    %v1115 = vpack.c.b16 %v1109, %v1108
    %v1116 = vpack.c.b16 %v1111, %v1110
    %v1117 = vpack.c.b16 %v1113, %v1112
    %v1123 = vsel %vm225, %v1093, 0
    %1125 = vmatprep.subr.bf16.mxu0 0
    %1126 = vmatpush1.bf16.msra.mxu0 0
    %1127 = vmatprep.subr.bf16.mxu0 0
    %1128 = vmatpush1.bf16.msra.mxu0 0
    %1129 = vmatprep.subr.bf16.mxu0 0
    %1130 = vmatpush1.bf16.msra.mxu0 0
    %1131 = vmatprep.subr.bf16.mxu0 0
    %1132 = vmatpush1.bf16.msra.mxu0 0
    %1133 = vmatprep.subr.bf16.mxu0 0
    %1134 = vmatpush1.bf16.msra.mxu0 %v1117
    %1135 = vmatprep.subr.bf16.mxu0 0
    %1136 = vmatpush1.bf16.msra.mxu0 %v1116
    %1137 = vmatprep.subr.bf16.mxu0 0
    %1138 = vmatpush1.bf16.msra.mxu0 %v1115
    %1139 = vmatprep.subr.bf16.mxu0 0
    %1140 = vmatpush1.bf16.msra.mxu0 %v1114
    %1141 = vmatprep.subr.bf16.mxu0 0
    %1142 = vmatpush2.bf16.msra.mxu0 0
    %1143 = vmatprep.subr.bf16.mxu0 0
    %1144 = vmatpush2.bf16.msra.mxu0 0
    %1145 = vmatprep.subr.bf16.mxu0 0
    %1146 = vmatpush2.bf16.msra.mxu0 0
    %1147 = vmatprep.subr.bf16.mxu0 0
    %1148 = vmatpush2.bf16.msra.mxu0 0
    %1149 = vmatprep.subr.bf16.mxu0 0
    %1150 = vmatpush2.bf16.msra.mxu0 0
    %1151 = vmatprep.subr.bf16.mxu0 0
    %1152 = vmatpush2.bf16.msra.mxu0 0
    %1153 = vmatprep.subr.bf16.mxu0 0
    %1154 = vmatpush2.bf16.msra.mxu0 0
    %1155 = vmatprep.subr.bf16.mxu0 0
    %1156 = vmatpush2.bf16.msra.mxu0 0
    %1157 = vmatprep.mubr.bf16.mxu0 0
    %1158 = vmatmul.mubr.bf16.gmra.mxu0 %v1123
    %v1159 = vpop.f32.mrf.mxu0
    %v1160 = vadd.f32 %v1097, %v1159
    %v1161 = vpop.f32.mrf.mxu0
    %v1162 = vpop.f32.mrf.mxu0
    %v1163 = vpop.f32.mrf.mxu0
    %1164 = vdwg.mxu0
    %v1165 = vadd.f32 %v1019, %v1160
    %v1166 = vsel %vm306, %v1165, 0.0
    %1167 = vadd.xlane.f32.xlu0 %v1166
    %v1168 = vpop.xlane.xlu0 %1167
    %v1169 = vmul.f32 %v1168, %v999
    %v1170 = vsub.f32 %v1165, %v1169
    %v1171 = vmul.f32 %v1170, %v1170
    %v1172 = vsel %vm306, %v1171, 0.0
    %1173 = vadd.xlane.f32.xlu0 %v1172
    %v1174 = vpop.xlane.xlu0 %1173
    %v1175 = vmul.f32 %v1174, %v999
    %v1176 = vadd.f32 %v1175, 1e-05
    %v1177 = vrsqrt.pop %v1176
    %v1178 = vmul.f32 %v1170, %v1177
    %v1179 = vlaneseq
    %v1180 = vshrl.u32 %v1179, 7
    %v1181 = vsub.s32 6, %v1180
    %v1182 = vrot.slane %v280, %v1181
    %v1183 = vmul.f32 %v1178, %v1182
    %v1184 = vlaneseq
    %v1185 = vshrl.u32 %v1184, 7
    %v1186 = vsub.s32 7, %v1185
    %v1187 = vrot.slane %v280, %v1186
    %v1188 = vadd.f32 %v1183, %v1187
    %s1189 = scalar_lea.vmem %s9, 8
    %v1190 = vld [vmem:[%s1189] sm:$0xff]
    %s1191 = scalar_lea.vmem [#allocation7], 16
    %v1192 = vld [vmem:[%s1191] sm:$0xf]
    %v1193 = vld [vmem:[%s1191 + $0x4] sm:$0xf]
    %v1194 = vld [vmem:[%s1191 + $0x8] sm:$0xf]
    %v1195 = vld [vmem:[%s1191 + $0xc] sm:$0xf]
    %s1196 = scalar_lea.vmem [#allocation5], 16
    %v1197 = vld [vmem:[%s1196] sm:$0xf]
    %v1198 = vld [vmem:[%s1196 + $0x4] sm:$0xf]
    %v1199 = vld [vmem:[%s1196 + $0x8] sm:$0xf]
    %v1200 = vld [vmem:[%s1196 + $0xc] sm:$0xf]
    %v1201 = vpack.c.bf16 %v1188, %v1188
    %v1202 = vlaneseq
    %v1203 = vshrl.u32 %v1202, 7
    %v1204 = vsub.s32 0, %v1203
    %v1205 = vrot.slane %v1190, %v1204
    %v1210 = vunpack.c.l.b16 %v1197
    %v1211 = vunpack.c.l.b16 %v1198
    %v1212 = vunpack.c.l.b16 %v1199
    %v1213 = vunpack.c.l.b16 %v1200
    %v1214 = vpack.c.b16 %v1211, %v1210
    %v1215 = vpack.c.b16 %v1213, %v1212
    %v1219 = vsel %vm306, %v1201, 0
    %1221 = vmatprep.subr.bf16.mxu0 0
    %1222 = vmatpush1.bf16.msra.mxu0 0
    %1223 = vmatprep.subr.bf16.mxu0 0
    %1224 = vmatpush1.bf16.msra.mxu0 0
    %1225 = vmatprep.subr.bf16.mxu0 0
    %1226 = vmatpush1.bf16.msra.mxu0 0
    %1227 = vmatprep.subr.bf16.mxu0 0
    %1228 = vmatpush1.bf16.msra.mxu0 0
    %1229 = vmatprep.subr.bf16.mxu0 0
    %1230 = vmatpush1.bf16.msra.mxu0 0
    %1231 = vmatprep.subr.bf16.mxu0 0
    %1232 = vmatpush1.bf16.msra.mxu0 0
    %1233 = vmatprep.subr.bf16.mxu0 0
    %1234 = vmatpush1.bf16.msra.mxu0 %v1215
    %1235 = vmatprep.subr.bf16.mxu0 0
    %1236 = vmatpush1.bf16.msra.mxu0 %v1214
    %1237 = vmatprep.subr.bf16.mxu0 0
    %1238 = vmatpush2.bf16.msra.mxu0 0
    %1239 = vmatprep.subr.bf16.mxu0 0
    %1240 = vmatpush2.bf16.msra.mxu0 0
    %1241 = vmatprep.subr.bf16.mxu0 0
    %1242 = vmatpush2.bf16.msra.mxu0 0
    %1243 = vmatprep.subr.bf16.mxu0 0
    %1244 = vmatpush2.bf16.msra.mxu0 0
    %1245 = vmatprep.subr.bf16.mxu0 0
    %1246 = vmatpush2.bf16.msra.mxu0 0
    %1247 = vmatprep.subr.bf16.mxu0 0
    %1248 = vmatpush2.bf16.msra.mxu0 0
    %1249 = vmatprep.subr.bf16.mxu0 0
    %1250 = vmatpush2.bf16.msra.mxu0 0
    %1251 = vmatprep.subr.bf16.mxu0 0
    %1252 = vmatpush2.bf16.msra.mxu0 0
    %1253 = vmatprep.mubr.bf16.mxu0 0
    %1254 = vmatmul.mubr.bf16.gmra.mxu0 %v1219
    %v1255 = vpop.f32.mrf.mxu0
    %v1256 = vadd.f32 %v1205, %v1255
    %v1257 = vpop.f32.mrf.mxu0
    %v1258 = vpop.f32.mrf.mxu0
    %v1259 = vpop.f32.mrf.mxu0
    %1260 = vdwg.mxu0
    %v1261 = vpack.c.bf16 %v1256, %v1256
    %1263 = vrot.lane.b32.xlu0 %v1261, 96
    %v1264 = vpop.permute.xlu0 %1263
    %v1266 = vsel %vm354, %v1261, 0
    %v1269 = vsel %vm354, %v1264, 0
    %1271 = vmatprep.subr.bf16.mxu0 0
    %1272 = vmatpush1.bf16.xpose.msra.mxu0 0
    %1273 = vmatprep.subr.bf16.mxu0 0
    %1274 = vmatpush1.bf16.xpose.msra.mxu0 0
    %1275 = vmatprep.subr.bf16.mxu0 0
    %1276 = vmatpush1.bf16.xpose.msra.mxu0 0
    %1277 = vmatprep.subr.bf16.mxu0 0
    %1278 = vmatpush1.bf16.xpose.msra.mxu0 0
    %1279 = vmatprep.subr.bf16.mxu0 0
    %1280 = vmatpush1.bf16.xpose.msra.mxu0 0
    %1281 = vmatprep.subr.bf16.mxu0 0
    %1282 = vmatpush1.bf16.xpose.msra.mxu0 0
    %1283 = vmatprep.subr.bf16.mxu0 0
    %1284 = vmatpush1.bf16.xpose.msra.mxu0 0
    %1285 = vmatprep.subr.bf16.mxu0 0
    %1286 = vmatpush1.bf16.xpose.msra.mxu0 %v1269
    %1287 = vmatprep.subr.bf16.mxu0 0
    %1288 = vmatpush2.bf16.xpose.msra.mxu0 0
    %1289 = vmatprep.subr.bf16.mxu0 0
    %1290 = vmatpush2.bf16.xpose.msra.mxu0 0
    %1291 = vmatprep.subr.bf16.mxu0 0
    %1292 = vmatpush2.bf16.xpose.msra.mxu0 0
    %1293 = vmatprep.subr.bf16.mxu0 0
    %1294 = vmatpush2.bf16.xpose.msra.mxu0 0
    %1295 = vmatprep.subr.bf16.mxu0 0
    %1296 = vmatpush2.bf16.xpose.msra.mxu0 0
    %1297 = vmatprep.subr.bf16.mxu0 0
    %1298 = vmatpush2.bf16.xpose.msra.mxu0 0
    %1299 = vmatprep.subr.bf16.mxu0 0
    %1300 = vmatpush2.bf16.xpose.msra.mxu0 0
    %1301 = vmatprep.subr.bf16.mxu0 0
    %1302 = vmatpush2.bf16.xpose.msra.mxu0 0
    %1303 = vmatprep.mubr.bf16.mxu0 0
    %1304 = vmatmul.mubr.bf16.gmra.mxu0 %v1266
    %v1305 = vpop.f32.mrf.mxu0
    %v1306 = vadd.f32 0.0, %v1305
    %v1307 = vpop.f32.mrf.mxu0
    %v1308 = vpop.f32.mrf.mxu0
    %v1309 = vpop.f32.mrf.mxu0
    %1310 = vdwg.mxu0
    %v1311 = vmul.f32 %v1306, 0.35355338
    %v1312 = vsel %vm279, %v1311, -1e+30
    %v1313 = vsel %vm354, %v1312, -inf
    %1314 = vmax.xlane.f32.xlu0 %v1313
    %v1315 = vpop.xlane.xlu0 %1314
    %v1316 = vsub.f32 %v1312, %v1315
    %v1317 = vmul.f32 %v1316, 1.442695
    %v1318 = vpow.pop %v1317
    %v1319 = vsel %vm354, %v1318, 0.0
    %1320 = vadd.xlane.f32.xlu0 %v1319
    %v1321 = vpop.xlane.xlu0 %1320
    %v1322 = vrcp.pop %v1321
    %v1323 = vmul.f32 %v1318, %v1322
    %v1324 = vpack.c.bf16 %v1323, %v1323
    %1325 = vrot.lane.b32.xlu0 %v1261, 64
    %v1326 = vpop.permute.xlu0 %1325
    %v1328 = vsel %vm354, %v1324, 0
    %v1331 = vsel %vm420, %v1326, 0
    %1333 = vmatprep.subr.bf16.mxu0 0
    %1334 = vmatpush1.bf16.msra.mxu0 0
    %1335 = vmatprep.subr.bf16.mxu0 0
    %1336 = vmatpush1.bf16.msra.mxu0 0
    %1337 = vmatprep.subr.bf16.mxu0 0
    %1338 = vmatpush1.bf16.msra.mxu0 0
    %1339 = vmatprep.subr.bf16.mxu0 0
    %1340 = vmatpush1.bf16.msra.mxu0 0
    %1341 = vmatprep.subr.bf16.mxu0 0
    %1342 = vmatpush1.bf16.msra.mxu0 0
    %1343 = vmatprep.subr.bf16.mxu0 0
    %1344 = vmatpush1.bf16.msra.mxu0 0
    %1345 = vmatprep.subr.bf16.mxu0 0
    %1346 = vmatpush1.bf16.msra.mxu0 0
    %1347 = vmatprep.subr.bf16.mxu0 0
    %1348 = vmatpush1.bf16.msra.mxu0 %v1331
    %1349 = vmatprep.subr.bf16.mxu0 0
    %1350 = vmatpush2.bf16.msra.mxu0 0
    %1351 = vmatprep.subr.bf16.mxu0 0
    %1352 = vmatpush2.bf16.msra.mxu0 0
    %1353 = vmatprep.subr.bf16.mxu0 0
    %1354 = vmatpush2.bf16.msra.mxu0 0
    %1355 = vmatprep.subr.bf16.mxu0 0
    %1356 = vmatpush2.bf16.msra.mxu0 0
    %1357 = vmatprep.subr.bf16.mxu0 0
    %1358 = vmatpush2.bf16.msra.mxu0 0
    %1359 = vmatprep.subr.bf16.mxu0 0
    %1360 = vmatpush2.bf16.msra.mxu0 0
    %1361 = vmatprep.subr.bf16.mxu0 0
    %1362 = vmatpush2.bf16.msra.mxu0 0
    %1363 = vmatprep.subr.bf16.mxu0 0
    %1364 = vmatpush2.bf16.msra.mxu0 0
    %1365 = vmatprep.mubr.bf16.mxu0 0
    %1366 = vmatmul.mubr.bf16.gmra.mxu0 %v1328
    %v1367 = vpop.f32.mrf.mxu0
    %v1368 = vadd.f32 0.0, %v1367
    %v1369 = vpop.f32.mrf.mxu0
    %v1370 = vpop.f32.mrf.mxu0
    %v1371 = vpop.f32.mrf.mxu0
    %1372 = vdwg.mxu0
    %v1373 = vpack.c.bf16 %v1368, %v1368
    %1374 = vrot.lane.b32.xlu0 %v1261, 120
    %v1375 = vpop.permute.xlu0 %1374
    %1376 = vrot.lane.b32.xlu0 %v1261, 88
    %v1377 = vpop.permute.xlu0 %1376
    %v1379 = vsel %vm354, %v1375, 0
    %v1382 = vsel %vm354, %v1377, 0
    %1384 = vmatprep.subr.bf16.mxu0 0
    %1385 = vmatpush1.bf16.xpose.msra.mxu0 0
    %1386 = vmatprep.subr.bf16.mxu0 0
    %1387 = vmatpush1.bf16.xpose.msra.mxu0 0
    %1388 = vmatprep.subr.bf16.mxu0 0
    %1389 = vmatpush1.bf16.xpose.msra.mxu0 0
    %1390 = vmatprep.subr.bf16.mxu0 0
    %1391 = vmatpush1.bf16.xpose.msra.mxu0 0
    %1392 = vmatprep.subr.bf16.mxu0 0
    %1393 = vmatpush1.bf16.xpose.msra.mxu0 0
    %1394 = vmatprep.subr.bf16.mxu0 0
    %1395 = vmatpush1.bf16.xpose.msra.mxu0 0
    %1396 = vmatprep.subr.bf16.mxu0 0
    %1397 = vmatpush1.bf16.xpose.msra.mxu0 0
    %1398 = vmatprep.subr.bf16.mxu0 0
    %1399 = vmatpush1.bf16.xpose.msra.mxu0 %v1382
    %1400 = vmatprep.subr.bf16.mxu0 0
    %1401 = vmatpush2.bf16.xpose.msra.mxu0 0
    %1402 = vmatprep.subr.bf16.mxu0 0
    %1403 = vmatpush2.bf16.xpose.msra.mxu0 0
    %1404 = vmatprep.subr.bf16.mxu0 0
    %1405 = vmatpush2.bf16.xpose.msra.mxu0 0
    %1406 = vmatprep.subr.bf16.mxu0 0
    %1407 = vmatpush2.bf16.xpose.msra.mxu0 0
    %1408 = vmatprep.subr.bf16.mxu0 0
    %1409 = vmatpush2.bf16.xpose.msra.mxu0 0
    %1410 = vmatprep.subr.bf16.mxu0 0
    %1411 = vmatpush2.bf16.xpose.msra.mxu0 0
    %1412 = vmatprep.subr.bf16.mxu0 0
    %1413 = vmatpush2.bf16.xpose.msra.mxu0 0
    %1414 = vmatprep.subr.bf16.mxu0 0
    %1415 = vmatpush2.bf16.xpose.msra.mxu0 0
    %1416 = vmatprep.mubr.bf16.mxu0 0
    %1417 = vmatmul.mubr.bf16.gmra.mxu0 %v1379
    %v1418 = vpop.f32.mrf.mxu0
    %v1419 = vadd.f32 0.0, %v1418
    %v1420 = vpop.f32.mrf.mxu0
    %v1421 = vpop.f32.mrf.mxu0
    %v1422 = vpop.f32.mrf.mxu0
    %1423 = vdwg.mxu0
    %v1424 = vmul.f32 %v1419, 0.35355338
    %v1425 = vsel %vm279, %v1424, -1e+30
    %v1426 = vsel %vm354, %v1425, -inf
    %1427 = vmax.xlane.f32.xlu0 %v1426
    %v1428 = vpop.xlane.xlu0 %1427
    %v1429 = vsub.f32 %v1425, %v1428
    %v1430 = vmul.f32 %v1429, 1.442695
    %v1431 = vpow.pop %v1430
    %v1432 = vsel %vm354, %v1431, 0.0
    %1433 = vadd.xlane.f32.xlu0 %v1432
    %v1434 = vpop.xlane.xlu0 %1433
    %v1435 = vrcp.pop %v1434
    %v1436 = vmul.f32 %v1431, %v1435
    %v1437 = vpack.c.bf16 %v1436, %v1436
    %1438 = vrot.lane.b32.xlu0 %v1261, 56
    %v1439 = vpop.permute.xlu0 %1438
    %v1441 = vsel %vm354, %v1437, 0
    %v1444 = vsel %vm420, %v1439, 0
    %1446 = vmatprep.subr.bf16.mxu0 0
    %1447 = vmatpush1.bf16.msra.mxu0 0
    %1448 = vmatprep.subr.bf16.mxu0 0
    %1449 = vmatpush1.bf16.msra.mxu0 0
    %1450 = vmatprep.subr.bf16.mxu0 0
    %1451 = vmatpush1.bf16.msra.mxu0 0
    %1452 = vmatprep.subr.bf16.mxu0 0
    %1453 = vmatpush1.bf16.msra.mxu0 0
    %1454 = vmatprep.subr.bf16.mxu0 0
    %1455 = vmatpush1.bf16.msra.mxu0 0
    %1456 = vmatprep.subr.bf16.mxu0 0
    %1457 = vmatpush1.bf16.msra.mxu0 0
    %1458 = vmatprep.subr.bf16.mxu0 0
    %1459 = vmatpush1.bf16.msra.mxu0 0
    %1460 = vmatprep.subr.bf16.mxu0 0
    %1461 = vmatpush1.bf16.msra.mxu0 %v1444
    %1462 = vmatprep.subr.bf16.mxu0 0
    %1463 = vmatpush2.bf16.msra.mxu0 0
    %1464 = vmatprep.subr.bf16.mxu0 0
    %1465 = vmatpush2.bf16.msra.mxu0 0
    %1466 = vmatprep.subr.bf16.mxu0 0
    %1467 = vmatpush2.bf16.msra.mxu0 0
    %1468 = vmatprep.subr.bf16.mxu0 0
    %1469 = vmatpush2.bf16.msra.mxu0 0
    %1470 = vmatprep.subr.bf16.mxu0 0
    %1471 = vmatpush2.bf16.msra.mxu0 0
    %1472 = vmatprep.subr.bf16.mxu0 0
    %1473 = vmatpush2.bf16.msra.mxu0 0
    %1474 = vmatprep.subr.bf16.mxu0 0
    %1475 = vmatpush2.bf16.msra.mxu0 0
    %1476 = vmatprep.subr.bf16.mxu0 0
    %1477 = vmatpush2.bf16.msra.mxu0 0
    %1478 = vmatprep.mubr.bf16.mxu0 0
    %1479 = vmatmul.mubr.bf16.gmra.mxu0 %v1441
    %v1480 = vpop.f32.mrf.mxu0
    %v1481 = vadd.f32 0.0, %v1480
    %v1482 = vpop.f32.mrf.mxu0
    %v1483 = vpop.f32.mrf.mxu0
    %v1484 = vpop.f32.mrf.mxu0
    %1485 = vdwg.mxu0
    %v1486 = vpack.c.bf16 %v1481, %v1481
    %v1488 = vsel %vm354, %v1486, 0
    %v1491 = vsel %vm420, %v1193, 0
    %1493 = vmatprep.subr.bf16.mxu0 0
    %1494 = vmatpush1.bf16.msra.mxu0 0
    %1495 = vmatprep.subr.bf16.mxu0 0
    %1496 = vmatpush1.bf16.msra.mxu0 0
    %1497 = vmatprep.subr.bf16.mxu0 0
    %1498 = vmatpush1.bf16.msra.mxu0 0
    %1499 = vmatprep.subr.bf16.mxu0 0
    %1500 = vmatpush1.bf16.msra.mxu0 0
    %1501 = vmatprep.subr.bf16.mxu0 0
    %1502 = vmatpush1.bf16.msra.mxu0 0
    %1503 = vmatprep.subr.bf16.mxu0 0
    %1504 = vmatpush1.bf16.msra.mxu0 0
    %1505 = vmatprep.subr.bf16.mxu0 0
    %1506 = vmatpush1.bf16.msra.mxu0 0
    %1507 = vmatprep.subr.bf16.mxu0 0
    %1508 = vmatpush1.bf16.msra.mxu0 %v1491
    %1509 = vmatprep.subr.bf16.mxu0 0
    %1510 = vmatpush2.bf16.msra.mxu0 0
    %1511 = vmatprep.subr.bf16.mxu0 0
    %1512 = vmatpush2.bf16.msra.mxu0 0
    %1513 = vmatprep.subr.bf16.mxu0 0
    %1514 = vmatpush2.bf16.msra.mxu0 0
    %1515 = vmatprep.subr.bf16.mxu0 0
    %1516 = vmatpush2.bf16.msra.mxu0 0
    %1517 = vmatprep.subr.bf16.mxu0 0
    %1518 = vmatpush2.bf16.msra.mxu0 0
    %1519 = vmatprep.subr.bf16.mxu0 0
    %1520 = vmatpush2.bf16.msra.mxu0 0
    %1521 = vmatprep.subr.bf16.mxu0 0
    %1522 = vmatpush2.bf16.msra.mxu0 0
    %1523 = vmatprep.subr.bf16.mxu0 0
    %1524 = vmatpush2.bf16.msra.mxu0 0
    %1525 = vmatprep.mubr.bf16.mxu0 0
    %1526 = vmatmul.mubr.bf16.gmra.mxu0 %v1488
    %v1527 = vpop.f32.mrf.mxu0
    %v1528 = vadd.f32 0.0, %v1527
    %v1529 = vpop.f32.mrf.mxu0
    %v1530 = vpop.f32.mrf.mxu0
    %v1531 = vpop.f32.mrf.mxu0
    %1532 = vdwg.mxu0
    %v1534 = vsel %vm354, %v1373, 0
    %v1537 = vsel %vm420, %v1192, 0
    %1539 = vmatprep.subr.bf16.mxu0 0
    %1540 = vmatpush1.bf16.msra.mxu0 0
    %1541 = vmatprep.subr.bf16.mxu0 0
    %1542 = vmatpush1.bf16.msra.mxu0 0
    %1543 = vmatprep.subr.bf16.mxu0 0
    %1544 = vmatpush1.bf16.msra.mxu0 0
    %1545 = vmatprep.subr.bf16.mxu0 0
    %1546 = vmatpush1.bf16.msra.mxu0 0
    %1547 = vmatprep.subr.bf16.mxu0 0
    %1548 = vmatpush1.bf16.msra.mxu0 0
    %1549 = vmatprep.subr.bf16.mxu0 0
    %1550 = vmatpush1.bf16.msra.mxu0 0
    %1551 = vmatprep.subr.bf16.mxu0 0
    %1552 = vmatpush1.bf16.msra.mxu0 0
    %1553 = vmatprep.subr.bf16.mxu0 0
    %1554 = vmatpush1.bf16.msra.mxu0 %v1537
    %1555 = vmatprep.subr.bf16.mxu0 0
    %1556 = vmatpush2.bf16.msra.mxu0 0
    %1557 = vmatprep.subr.bf16.mxu0 0
    %1558 = vmatpush2.bf16.msra.mxu0 0
    %1559 = vmatprep.subr.bf16.mxu0 0
    %1560 = vmatpush2.bf16.msra.mxu0 0
    %1561 = vmatprep.subr.bf16.mxu0 0
    %1562 = vmatpush2.bf16.msra.mxu0 0
    %1563 = vmatprep.subr.bf16.mxu0 0
    %1564 = vmatpush2.bf16.msra.mxu0 0
    %1565 = vmatprep.subr.bf16.mxu0 0
    %1566 = vmatpush2.bf16.msra.mxu0 0
    %1567 = vmatprep.subr.bf16.mxu0 0
    %1568 = vmatpush2.bf16.msra.mxu0 0
    %1569 = vmatprep.subr.bf16.mxu0 0
    %1570 = vmatpush2.bf16.msra.mxu0 0
    %1571 = vmatprep.mubr.bf16.mxu0 0
    %1572 = vmatmul.mubr.bf16.gmra.mxu0 %v1534
    %v1573 = vpop.f32.mrf.mxu0
    %v1574 = vadd.f32 %v1528, %v1573
    %v1575 = vpop.f32.mrf.mxu0
    %v1576 = vpop.f32.mrf.mxu0
    %v1577 = vpop.f32.mrf.mxu0
    %1578 = vdwg.mxu0
    %1579 = vrot.lane.b32.xlu0 %v1261, 112
    %v1580 = vpop.permute.xlu0 %1579
    %1581 = vrot.lane.b32.xlu0 %v1261, 80
    %v1582 = vpop.permute.xlu0 %1581
    %v1584 = vsel %vm354, %v1580, 0
    %v1587 = vsel %vm354, %v1582, 0
    %1589 = vmatprep.subr.bf16.mxu0 0
    %1590 = vmatpush1.bf16.xpose.msra.mxu0 0
    %1591 = vmatprep.subr.bf16.mxu0 0
    %1592 = vmatpush1.bf16.xpose.msra.mxu0 0
    %1593 = vmatprep.subr.bf16.mxu0 0
    %1594 = vmatpush1.bf16.xpose.msra.mxu0 0
    %1595 = vmatprep.subr.bf16.mxu0 0
    %1596 = vmatpush1.bf16.xpose.msra.mxu0 0
    %1597 = vmatprep.subr.bf16.mxu0 0
    %1598 = vmatpush1.bf16.xpose.msra.mxu0 0
    %1599 = vmatprep.subr.bf16.mxu0 0
    %1600 = vmatpush1.bf16.xpose.msra.mxu0 0
    %1601 = vmatprep.subr.bf16.mxu0 0
    %1602 = vmatpush1.bf16.xpose.msra.mxu0 0
    %1603 = vmatprep.subr.bf16.mxu0 0
    %1604 = vmatpush1.bf16.xpose.msra.mxu0 %v1587
    %1605 = vmatprep.subr.bf16.mxu0 0
    %1606 = vmatpush2.bf16.xpose.msra.mxu0 0
    %1607 = vmatprep.subr.bf16.mxu0 0
    %1608 = vmatpush2.bf16.xpose.msra.mxu0 0
    %1609 = vmatprep.subr.bf16.mxu0 0
    %1610 = vmatpush2.bf16.xpose.msra.mxu0 0
    %1611 = vmatprep.subr.bf16.mxu0 0
    %1612 = vmatpush2.bf16.xpose.msra.mxu0 0
    %1613 = vmatprep.subr.bf16.mxu0 0
    %1614 = vmatpush2.bf16.xpose.msra.mxu0 0
    %1615 = vmatprep.subr.bf16.mxu0 0
    %1616 = vmatpush2.bf16.xpose.msra.mxu0 0
    %1617 = vmatprep.subr.bf16.mxu0 0
    %1618 = vmatpush2.bf16.xpose.msra.mxu0 0
    %1619 = vmatprep.subr.bf16.mxu0 0
    %1620 = vmatpush2.bf16.xpose.msra.mxu0 0
    %1621 = vmatprep.mubr.bf16.mxu0 0
    %1622 = vmatmul.mubr.bf16.gmra.mxu0 %v1584
    %v1623 = vpop.f32.mrf.mxu0
    %v1624 = vadd.f32 0.0, %v1623
    %v1625 = vpop.f32.mrf.mxu0
    %v1626 = vpop.f32.mrf.mxu0
    %v1627 = vpop.f32.mrf.mxu0
    %1628 = vdwg.mxu0
    %v1629 = vmul.f32 %v1624, 0.35355338
    %v1630 = vsel %vm279, %v1629, -1e+30
    %v1631 = vsel %vm354, %v1630, -inf
    %1632 = vmax.xlane.f32.xlu0 %v1631
    %v1633 = vpop.xlane.xlu0 %1632
    %v1634 = vsub.f32 %v1630, %v1633
    %v1635 = vmul.f32 %v1634, 1.442695
    %v1636 = vpow.pop %v1635
    %v1637 = vsel %vm354, %v1636, 0.0
    %1638 = vadd.xlane.f32.xlu0 %v1637
    %v1639 = vpop.xlane.xlu0 %1638
    %v1640 = vrcp.pop %v1639
    %v1641 = vmul.f32 %v1636, %v1640
    %v1642 = vpack.c.bf16 %v1641, %v1641
    %1643 = vrot.lane.b32.xlu0 %v1261, 48
    %v1644 = vpop.permute.xlu0 %1643
    %v1646 = vsel %vm354, %v1642, 0
    %v1649 = vsel %vm420, %v1644, 0
    %1651 = vmatprep.subr.bf16.mxu0 0
    %1652 = vmatpush1.bf16.msra.mxu0 0
    %1653 = vmatprep.subr.bf16.mxu0 0
    %1654 = vmatpush1.bf16.msra.mxu0 0
    %1655 = vmatprep.subr.bf16.mxu0 0
    %1656 = vmatpush1.bf16.msra.mxu0 0
    %1657 = vmatprep.subr.bf16.mxu0 0
    %1658 = vmatpush1.bf16.msra.mxu0 0
    %1659 = vmatprep.subr.bf16.mxu0 0
    %1660 = vmatpush1.bf16.msra.mxu0 0
    %1661 = vmatprep.subr.bf16.mxu0 0
    %1662 = vmatpush1.bf16.msra.mxu0 0
    %1663 = vmatprep.subr.bf16.mxu0 0
    %1664 = vmatpush1.bf16.msra.mxu0 0
    %1665 = vmatprep.subr.bf16.mxu0 0
    %1666 = vmatpush1.bf16.msra.mxu0 %v1649
    %1667 = vmatprep.subr.bf16.mxu0 0
    %1668 = vmatpush2.bf16.msra.mxu0 0
    %1669 = vmatprep.subr.bf16.mxu0 0
    %1670 = vmatpush2.bf16.msra.mxu0 0
    %1671 = vmatprep.subr.bf16.mxu0 0
    %1672 = vmatpush2.bf16.msra.mxu0 0
    %1673 = vmatprep.subr.bf16.mxu0 0
    %1674 = vmatpush2.bf16.msra.mxu0 0
    %1675 = vmatprep.subr.bf16.mxu0 0
    %1676 = vmatpush2.bf16.msra.mxu0 0
    %1677 = vmatprep.subr.bf16.mxu0 0
    %1678 = vmatpush2.bf16.msra.mxu0 0
    %1679 = vmatprep.subr.bf16.mxu0 0
    %1680 = vmatpush2.bf16.msra.mxu0 0
    %1681 = vmatprep.subr.bf16.mxu0 0
    %1682 = vmatpush2.bf16.msra.mxu0 0
    %1683 = vmatprep.mubr.bf16.mxu0 0
    %1684 = vmatmul.mubr.bf16.gmra.mxu0 %v1646
    %v1685 = vpop.f32.mrf.mxu0
    %v1686 = vadd.f32 0.0, %v1685
    %v1687 = vpop.f32.mrf.mxu0
    %v1688 = vpop.f32.mrf.mxu0
    %v1689 = vpop.f32.mrf.mxu0
    %1690 = vdwg.mxu0
    %v1691 = vpack.c.bf16 %v1686, %v1686
    %v1693 = vsel %vm354, %v1691, 0
    %v1696 = vsel %vm420, %v1194, 0
    %1698 = vmatprep.subr.bf16.mxu0 0
    %1699 = vmatpush1.bf16.msra.mxu0 0
    %1700 = vmatprep.subr.bf16.mxu0 0
    %1701 = vmatpush1.bf16.msra.mxu0 0
    %1702 = vmatprep.subr.bf16.mxu0 0
    %1703 = vmatpush1.bf16.msra.mxu0 0
    %1704 = vmatprep.subr.bf16.mxu0 0
    %1705 = vmatpush1.bf16.msra.mxu0 0
    %1706 = vmatprep.subr.bf16.mxu0 0
    %1707 = vmatpush1.bf16.msra.mxu0 0
    %1708 = vmatprep.subr.bf16.mxu0 0
    %1709 = vmatpush1.bf16.msra.mxu0 0
    %1710 = vmatprep.subr.bf16.mxu0 0
    %1711 = vmatpush1.bf16.msra.mxu0 0
    %1712 = vmatprep.subr.bf16.mxu0 0
    %1713 = vmatpush1.bf16.msra.mxu0 %v1696
    %1714 = vmatprep.subr.bf16.mxu0 0
    %1715 = vmatpush2.bf16.msra.mxu0 0
    %1716 = vmatprep.subr.bf16.mxu0 0
    %1717 = vmatpush2.bf16.msra.mxu0 0
    %1718 = vmatprep.subr.bf16.mxu0 0
    %1719 = vmatpush2.bf16.msra.mxu0 0
    %1720 = vmatprep.subr.bf16.mxu0 0
    %1721 = vmatpush2.bf16.msra.mxu0 0
    %1722 = vmatprep.subr.bf16.mxu0 0
    %1723 = vmatpush2.bf16.msra.mxu0 0
    %1724 = vmatprep.subr.bf16.mxu0 0
    %1725 = vmatpush2.bf16.msra.mxu0 0
    %1726 = vmatprep.subr.bf16.mxu0 0
    %1727 = vmatpush2.bf16.msra.mxu0 0
    %1728 = vmatprep.subr.bf16.mxu0 0
    %1729 = vmatpush2.bf16.msra.mxu0 0
    %1730 = vmatprep.mubr.bf16.mxu0 0
    %1731 = vmatmul.mubr.bf16.gmra.mxu0 %v1693
    %v1732 = vpop.f32.mrf.mxu0
    %v1733 = vadd.f32 0.0, %v1732
    %v1734 = vpop.f32.mrf.mxu0
    %v1735 = vpop.f32.mrf.mxu0
    %v1736 = vpop.f32.mrf.mxu0
    %1737 = vdwg.mxu0
    %v1738 = vadd.f32 %v1574, %v1733
    %1739 = vrot.lane.b32.xlu0 %v1261, 104
    %v1740 = vpop.permute.xlu0 %1739
    %1741 = vrot.lane.b32.xlu0 %v1261, 72
    %v1742 = vpop.permute.xlu0 %1741
    %v1744 = vsel %vm354, %v1740, 0
    %v1747 = vsel %vm354, %v1742, 0
    %1749 = vmatprep.subr.bf16.mxu0 0
    %1750 = vmatpush1.bf16.xpose.msra.mxu0 0
    %1751 = vmatprep.subr.bf16.mxu0 0
    %1752 = vmatpush1.bf16.xpose.msra.mxu0 0
    %1753 = vmatprep.subr.bf16.mxu0 0
    %1754 = vmatpush1.bf16.xpose.msra.mxu0 0
    %1755 = vmatprep.subr.bf16.mxu0 0
    %1756 = vmatpush1.bf16.xpose.msra.mxu0 0
    %1757 = vmatprep.subr.bf16.mxu0 0
    %1758 = vmatpush1.bf16.xpose.msra.mxu0 0
    %1759 = vmatprep.subr.bf16.mxu0 0
    %1760 = vmatpush1.bf16.xpose.msra.mxu0 0
    %1761 = vmatprep.subr.bf16.mxu0 0
    %1762 = vmatpush1.bf16.xpose.msra.mxu0 0
    %1763 = vmatprep.subr.bf16.mxu0 0
    %1764 = vmatpush1.bf16.xpose.msra.mxu0 %v1747
    %1765 = vmatprep.subr.bf16.mxu0 0
    %1766 = vmatpush2.bf16.xpose.msra.mxu0 0
    %1767 = vmatprep.subr.bf16.mxu0 0
    %1768 = vmatpush2.bf16.xpose.msra.mxu0 0
    %1769 = vmatprep.subr.bf16.mxu0 0
    %1770 = vmatpush2.bf16.xpose.msra.mxu0 0
    %1771 = vmatprep.subr.bf16.mxu0 0
    %1772 = vmatpush2.bf16.xpose.msra.mxu0 0
    %1773 = vmatprep.subr.bf16.mxu0 0
    %1774 = vmatpush2.bf16.xpose.msra.mxu0 0
    %1775 = vmatprep.subr.bf16.mxu0 0
    %1776 = vmatpush2.bf16.xpose.msra.mxu0 0
    %1777 = vmatprep.subr.bf16.mxu0 0
    %1778 = vmatpush2.bf16.xpose.msra.mxu0 0
    %1779 = vmatprep.subr.bf16.mxu0 0
    %1780 = vmatpush2.bf16.xpose.msra.mxu0 0
    %1781 = vmatprep.mubr.bf16.mxu0 0
    %1782 = vmatmul.mubr.bf16.gmra.mxu0 %v1744
    %v1783 = vpop.f32.mrf.mxu0
    %v1784 = vadd.f32 0.0, %v1783
    %v1785 = vpop.f32.mrf.mxu0
    %v1786 = vpop.f32.mrf.mxu0
    %v1787 = vpop.f32.mrf.mxu0
    %1788 = vdwg.mxu0
    %v1789 = vmul.f32 %v1784, 0.35355338
    %v1790 = vsel %vm279, %v1789, -1e+30
    %v1791 = vsel %vm354, %v1790, -inf
    %1792 = vmax.xlane.f32.xlu0 %v1791
    %v1793 = vpop.xlane.xlu0 %1792
    %v1794 = vsub.f32 %v1790, %v1793
    %v1795 = vmul.f32 %v1794, 1.442695
    %v1796 = vpow.pop %v1795
    %v1797 = vsel %vm354, %v1796, 0.0
    %1798 = vadd.xlane.f32.xlu0 %v1797
    %v1799 = vpop.xlane.xlu0 %1798
    %v1800 = vrcp.pop %v1799
    %v1801 = vmul.f32 %v1796, %v1800
    %v1802 = vpack.c.bf16 %v1801, %v1801
    %1803 = vrot.lane.b32.xlu0 %v1261, 40
    %v1804 = vpop.permute.xlu0 %1803
    %v1806 = vsel %vm354, %v1802, 0
    %v1809 = vsel %vm420, %v1804, 0
    %1811 = vmatprep.subr.bf16.mxu0 0
    %1812 = vmatpush1.bf16.msra.mxu0 0
    %1813 = vmatprep.subr.bf16.mxu0 0
    %1814 = vmatpush1.bf16.msra.mxu0 0
    %1815 = vmatprep.subr.bf16.mxu0 0
    %1816 = vmatpush1.bf16.msra.mxu0 0
    %1817 = vmatprep.subr.bf16.mxu0 0
    %1818 = vmatpush1.bf16.msra.mxu0 0
    %1819 = vmatprep.subr.bf16.mxu0 0
    %1820 = vmatpush1.bf16.msra.mxu0 0
    %1821 = vmatprep.subr.bf16.mxu0 0
    %1822 = vmatpush1.bf16.msra.mxu0 0
    %1823 = vmatprep.subr.bf16.mxu0 0
    %1824 = vmatpush1.bf16.msra.mxu0 0
    %1825 = vmatprep.subr.bf16.mxu0 0
    %1826 = vmatpush1.bf16.msra.mxu0 %v1809
    %1827 = vmatprep.subr.bf16.mxu0 0
    %1828 = vmatpush2.bf16.msra.mxu0 0
    %1829 = vmatprep.subr.bf16.mxu0 0
    %1830 = vmatpush2.bf16.msra.mxu0 0
    %1831 = vmatprep.subr.bf16.mxu0 0
    %1832 = vmatpush2.bf16.msra.mxu0 0
    %1833 = vmatprep.subr.bf16.mxu0 0
    %1834 = vmatpush2.bf16.msra.mxu0 0
    %1835 = vmatprep.subr.bf16.mxu0 0
    %1836 = vmatpush2.bf16.msra.mxu0 0
    %1837 = vmatprep.subr.bf16.mxu0 0
    %1838 = vmatpush2.bf16.msra.mxu0 0
    %1839 = vmatprep.subr.bf16.mxu0 0
    %1840 = vmatpush2.bf16.msra.mxu0 0
    %1841 = vmatprep.subr.bf16.mxu0 0
    %1842 = vmatpush2.bf16.msra.mxu0 0
    %1843 = vmatprep.mubr.bf16.mxu0 0
    %1844 = vmatmul.mubr.bf16.gmra.mxu0 %v1806
    %v1845 = vpop.f32.mrf.mxu0
    %v1846 = vadd.f32 0.0, %v1845
    %v1847 = vpop.f32.mrf.mxu0
    %v1848 = vpop.f32.mrf.mxu0
    %v1849 = vpop.f32.mrf.mxu0
    %1850 = vdwg.mxu0
    %v1851 = vpack.c.bf16 %v1846, %v1846
    %v1853 = vsel %vm354, %v1851, 0
    %v1856 = vsel %vm420, %v1195, 0
    %1858 = vmatprep.subr.bf16.mxu0 0
    %1859 = vmatpush1.bf16.msra.mxu0 0
    %1860 = vmatprep.subr.bf16.mxu0 0
    %1861 = vmatpush1.bf16.msra.mxu0 0
    %1862 = vmatprep.subr.bf16.mxu0 0
    %1863 = vmatpush1.bf16.msra.mxu0 0
    %1864 = vmatprep.subr.bf16.mxu0 0
    %1865 = vmatpush1.bf16.msra.mxu0 0
    %1866 = vmatprep.subr.bf16.mxu0 0
    %1867 = vmatpush1.bf16.msra.mxu0 0
    %1868 = vmatprep.subr.bf16.mxu0 0
    %1869 = vmatpush1.bf16.msra.mxu0 0
    %1870 = vmatprep.subr.bf16.mxu0 0
    %1871 = vmatpush1.bf16.msra.mxu0 0
    %1872 = vmatprep.subr.bf16.mxu0 0
    %1873 = vmatpush1.bf16.msra.mxu0 %v1856
    %1874 = vmatprep.subr.bf16.mxu0 0
    %1875 = vmatpush2.bf16.msra.mxu0 0
    %1876 = vmatprep.subr.bf16.mxu0 0
    %1877 = vmatpush2.bf16.msra.mxu0 0
    %1878 = vmatprep.subr.bf16.mxu0 0
    %1879 = vmatpush2.bf16.msra.mxu0 0
    %1880 = vmatprep.subr.bf16.mxu0 0
    %1881 = vmatpush2.bf16.msra.mxu0 0
    %1882 = vmatprep.subr.bf16.mxu0 0
    %1883 = vmatpush2.bf16.msra.mxu0 0
    %1884 = vmatprep.subr.bf16.mxu0 0
    %1885 = vmatpush2.bf16.msra.mxu0 0
    %1886 = vmatprep.subr.bf16.mxu0 0
    %1887 = vmatpush2.bf16.msra.mxu0 0
    %1888 = vmatprep.subr.bf16.mxu0 0
    %1889 = vmatpush2.bf16.msra.mxu0 0
    %1890 = vmatprep.mubr.bf16.mxu0 0
    %1891 = vmatmul.mubr.bf16.gmra.mxu0 %v1853
    %v1892 = vpop.f32.mrf.mxu0
    %v1893 = vadd.f32 0.0, %v1892
    %v1894 = vpop.f32.mrf.mxu0
    %v1895 = vpop.f32.mrf.mxu0
    %v1896 = vpop.f32.mrf.mxu0
    %1897 = vdwg.mxu0
    %v1898 = vadd.f32 %v1738, %v1893
    %v1899 = vlaneseq
    %v1900 = vshrl.u32 %v1899, 7
    %v1901 = vsub.s32 1, %v1900
    %v1902 = vrot.slane %v1190, %v1901
    %v1903 = vadd.f32 %v1898, %v1902
    %v1904 = vadd.f32 %v1188, %v1903
    %v1905 = vsel %vm306, %v1904, 0.0
    %1906 = vadd.xlane.f32.xlu0 %v1905
    %v1907 = vpop.xlane.xlu0 %1906
    %v1908 = vmul.f32 %v1907, %v999
    %v1909 = vsub.f32 %v1904, %v1908
    %v1910 = vmul.f32 %v1909, %v1909
    %v1911 = vsel %vm306, %v1910, 0.0
    %1912 = vadd.xlane.f32.xlu0 %v1911
    %v1913 = vpop.xlane.xlu0 %1912
    %v1914 = vmul.f32 %v1913, %v999
    %v1915 = vadd.f32 %v1914, 1e-05
    %v1916 = vrsqrt.pop %v1915
    %v1917 = vmul.f32 %v1909, %v1916
    %v1918 = vlaneseq
    %v1919 = vshrl.u32 %v1918, 7
    %v1920 = vsub.s32 2, %v1919
    %v1921 = vrot.slane %v1190, %v1920
    %v1922 = vmul.f32 %v1917, %v1921
    %v1923 = vlaneseq
    %v1924 = vshrl.u32 %v1923, 7
    %v1925 = vsub.s32 3, %v1924
    %v1926 = vrot.slane %v1190, %v1925
    %v1927 = vadd.f32 %v1922, %v1926
    %s1928 = scalar_lea.vmem [#allocation8], 16
    %v1929 = vld [vmem:[%s1928] sm:$0xf]
    %v1930 = vld [vmem:[%s1928 + $0x4] sm:$0xf]
    %v1931 = vld [vmem:[%s1928 + $0x8] sm:$0xf]
    %v1932 = vld [vmem:[%s1928 + $0xc] sm:$0xf]
    %v1933 = vpack.c.bf16 %v1927, %v1927
    %v1934 = vlaneseq
    %v1935 = vshrl.u32 %v1934, 7
    %v1936 = vsub.s32 4, %v1935
    %v1937 = vrot.slane %v1190, %v1936
    %v1942 = vunpack.c.l.b16 %v1929
    %v1943 = vunpack.c.l.b16 %v1930
    %v1944 = vunpack.c.l.b16 %v1931
    %v1945 = vunpack.c.l.b16 %v1932
    %v1946 = vpack.c.b16 %v1943, %v1942
    %v1947 = vpack.c.b16 %v1945, %v1944
    %v1951 = vsel %vm306, %v1933, 0
    %1953 = vmatprep.subr.bf16.mxu0 0
    %1954 = vmatpush1.bf16.msra.mxu0 0
    %1955 = vmatprep.subr.bf16.mxu0 0
    %1956 = vmatpush1.bf16.msra.mxu0 0
    %1957 = vmatprep.subr.bf16.mxu0 0
    %1958 = vmatpush1.bf16.msra.mxu0 0
    %1959 = vmatprep.subr.bf16.mxu0 0
    %1960 = vmatpush1.bf16.msra.mxu0 0
    %1961 = vmatprep.subr.bf16.mxu0 0
    %1962 = vmatpush1.bf16.msra.mxu0 0
    %1963 = vmatprep.subr.bf16.mxu0 0
    %1964 = vmatpush1.bf16.msra.mxu0 0
    %1965 = vmatprep.subr.bf16.mxu0 0
    %1966 = vmatpush1.bf16.msra.mxu0 %v1947
    %1967 = vmatprep.subr.bf16.mxu0 0
    %1968 = vmatpush1.bf16.msra.mxu0 %v1946
    %1969 = vmatprep.subr.bf16.mxu0 0
    %1970 = vmatpush2.bf16.msra.mxu0 0
    %1971 = vmatprep.subr.bf16.mxu0 0
    %1972 = vmatpush2.bf16.msra.mxu0 0
    %1973 = vmatprep.subr.bf16.mxu0 0
    %1974 = vmatpush2.bf16.msra.mxu0 0
    %1975 = vmatprep.subr.bf16.mxu0 0
    %1976 = vmatpush2.bf16.msra.mxu0 0
    %1977 = vmatprep.subr.bf16.mxu0 0
    %1978 = vmatpush2.bf16.msra.mxu0 0
    %1979 = vmatprep.subr.bf16.mxu0 0
    %1980 = vmatpush2.bf16.msra.mxu0 0
    %1981 = vmatprep.subr.bf16.mxu0 0
    %1982 = vmatpush2.bf16.msra.mxu0 0
    %1983 = vmatprep.subr.bf16.mxu0 0
    %1984 = vmatpush2.bf16.msra.mxu0 0
    %1985 = vmatprep.mubr.bf16.mxu0 0
    %1986 = vmatmul.mubr.bf16.gmra.mxu0 %v1951
    %v1987 = vpop.f32.mrf.mxu0
    %v1988 = vadd.f32 %v1937, %v1987
    %v1989 = vpop.f32.mrf.mxu0
    %v1990 = vpop.f32.mrf.mxu0
    %v1991 = vpop.f32.mrf.mxu0
    %1992 = vdwg.mxu0
    %v1993 = vmax.f32 %v1988, 0.0
    %s1994 = scalar_lea.vmem %s8, 32
    %v1995 = vld [vmem:[%s1994] sm:$0xf]
    %v1996 = vld [vmem:[%s1994 + $0x4] sm:$0xf]
    %v1997 = vld [vmem:[%s1994 + $0x8] sm:$0xf]
    %v1998 = vld [vmem:[%s1994 + $0xc] sm:$0xf]
    %v1999 = vld [vmem:[%s1994 + $0x10] sm:$0xf]
    %v2000 = vld [vmem:[%s1994 + $0x14] sm:$0xf]
    %v2001 = vld [vmem:[%s1994 + $0x18] sm:$0xf]
    %v2002 = vld [vmem:[%s1994 + $0x1c] sm:$0xf]
    %v2003 = vpack.c.bf16 %v1993, %v1993
    %v2004 = vlaneseq
    %v2005 = vshrl.u32 %v2004, 7
    %v2006 = vsub.s32 5, %v2005
    %v2007 = vrot.slane %v1190, %v2006
    %v2016 = vunpack.c.l.b16 %v1995
    %v2017 = vunpack.c.l.b16 %v1996
    %v2018 = vunpack.c.l.b16 %v1997
    %v2019 = vunpack.c.l.b16 %v1998
    %v2020 = vunpack.c.l.b16 %v1999
    %v2021 = vunpack.c.l.b16 %v2000
    %v2022 = vunpack.c.l.b16 %v2001
    %v2023 = vunpack.c.l.b16 %v2002
    %v2024 = vpack.c.b16 %v2017, %v2016
    %v2025 = vpack.c.b16 %v2019, %v2018
    %v2026 = vpack.c.b16 %v2021, %v2020
    %v2027 = vpack.c.b16 %v2023, %v2022
    %v2033 = vsel %vm225, %v2003, 0
    %2035 = vmatprep.subr.bf16.mxu0 0
    %2036 = vmatpush1.bf16.msra.mxu0 0
    %2037 = vmatprep.subr.bf16.mxu0 0
    %2038 = vmatpush1.bf16.msra.mxu0 0
    %2039 = vmatprep.subr.bf16.mxu0 0
    %2040 = vmatpush1.bf16.msra.mxu0 0
    %2041 = vmatprep.subr.bf16.mxu0 0
    %2042 = vmatpush1.bf16.msra.mxu0 0
    %2043 = vmatprep.subr.bf16.mxu0 0
    %2044 = vmatpush1.bf16.msra.mxu0 %v2027
    %2045 = vmatprep.subr.bf16.mxu0 0
    %2046 = vmatpush1.bf16.msra.mxu0 %v2026
    %2047 = vmatprep.subr.bf16.mxu0 0
    %2048 = vmatpush1.bf16.msra.mxu0 %v2025
    %2049 = vmatprep.subr.bf16.mxu0 0
    %2050 = vmatpush1.bf16.msra.mxu0 %v2024
    %2051 = vmatprep.subr.bf16.mxu0 0
    %2052 = vmatpush2.bf16.msra.mxu0 0
    %2053 = vmatprep.subr.bf16.mxu0 0
    %2054 = vmatpush2.bf16.msra.mxu0 0
    %2055 = vmatprep.subr.bf16.mxu0 0
    %2056 = vmatpush2.bf16.msra.mxu0 0
    %2057 = vmatprep.subr.bf16.mxu0 0
    %2058 = vmatpush2.bf16.msra.mxu0 0
    %2059 = vmatprep.subr.bf16.mxu0 0
    %2060 = vmatpush2.bf16.msra.mxu0 0
    %2061 = vmatprep.subr.bf16.mxu0 0
    %2062 = vmatpush2.bf16.msra.mxu0 0
    %2063 = vmatprep.subr.bf16.mxu0 0
    %2064 = vmatpush2.bf16.msra.mxu0 0
    %2065 = vmatprep.subr.bf16.mxu0 0
    %2066 = vmatpush2.bf16.msra.mxu0 0
    %2067 = vmatprep.mubr.bf16.mxu0 0
    %2068 = vmatmul.mubr.bf16.gmra.mxu0 %v2033
    %v2069 = vpop.f32.mrf.mxu0
    %v2070 = vadd.f32 %v2007, %v2069
    %v2071 = vpop.f32.mrf.mxu0
    %v2072 = vpop.f32.mrf.mxu0
    %v2073 = vpop.f32.mrf.mxu0
    %2074 = vdwg.mxu0
    %v2075 = vadd.f32 %v1927, %v2070
    %v2076 = vsel %vm306, %v2075, 0.0
    %2077 = vadd.xlane.f32.xlu0 %v2076
    %v2078 = vpop.xlane.xlu0 %2077
    %v2079 = vmul.f32 %v2078, %v999
    %v2080 = vsub.f32 %v2075, %v2079
    %v2081 = vmul.f32 %v2080, %v2080
    %v2082 = vsel %vm306, %v2081, 0.0
    %2083 = vadd.xlane.f32.xlu0 %v2082
    %v2084 = vpop.xlane.xlu0 %2083
    %v2085 = vmul.f32 %v2084, %v999
    %v2086 = vadd.f32 %v2085, 1e-05
    %v2087 = vrsqrt.pop %v2086
    %v2088 = vmul.f32 %v2080, %v2087
    %v2089 = vlaneseq
    %v2090 = vshrl.u32 %v2089, 7
    %v2091 = vsub.s32 6, %v2090
    %v2092 = vrot.slane %v1190, %v2091
    %v2093 = vmul.f32 %v2088, %v2092
    %v2094 = vlaneseq
    %v2095 = vshrl.u32 %v2094, 7
    %v2096 = vsub.s32 7, %v2095
    %v2097 = vrot.slane %v1190, %v2096
    %v2098 = vadd.f32 %v2093, %v2097
    %v2099 = vld [vmem:[#allocation10] sm:$0xf]
    %v2100 = vld [vmem:[#allocation10 + $0x4] sm:$0xf]
    %v2101 = vld [vmem:[#allocation10 + $0x8] sm:$0xf]
    %v2102 = vld [vmem:[#allocation10 + $0xc] sm:$0xf]
    %v2103 = vpack.c.bf16 %v2098, %v2098
    %v2104 = vlaneseq
    %v2105 = vshrl.u32 %v2104, 7
    %v2106 = vsub.s32 1, %v2105
    %v2107 = vrot.slane %v126, %v2106
    %v2112 = vunpack.c.l.b16 %v2099
    %v2113 = vunpack.c.l.b16 %v2100
    %v2114 = vunpack.c.l.b16 %v2101
    %v2115 = vunpack.c.l.b16 %v2102
    %v2116 = vpack.c.b16 %v2113, %v2112
    %v2117 = vpack.c.b16 %v2115, %v2114
    %v2121 = vsel %vm306, %v2103, 0
    %2123 = vmatprep.subr.bf16.mxu0 0
    %2124 = vmatpush1.bf16.msra.mxu0 0
    %2125 = vmatprep.subr.bf16.mxu0 0
    %2126 = vmatpush1.bf16.msra.mxu0 0
    %2127 = vmatprep.subr.bf16.mxu0 0
    %2128 = vmatpush1.bf16.msra.mxu0 0
    %2129 = vmatprep.subr.bf16.mxu0 0
    %2130 = vmatpush1.bf16.msra.mxu0 0
    %2131 = vmatprep.subr.bf16.mxu0 0
    %2132 = vmatpush1.bf16.msra.mxu0 0
    %2133 = vmatprep.subr.bf16.mxu0 0
    %2134 = vmatpush1.bf16.msra.mxu0 0
    %2135 = vmatprep.subr.bf16.mxu0 0
    %2136 = vmatpush1.bf16.msra.mxu0 %v2117
    %2137 = vmatprep.subr.bf16.mxu0 0
    %2138 = vmatpush1.bf16.msra.mxu0 %v2116
    %2139 = vmatprep.subr.bf16.mxu0 0
    %2140 = vmatpush2.bf16.msra.mxu0 0
    %2141 = vmatprep.subr.bf16.mxu0 0
    %2142 = vmatpush2.bf16.msra.mxu0 0
    %2143 = vmatprep.subr.bf16.mxu0 0
    %2144 = vmatpush2.bf16.msra.mxu0 0
    %2145 = vmatprep.subr.bf16.mxu0 0
    %2146 = vmatpush2.bf16.msra.mxu0 0
    %2147 = vmatprep.subr.bf16.mxu0 0
    %2148 = vmatpush2.bf16.msra.mxu0 0
    %2149 = vmatprep.subr.bf16.mxu0 0
    %2150 = vmatpush2.bf16.msra.mxu0 0
    %2151 = vmatprep.subr.bf16.mxu0 0
    %2152 = vmatpush2.bf16.msra.mxu0 0
    %2153 = vmatprep.subr.bf16.mxu0 0
    %2154 = vmatpush2.bf16.msra.mxu0 0
    %2155 = vmatprep.mubr.bf16.mxu0 0
    %2156 = vmatmul.mubr.bf16.gmra.mxu0 %v2121
    %v2157 = vpop.f32.mrf.mxu0
    %v2158 = vadd.f32 %v2107, %v2157
    %v2159 = vpop.f32.mrf.mxu0
    %v2160 = vpop.f32.mrf.mxu0
    %v2161 = vpop.f32.mrf.mxu0
    %2162 = vdwg.mxu0
    %v2163 = vmax.f32 %v2158, 0.0
    %v2164 = vld [vmem:[%s11] sm:$0xff]
    %v2165 = vld [vmem:[%s11 + $0x8] sm:$0xff]
    %v2166 = vld [vmem:[%s11 + $0x10] sm:$0xff]
    %v2167 = vld [vmem:[%s11 + $0x18] sm:$0xff]
    %v2168 = vld [vmem:[%s11 + $0x20] sm:$0xff]
    %v2169 = vld [vmem:[%s11 + $0x28] sm:$0xff]
    %v2170 = vld [vmem:[%s11 + $0x30] sm:$0xff]
    %v2171 = vld [vmem:[%s11 + $0x38] sm:$0xff]
    %v2172 = vld [vmem:[%s11 + $0x40] sm:$0xff]
    %v2173 = vld [vmem:[%s11 + $0x48] sm:$0xff]
    %v2174 = vld [vmem:[%s11 + $0x50] sm:$0xff]
    %v2175 = vld [vmem:[%s11 + $0x58] sm:$0xff]
    %v2176 = vld [vmem:[%s11 + $0x60] sm:$0xff]
    %v2177 = vld [vmem:[%s11 + $0x68] sm:$0xff]
    %v2178 = vld [vmem:[%s11 + $0x70] sm:$0xff]
    %v2179 = vld [vmem:[%s11 + $0x78] sm:$0xff]
    %v2180 = vpack.c.bf16 %v2163, %v2163
    %v2182 = vlaneseq
    %v2183 = vshrl.u32 %v2182, 7
    %v2184 = vsub.s32 2, %v2183
    %v2185 = vrot.slane %v126, %v2184
    %v2186 = vlaneseq
    %v2187 = vshrl.u32 %v2186, 7
    %v2188 = vsub.s32 6, %v2187
    %v2189 = vrot.slane %v126, %v2188
    %v2192 = vlaneseq
    %v2193 = vshrl.u32 %v2192, 7
    %v2194 = vsub.s32 2, %v2193
    %v2195 = vrot.slane %v2185, %v2194
    %v2196 = vlaneseq
    %v2197 = vshrl.u32 %v2196, 7
    %v2198 = vsub.s32 2, %v2197
    %v2199 = vrot.slane %v2189, %v2198
    %v2216 = vunpack.c.l.b16 %v2164
    %v2217 = vunpack.c.h.b16 %v2164
    %v2218 = vunpack.c.l.b16 %v2165
    %v2219 = vunpack.c.h.b16 %v2165
    %v2220 = vunpack.c.l.b16 %v2166
    %v2221 = vunpack.c.h.b16 %v2166
    %v2222 = vunpack.c.l.b16 %v2167
    %v2223 = vunpack.c.h.b16 %v2167
    %v2224 = vunpack.c.l.b16 %v2168
    %v2225 = vunpack.c.h.b16 %v2168
    %v2226 = vunpack.c.l.b16 %v2169
    %v2227 = vunpack.c.h.b16 %v2169
    %v2228 = vunpack.c.l.b16 %v2170
    %v2229 = vunpack.c.h.b16 %v2170
    %v2230 = vunpack.c.l.b16 %v2171
    %v2231 = vunpack.c.h.b16 %v2171
    %v2232 = vunpack.c.l.b16 %v2172
    %v2233 = vunpack.c.h.b16 %v2172
    %v2234 = vunpack.c.l.b16 %v2173
    %v2235 = vunpack.c.h.b16 %v2173
    %v2236 = vunpack.c.l.b16 %v2174
    %v2237 = vunpack.c.h.b16 %v2174
    %v2238 = vunpack.c.l.b16 %v2175
    %v2239 = vunpack.c.h.b16 %v2175
    %v2240 = vunpack.c.l.b16 %v2176
    %v2241 = vunpack.c.h.b16 %v2176
    %v2242 = vunpack.c.l.b16 %v2177
    %v2243 = vunpack.c.h.b16 %v2177
    %v2244 = vunpack.c.l.b16 %v2178
    %v2245 = vunpack.c.h.b16 %v2178
    %v2246 = vunpack.c.l.b16 %v2179
    %v2247 = vunpack.c.h.b16 %v2179
    %v2248 = vpack.c.b16 %v2218, %v2216
    %v2249 = vpack.c.b16 %v2219, %v2217
    %v2250 = vpack.c.b16 %v2222, %v2220
    %v2251 = vpack.c.b16 %v2223, %v2221
    %v2252 = vpack.c.b16 %v2226, %v2224
    %v2253 = vpack.c.b16 %v2227, %v2225
    %v2254 = vpack.c.b16 %v2230, %v2228
    %v2255 = vpack.c.b16 %v2231, %v2229
    %v2256 = vpack.c.b16 %v2234, %v2232
    %v2257 = vpack.c.b16 %v2235, %v2233
    %v2258 = vpack.c.b16 %v2238, %v2236
    %v2259 = vpack.c.b16 %v2239, %v2237
    %v2260 = vpack.c.b16 %v2242, %v2240
    %v2261 = vpack.c.b16 %v2243, %v2241
    %v2262 = vpack.c.b16 %v2246, %v2244
    %v2263 = vpack.c.b16 %v2247, %v2245
    %2280 = vmatprep.subr.bf16.mxu0 %v2263
    %2281 = vmatpush1.bf16.msra.mxu0 %v2262
    %2282 = vmatprep.subr.bf16.mxu0 %v2261
    %2283 = vmatpush1.bf16.msra.mxu0 %v2260
    %2284 = vmatprep.subr.bf16.mxu0 %v2259
    %2285 = vmatpush1.bf16.msra.mxu0 %v2258
    %2286 = vmatprep.subr.bf16.mxu0 %v2257
    %2287 = vmatpush1.bf16.msra.mxu0 %v2256
    %2288 = vmatprep.subr.bf16.mxu0 %v2255
    %2289 = vmatpush1.bf16.msra.mxu0 %v2254
    %2290 = vmatprep.subr.bf16.mxu0 %v2253
    %2291 = vmatpush1.bf16.msra.mxu0 %v2252
    %2292 = vmatprep.subr.bf16.mxu0 %v2251
    %2293 = vmatpush1.bf16.msra.mxu0 %v2250
    %2294 = vmatprep.subr.bf16.mxu0 %v2249
    %2295 = vmatpush1.bf16.msra.mxu0 %v2248
    %2296 = vmatprep.subr.bf16.mxu0 0
    %2297 = vmatpush2.bf16.msra.mxu0 0
    %2298 = vmatprep.subr.bf16.mxu0 0
    %2299 = vmatpush2.bf16.msra.mxu0 0
    %2300 = vmatprep.subr.bf16.mxu0 0
    %2301 = vmatpush2.bf16.msra.mxu0 0
    %2302 = vmatprep.subr.bf16.mxu0 0
    %2303 = vmatpush2.bf16.msra.mxu0 0
    %2304 = vmatprep.subr.bf16.mxu0 0
    %2305 = vmatpush2.bf16.msra.mxu0 0
    %2306 = vmatprep.subr.bf16.mxu0 0
    %2307 = vmatpush2.bf16.msra.mxu0 0
    %2308 = vmatprep.subr.bf16.mxu0 0
    %2309 = vmatpush2.bf16.msra.mxu0 0
    %2310 = vmatprep.subr.bf16.mxu0 0
    %2311 = vmatpush2.bf16.msra.mxu0 0
    %2312 = vmatprep.mubr.bf16.mxu0 0
    %2313 = vmatmul.mubr.bf16.gmra.mxu0 %v2180
    %v2314 = vpop.f32.mrf.mxu0
    %v2315 = vadd.f32 %v2195, %v2314
    %v2316 = vpop.f32.mrf.mxu0
    %v2317 = vadd.f32 %v2199, %v2316
    %v2318 = vpop.f32.mrf.mxu0
    %v2319 = vpop.f32.mrf.mxu0
    %2320 = vdwg.mxu0
    %v2321 = vmax.f32 %v2315, 0.0
    %v2322 = vmax.f32 %v2317, 0.0
    %vm2323 = vcmp.eq.s32.totalorder %v270, 0
    %v2324 = vsel %vm2323, 1, 0
    %2325 = vset.pattern.permute.xlu0 0
    %2326 = vperm.xlu0 %2325, %v2324
    %v2327 = vpop.permute.xlu0 %2326
    %vm2328 = vcmp.eq.s32.totalorder %v2327, 1
    %v2329 = vsel %vm2328, %v2321, -1e+30
    %v2330 = vsel %vm2328, %v2322, -1e+30
    %v2331 = vrot.slane %v2329, 4
    %v2332 = vmax.f32 %v2329, %v2331
    %v2333 = vrot.slane %v2332, 2
    %v2334 = vmax.f32 %v2332, %v2333
    %v2335 = vrot.slane %v2334, 1
    %v2336 = vmax.f32 %v2334, %v2335
    %v2337 = vrot.slane %v2330, 4
    %v2338 = vmax.f32 %v2330, %v2337
    %v2339 = vrot.slane %v2338, 2
    %v2340 = vmax.f32 %v2338, %v2339
    %v2341 = vrot.slane %v2340, 1
    %v2342 = vmax.f32 %v2340, %v2341
    %vm2343 = vcmp.eq.s32.totalorder %v270, 1
    %v2344 = vsel %vm2343, 1, 0
    %2345 = vset.pattern.permute.xlu0 0
    %2346 = vperm.xlu0 %2345, %v2344
    %v2347 = vpop.permute.xlu0 %2346
    %vm2348 = vcmp.eq.s32.totalorder %v2347, 1
    %v2349 = vsel %vm2348, %v2321, -1e+30
    %v2350 = vsel %vm2348, %v2322, -1e+30
    %v2351 = vrot.slane %v2349, 4
    %v2352 = vmax.f32 %v2349, %v2351
    %v2353 = vrot.slane %v2352, 2
    %v2354 = vmax.f32 %v2352, %v2353
    %v2355 = vrot.slane %v2354, 1
    %v2356 = vmax.f32 %v2354, %v2355
    %v2357 = vrot.slane %v2350, 4
    %v2358 = vmax.f32 %v2350, %v2357
    %v2359 = vrot.slane %v2358, 2
    %v2360 = vmax.f32 %v2358, %v2359
    %v2361 = vrot.slane %v2360, 1
    %v2362 = vmax.f32 %v2360, %v2361
    %vm2363 = vcmask 1040384
    %v2364 = vsel %vm2363, %v2336, %v2356
    %v2365 = vsel %vm2363, %v2342, %v2362
    %v2368 = vcombine.low %v2364, %v2365
    %v2370 = vunpack.c.l.s4 1983009808
    %v2371 = vunpack.c.0.s8 %v2370
    %v2372 = vlaneseq
    %v2373 = vshrl.u32 %v2372, 7
    %v2374 = vsub.s32 %v2371, %v2373
    %v2375 = vrot.slane %v2368, %v2374
    %2377 = vst [vmem:[#allocation13] sm:$0xf] %v2375
    // Predicated region
    $region78: #{graph_transformer_forward.1} parent=1 // pred_check
      _
    $region79: #{graph_transformer_forward.1} parent=1 // pred_check_branch
      %2379 = sbr.rel (0) target = $region81
    $region80: #{graph_transformer_forward.1} parent=1 // pred_region
      %s2381 = ssub.s32 64, 64
      %2382 = vsyncadd [#allocation4], %s2381
      %s2384 = sshll.u32 [#allocation13], 4
      %s2385 = int_to_ptr.vmem [resolvable:$true] %s2384
      %2387 = dma.vmem_to_hbm [thread:$0]  %s2385, 64, %s13, [#allocation4]
    $region81: #{graph_transformer_forward.1} parent=1 // pred_fallthru
      _
    // Predicated region
    $region82: #{graph_transformer_forward.1} parent=1 // pred_check
      _
    $region83: #{graph_transformer_forward.1} parent=1 // pred_check_branch
      %2389 = sbr.rel (0) target = $region85
    $region84: #{graph_transformer_forward.1} parent=1 // pred_region
      %2390 = dma.done [#allocation4], 64
    $region85: #{graph_transformer_forward.1} parent=1 // pred_fallthru
      _
    %2391 = vsyncpa [#allocation3], 1
    %2392 = vsyncpa [#allocation6], 1
    %2393 = vsyncpa [#allocation9], 1
    %2394 = vsyncpa [#allocation12], 1
    %2395 = vsyncpa [#allocation4], 1

</llo_original>
